<compile_context>
chip_gen: v6e
topology: v6e:2x2x1
jax: 0.10.0
libtpu: 0.0.40
codegen_flags: <defaults>
</compile_context>

<pallas_src>
import jax
import jax.numpy as jnp
from jax.experimental import pallas as pl
from jax.experimental.pallas import tpu as pltpu

N, C_IN, H, W = 2, 1, 150, 150
C_OUT = 4
KH = KW = 3
HO, WO = H - KH + 1, W - KW + 1          # 148, 148
FLAT = C_OUT * HO * WO                   # 87616 == nn.Linear(87616, 3).in_features
NUM_CLASSES = 3


def fused_kernel(x_ref, cw_ref, cb_ref, w_ref, fb_ref, out_ref, acc_ref):
    # x_ref  : (N, 1, H, W)      VMEM, resident across the whole grid
    # cw_ref : (C_OUT, 9)        SMEM conv taps
    # cb_ref : (C_OUT,)          SMEM conv bias
    # w_ref  : (1, 3, HO, WO)    VMEM, this channel's FC weight slab (pipelined)
    # fb_ref : (1, 3)            VMEM fc bias
    # out_ref: (N, 3)            VMEM output (log-probs), written at last step
    # acc_ref: (N, 3) f32        VMEM scratch: logit accumulator across channels
    c = pl.program_id(0)

    @pl.when(c == 0)
    def _init():
        acc_ref[...] = jnp.zeros_like(acc_ref)

    # ---- conv for output channel c: shift-and-accumulate over the 9 taps ----
    conv = jnp.zeros((N, HO, WO), jnp.float32)
    for dy in range(KH):
        for dx in range(KW):
            win = x_ref[:, 0, dy:dy + HO, dx:dx + WO]            # (N, HO, WO)
            conv = conv + cw_ref[c, dy * KW + dx] * win
    conv = conv + cb_ref[c]

    # ---- this channel's contribution to the 3 logits (VPU multiply+reduce) --
    for j in range(NUM_CLASSES):
        p = conv * w_ref[0, j]                       # (N, HO, WO)
        s = jnp.sum(p, axis=2)                       # (N, HO)   lane reduce
        s = jnp.sum(s, axis=1, keepdims=True)        # (N, 1)
        acc_ref[:, j:j + 1] += s

    # ---- epilogue: bias + numerically-stable log_softmax --------------------
    @pl.when(c == C_OUT - 1)
    def _finalize():
        logits = acc_ref[...] + fb_ref[...]          # (N, 3)
        m = jnp.max(logits, axis=1, keepdims=True)
        z = logits - m
        lse = jnp.log(jnp.sum(jnp.exp(z), axis=1, keepdims=True))
        out_ref[...] = z - lse


@jax.jit
def forward(x, conv_w9, conv_b, fc_w_l, fc_b2):
    return pl.pallas_call(
        fused_kernel,
        out_shape=jax.ShapeDtypeStruct((N, NUM_CLASSES), jnp.float32),
        grid=(C_OUT,),
        in_specs=[
            pl.BlockSpec((N, C_IN, H, W), lambda c: (0, 0, 0, 0)),          # x (resident)
            pl.BlockSpec(memory_space=pltpu.MemorySpace.SMEM),              # conv taps
            pl.BlockSpec(memory_space=pltpu.MemorySpace.SMEM),              # conv bias
            pl.BlockSpec((1, NUM_CLASSES, HO, WO), lambda c: (c, 0, 0, 0)), # FC weight slab
            pl.BlockSpec(memory_space=pltpu.MemorySpace.VMEM),              # fc bias
        ],
        out_specs=pl.BlockSpec((N, NUM_CLASSES), lambda c: (0, 0)),
        scratch_shapes=[pltpu.VMEM((N, NUM_CLASSES), jnp.float32)],
        compiler_params=pltpu.CompilerParams(
            dimension_semantics=("arbitrary",)),     # channel axis is a reduction
    )(x, conv_w9, conv_b, fc_w_l, fc_b2)


def prepare_params(conv_w, conv_b, fc_w, fc_b):
    """One-time parameter layout (kept OUTSIDE the jitted per-call path)."""
    conv_w9 = conv_w.reshape(C_OUT, KH * KW)
    # PyTorch flattens the conv output row-major over (c, h, w), so
    # fc_w[j, c*HO*WO + h*WO + w]  ->  fc_w_l[c, j, h, w].
    fc_w_l = jnp.transpose(fc_w.reshape(NUM_CLASSES, C_OUT, HO, WO), (1, 0, 2, 3))
    fc_b2 = fc_b.reshape(1, NUM_CLASSES)
    return conv_w9, conv_b, fc_w_l, fc_b2


def reference(x, conv_w, conv_b, fc_w, fc_b):
    y = jax.lax.conv_general_dilated(
        x, conv_w, window_strides=(1, 1), padding="VALID",
        dimension_numbers=("NCHW", "OIHW", "NCHW"))
    y = y + conv_b.reshape(1, -1, 1, 1)
    flat = y.reshape(x.shape[0], -1)
    logits = jnp.dot(flat, fc_w.T, precision=jax.lax.Precision.HIGHEST) + fc_b
    return jax.nn.log_softmax(logits, axis=1)


if __name__ == "__main__":
    key = jax.random.PRNGKey(0)
    k1, k2, k3, k4, k5 = jax.random.split(key, 5)

    # Deterministic synthetic parameters (shapes from the module's __init__).
    conv_w = 0.1 * jax.random.normal(k1, (C_OUT, C_IN, KH, KW), jnp.float32)
    conv_b = 0.1 * jax.random.normal(k2, (C_OUT,), jnp.float32)
    fc_w = 0.01 * jax.random.normal(k3, (NUM_CLASSES, FLAT), jnp.float32)
    fc_b = 0.01 * jax.random.normal(k4, (NUM_CLASSES,), jnp.float32)

    # Linear(87616, 3) forces the input spatial size to 150x150 (4*148*148).
    x = jax.random.normal(k5, (N, C_IN, H, W), jnp.float32)

    params = prepare_params(conv_w, conv_b, fc_w, fc_b)   # done once, outside jit

    out = jax.block_until_ready(forward(x, *params))      # (N, 3) log-probs

    ref = reference(x, conv_w, conv_b, fc_w, fc_b)
    if not jnp.allclose(out, ref, atol=2e-3, rtol=2e-3):
        raise AssertionError(f"mismatch: max abs diff {jnp.max(jnp.abs(out - ref))}")

    print("KERNEL_OK")
</pallas_src>

<mosaic_0001>
module attributes {stable_mosaic.version = 11 : i64} {
  func.func @fused_kernel(%arg0: i32, %arg1: memref<2x1x150x150xf32, #tpu.memory_space<vmem>>, %arg2: memref<4x9xf32, #tpu.memory_space<smem>>, %arg3: memref<4xf32, #tpu.memory_space<smem>>, %arg4: memref<1x3x148x148xf32, #tpu.memory_space<vmem>>, %arg5: memref<1x3xf32, #tpu.memory_space<vmem>>, %arg6: memref<2x3xf32, #tpu.memory_space<vmem>>, %arg7: memref<2x3xf32, #tpu.memory_space<vmem>>) attributes {dimension_semantics = [#tpu.dimension_semantics<arbitrary>], iteration_bounds = array<i64: 4>, scalar_prefetch = 0 : i64, scratch_operands = 1 : i64, tpu.core_type = #tpu.core_type<tc>, window_params = [{pipeline_mode = #tpu.pipeline_mode<synchronous>, transform_indices = @transform_0, window_bounds = array<i64: 2, 1, 150, 150>}, {transform_indices = @transform_1, window_bounds = array<i64: 4, 9>}, {transform_indices = @transform_2, window_bounds = array<i64: 4>}, {transform_indices = @transform_3, window_bounds = array<i64: 1, 3, 148, 148>}, {pipeline_mode = #tpu.pipeline_mode<synchronous>, transform_indices = @transform_4, window_bounds = array<i64: 1, 3>}, {pipeline_mode = #tpu.pipeline_mode<synchronous>, transform_indices = @transform_5, window_bounds = array<i64: 2, 3>}]} {
    %c0_i32 = arith.constant 0 : i32
    %0 = arith.cmpi eq, %arg0, %c0_i32 : i32
    %1 = arith.extui %0 : i1 to i32
    %c0_i32_0 = arith.constant 0 : i32
    %2 = arith.cmpi ne, %1, %c0_i32_0 : i32
    scf.if %2 {
      %cst_68 = arith.constant 0.000000e+00 : f32
      %107 = vector.broadcast %cst_68 : f32 to vector<2x3xf32>
      %c0_69 = arith.constant 0 : index
      %c0_70 = arith.constant 0 : index
      %108 = vector.load %arg7[%c0_69, %c0_70] : memref<2x3xf32, #tpu.memory_space<vmem>>, vector<2x3xf32>
      tpu.vector_store %arg7[%c0_69, %c0_70], %107 {strides = array<i32>} : memref<2x3xf32, #tpu.memory_space<vmem>>, vector<2x3xf32>,
    } else {
    }
    %cst = arith.constant 0.000000e+00 : f32
    %3 = vector.broadcast %cst : f32 to vector<2x148x148xf32>
    %c0 = arith.constant 0 : index
    %c0_1 = arith.constant 0 : index
    %c0_2 = arith.constant 0 : index
    %c0_3 = arith.constant 0 : index
    %4 = vector.load %arg1[%c0, %c0_1, %c0_2, %c0_3] : memref<2x1x150x150xf32, #tpu.memory_space<vmem>>, vector<2x1x148x148xf32>
    %5 = vector.shape_cast %4 : vector<2x1x148x148xf32> to vector<2x148x148xf32>
    %6 = arith.index_cast %arg0 : i32 to index
    %c0_4 = arith.constant 0 : index
    %7 = memref.load %arg2[%6, %c0_4] : memref<4x9xf32, #tpu.memory_space<smem>>
    %8 = vector.broadcast %7 : f32 to vector<2x148x148xf32>
    %9 = arith.mulf %8, %5 : vector<2x148x148xf32>
    %10 = arith.addf %3, %9 : vector<2x148x148xf32>
    %c0_5 = arith.constant 0 : index
    %c0_6 = arith.constant 0 : index
    %c0_7 = arith.constant 0 : index
    %c1 = arith.constant 1 : index
    %11 = vector.load %arg1[%c0_5, %c0_6, %c0_7, %c1] : memref<2x1x150x150xf32, #tpu.memory_space<vmem>>, vector<2x1x148x148xf32>
    %12 = vector.shape_cast %11 : vector<2x1x148x148xf32> to vector<2x148x148xf32>
    %13 = arith.index_cast %arg0 : i32 to index
    %c1_8 = arith.constant 1 : index
    %14 = memref.load %arg2[%13, %c1_8] : memref<4x9xf32, #tpu.memory_space<smem>>
    %15 = vector.broadcast %14 : f32 to vector<2x148x148xf32>
    %16 = arith.mulf %15, %12 : vector<2x148x148xf32>
    %17 = arith.addf %10, %16 : vector<2x148x148xf32>
    %c0_9 = arith.constant 0 : index
    %c0_10 = arith.constant 0 : index
    %c0_11 = arith.constant 0 : index
    %c2 = arith.constant 2 : index
    %18 = vector.load %arg1[%c0_9, %c0_10, %c0_11, %c2] : memref<2x1x150x150xf32, #tpu.memory_space<vmem>>, vector<2x1x148x148xf32>
    %19 = vector.shape_cast %18 : vector<2x1x148x148xf32> to vector<2x148x148xf32>
    %20 = arith.index_cast %arg0 : i32 to index
    %c2_12 = arith.constant 2 : index
    %21 = memref.load %arg2[%20, %c2_12] : memref<4x9xf32, #tpu.memory_space<smem>>
    %22 = vector.broadcast %21 : f32 to vector<2x148x148xf32>
    %23 = arith.mulf %22, %19 : vector<2x148x148xf32>
    %24 = arith.addf %17, %23 : vector<2x148x148xf32>
    %c0_13 = arith.constant 0 : index
    %c0_14 = arith.constant 0 : index
    %c1_15 = arith.constant 1 : index
    %c0_16 = arith.constant 0 : index
    %25 = vector.load %arg1[%c0_13, %c0_14, %c1_15, %c0_16] : memref<2x1x150x150xf32, #tpu.memory_space<vmem>>, vector<2x1x148x148xf32>
    %26 = vector.shape_cast %25 : vector<2x1x148x148xf32> to vector<2x148x148xf32>
    %27 = arith.index_cast %arg0 : i32 to index
    %c3 = arith.constant 3 : index
    %28 = memref.load %arg2[%27, %c3] : memref<4x9xf32, #tpu.memory_space<smem>>
    %29 = vector.broadcast %28 : f32 to vector<2x148x148xf32>
    %30 = arith.mulf %29, %26 : vector<2x148x148xf32>
    %31 = arith.addf %24, %30 : vector<2x148x148xf32>
    %c0_17 = arith.constant 0 : index
    %c0_18 = arith.constant 0 : index
    %c1_19 = arith.constant 1 : index
    %c1_20 = arith.constant 1 : index
    %32 = vector.load %arg1[%c0_17, %c0_18, %c1_19, %c1_20] : memref<2x1x150x150xf32, #tpu.memory_space<vmem>>, vector<2x1x148x148xf32>
    %33 = vector.shape_cast %32 : vector<2x1x148x148xf32> to vector<2x148x148xf32>
    %34 = arith.index_cast %arg0 : i32 to index
    %c4 = arith.constant 4 : index
    %35 = memref.load %arg2[%34, %c4] : memref<4x9xf32, #tpu.memory_space<smem>>
    %36 = vector.broadcast %35 : f32 to vector<2x148x148xf32>
    %37 = arith.mulf %36, %33 : vector<2x148x148xf32>
    %38 = arith.addf %31, %37 : vector<2x148x148xf32>
    %c0_21 = arith.constant 0 : index
    %c0_22 = arith.constant 0 : index
    %c1_23 = arith.constant 1 : index
    %c2_24 = arith.constant 2 : index
    %39 = vector.load %arg1[%c0_21, %c0_22, %c1_23, %c2_24] : memref<2x1x150x150xf32, #tpu.memory_space<vmem>>, vector<2x1x148x148xf32>
    %40 = vector.shape_cast %39 : vector<2x1x148x148xf32> to vector<2x148x148xf32>
    %41 = arith.index_cast %arg0 : i32 to index
    %c5 = arith.constant 5 : index
    %42 = memref.load %arg2[%41, %c5] : memref<4x9xf32, #tpu.memory_space<smem>>
    %43 = vector.broadcast %42 : f32 to vector<2x148x148xf32>
    %44 = arith.mulf %43, %40 : vector<2x148x148xf32>
    %45 = arith.addf %38, %44 : vector<2x148x148xf32>
    %c0_25 = arith.constant 0 : index
    %c0_26 = arith.constant 0 : index
    %c2_27 = arith.constant 2 : index
    %c0_28 = arith.constant 0 : index
    %46 = vector.load %arg1[%c0_25, %c0_26, %c2_27, %c0_28] : memref<2x1x150x150xf32, #tpu.memory_space<vmem>>, vector<2x1x148x148xf32>
    %47 = vector.shape_cast %46 : vector<2x1x148x148xf32> to vector<2x148x148xf32>
    %48 = arith.index_cast %arg0 : i32 to index
    %c6 = arith.constant 6 : index
    %49 = memref.load %arg2[%48, %c6] : memref<4x9xf32, #tpu.memory_space<smem>>
    %50 = vector.broadcast %49 : f32 to vector<2x148x148xf32>
    %51 = arith.mulf %50, %47 : vector<2x148x148xf32>
    %52 = arith.addf %45, %51 : vector<2x148x148xf32>
    %c0_29 = arith.constant 0 : index
    %c0_30 = arith.constant 0 : index
    %c2_31 = arith.constant 2 : index
    %c1_32 = arith.constant 1 : index
    %53 = vector.load %arg1[%c0_29, %c0_30, %c2_31, %c1_32] : memref<2x1x150x150xf32, #tpu.memory_space<vmem>>, vector<2x1x148x148xf32>
    %54 = vector.shape_cast %53 : vector<2x1x148x148xf32> to vector<2x148x148xf32>
    %55 = arith.index_cast %arg0 : i32 to index
    %c7 = arith.constant 7 : index
    %56 = memref.load %arg2[%55, %c7] : memref<4x9xf32, #tpu.memory_space<smem>>
    %57 = vector.broadcast %56 : f32 to vector<2x148x148xf32>
    %58 = arith.mulf %57, %54 : vector<2x148x148xf32>
    %59 = arith.addf %52, %58 : vector<2x148x148xf32>
    %c0_33 = arith.constant 0 : index
    %c0_34 = arith.constant 0 : index
    %c2_35 = arith.constant 2 : index
    %c2_36 = arith.constant 2 : index
    %60 = vector.load %arg1[%c0_33, %c0_34, %c2_35, %c2_36] : memref<2x1x150x150xf32, #tpu.memory_space<vmem>>, vector<2x1x148x148xf32>
    %61 = vector.shape_cast %60 : vector<2x1x148x148xf32> to vector<2x148x148xf32>
    %62 = arith.index_cast %arg0 : i32 to index
    %c8 = arith.constant 8 : index
    %63 = memref.load %arg2[%62, %c8] : memref<4x9xf32, #tpu.memory_space<smem>>
    %64 = vector.broadcast %63 : f32 to vector<2x148x148xf32>
    %65 = arith.mulf %64, %61 : vector<2x148x148xf32>
    %66 = arith.addf %59, %65 : vector<2x148x148xf32>
    %67 = arith.index_cast %arg0 : i32 to index
    %68 = memref.load %arg3[%67] : memref<4xf32, #tpu.memory_space<smem>>
    %69 = vector.broadcast %68 : f32 to vector<2x148x148xf32>
    %70 = arith.addf %66, %69 : vector<2x148x148xf32>
    %c0_37 = arith.constant 0 : index
    %c0_38 = arith.constant 0 : index
    %c0_39 = arith.constant 0 : index
    %c0_40 = arith.constant 0 : index
    %71 = vector.load %arg4[%c0_37, %c0_38, %c0_39, %c0_40] : memref<1x3x148x148xf32, #tpu.memory_space<vmem>>, vector<1x1x148x148xf32>
    %72 = vector.shape_cast %71 : vector<1x1x148x148xf32> to vector<148x148xf32>
    %73 = vector.shape_cast %72 : vector<148x148xf32> to vector<1x148x148xf32>
    %74 = vector.broadcast %73 : vector<1x148x148xf32> to vector<2x148x148xf32>
    %75 = arith.mulf %70, %74 : vector<2x148x148xf32>
    %cst_41 = arith.constant dense<0.000000e+00> : vector<2x148xf32>
    %76 = vector.multi_reduction <add>, %75, %cst_41 [2] : vector<2x148x148xf32> to vector<2x148xf32>
    %cst_42 = arith.constant dense<0.000000e+00> : vector<2xf32>
    %77 = vector.multi_reduction <add>, %76, %cst_42 [1] : vector<2x148xf32> to vector<2xf32>
    %78 = vector.shape_cast %77 : vector<2xf32> to vector<2x1xf32>
    %c0_43 = arith.constant 0 : index
    %c0_44 = arith.constant 0 : index
    %79 = vector.load %arg7[%c0_43, %c0_44] : memref<2x3xf32, #tpu.memory_space<vmem>>, vector<2x1xf32>
    %80 = arith.addf %79, %78 : vector<2x1xf32>
    %c0_45 = arith.constant 0 : index
    %c0_46 = arith.constant 0 : index
    %81 = vector.load %arg7[%c0_45, %c0_46] : memref<2x3xf32, #tpu.memory_space<vmem>>, vector<2x1xf32>
    tpu.vector_store %arg7[%c0_45, %c0_46], %80 {strides = array<i32>} : memref<2x3xf32, #tpu.memory_space<vmem>>, vector<2x1xf32>,
    %c0_47 = arith.constant 0 : index
    %c1_48 = arith.constant 1 : index
    %c0_49 = arith.constant 0 : index
    %c0_50 = arith.constant 0 : index
    %82 = vector.load %arg4[%c0_47, %c1_48, %c0_49, %c0_50] : memref<1x3x148x148xf32, #tpu.memory_space<vmem>>, vector<1x1x148x148xf32>
    %83 = vector.shape_cast %82 : vector<1x1x148x148xf32> to vector<148x148xf32>
    %84 = vector.shape_cast %83 : vector<148x148xf32> to vector<1x148x148xf32>
    %85 = vector.broadcast %84 : vector<1x148x148xf32> to vector<2x148x148xf32>
    %86 = arith.mulf %70, %85 : vector<2x148x148xf32>
    %cst_51 = arith.constant dense<0.000000e+00> : vector<2x148xf32>
    %87 = vector.multi_reduction <add>, %86, %cst_51 [2] : vector<2x148x148xf32> to vector<2x148xf32>
    %cst_52 = arith.constant dense<0.000000e+00> : vector<2xf32>
    %88 = vector.multi_reduction <add>, %87, %cst_52 [1] : vector<2x148xf32> to vector<2xf32>
    %89 = vector.shape_cast %88 : vector<2xf32> to vector<2x1xf32>
    %c0_53 = arith.constant 0 : index
    %c1_54 = arith.constant 1 : index
    %90 = vector.load %arg7[%c0_53, %c1_54] : memref<2x3xf32, #tpu.memory_space<vmem>>, vector<2x1xf32>
    %91 = arith.addf %90, %89 : vector<2x1xf32>
    %c0_55 = arith.constant 0 : index
    %c1_56 = arith.constant 1 : index
    %92 = vector.load %arg7[%c0_55, %c1_56] : memref<2x3xf32, #tpu.memory_space<vmem>>, vector<2x1xf32>
    tpu.vector_store %arg7[%c0_55, %c1_56], %91 {strides = array<i32>} : memref<2x3xf32, #tpu.memory_space<vmem>>, vector<2x1xf32>,
    %c0_57 = arith.constant 0 : index
    %c2_58 = arith.constant 2 : index
    %c0_59 = arith.constant 0 : index
    %c0_60 = arith.constant 0 : index
    %93 = vector.load %arg4[%c0_57, %c2_58, %c0_59, %c0_60] : memref<1x3x148x148xf32, #tpu.memory_space<vmem>>, vector<1x1x148x148xf32>
    %94 = vector.shape_cast %93 : vector<1x1x148x148xf32> to vector<148x148xf32>
    %95 = vector.shape_cast %94 : vector<148x148xf32> to vector<1x148x148xf32>
    %96 = vector.broadcast %95 : vector<1x148x148xf32> to vector<2x148x148xf32>
    %97 = arith.mulf %70, %96 : vector<2x148x148xf32>
    %cst_61 = arith.constant dense<0.000000e+00> : vector<2x148xf32>
    %98 = vector.multi_reduction <add>, %97, %cst_61 [2] : vector<2x148x148xf32> to vector<2x148xf32>
    %cst_62 = arith.constant dense<0.000000e+00> : vector<2xf32>
    %99 = vector.multi_reduction <add>, %98, %cst_62 [1] : vector<2x148xf32> to vector<2xf32>
    %100 = vector.shape_cast %99 : vector<2xf32> to vector<2x1xf32>
    %c0_63 = arith.constant 0 : index
    %c2_64 = arith.constant 2 : index
    %101 = vector.load %arg7[%c0_63, %c2_64] : memref<2x3xf32, #tpu.memory_space<vmem>>, vector<2x1xf32>
    %102 = arith.addf %101, %100 : vector<2x1xf32>
    %c0_65 = arith.constant 0 : index
    %c2_66 = arith.constant 2 : index
    %103 = vector.load %arg7[%c0_65, %c2_66] : memref<2x3xf32, #tpu.memory_space<vmem>>, vector<2x1xf32>
    tpu.vector_store %arg7[%c0_65, %c2_66], %102 {strides = array<i32>} : memref<2x3xf32, #tpu.memory_space<vmem>>, vector<2x1xf32>,
    %c3_i32 = arith.constant 3 : i32
    %104 = arith.cmpi eq, %arg0, %c3_i32 : i32
    %105 = arith.extui %104 : i1 to i32
    %c0_i32_67 = arith.constant 0 : i32
    %106 = arith.cmpi ne, %105, %c0_i32_67 : i32
    scf.if %106 {
      %c0_68 = arith.constant 0 : index
      %c0_69 = arith.constant 0 : index
      %107 = vector.load %arg7[%c0_68, %c0_69] : memref<2x3xf32, #tpu.memory_space<vmem>>, vector<2x3xf32>
      %c0_70 = arith.constant 0 : index
      %c0_71 = arith.constant 0 : index
      %108 = vector.load %arg5[%c0_70, %c0_71] : memref<1x3xf32, #tpu.memory_space<vmem>>, vector<1x3xf32>
      %109 = vector.broadcast %108 : vector<1x3xf32> to vector<2x3xf32>
      %110 = arith.addf %107, %109 : vector<2x3xf32>
      %cst_72 = arith.constant dense<0xFF800000> : vector<2xf32>
      %111 = vector.multi_reduction <maximumf>, %110, %cst_72 [1] : vector<2x3xf32> to vector<2xf32>
      %112 = vector.shape_cast %111 : vector<2xf32> to vector<2x1xf32>
      %113 = vector.broadcast %112 : vector<2x1xf32> to vector<2x3xf32>
      %114 = arith.subf %110, %113 : vector<2x3xf32>
      %115 = math.exp %114 : vector<2x3xf32>
      %cst_73 = arith.constant dense<0.000000e+00> : vector<2xf32>
      %116 = vector.multi_reduction <add>, %115, %cst_73 [1] : vector<2x3xf32> to vector<2xf32>
      %117 = vector.shape_cast %116 : vector<2xf32> to vector<2x1xf32>
      %118 = math.log %117 : vector<2x1xf32>
      %119 = vector.broadcast %118 : vector<2x1xf32> to vector<2x3xf32>
      %120 = arith.subf %114, %119 : vector<2x3xf32>
      %c0_74 = arith.constant 0 : index
      %c0_75 = arith.constant 0 : index
      %121 = vector.load %arg6[%c0_74, %c0_75] : memref<2x3xf32, #tpu.memory_space<vmem>>, vector<2x3xf32>
      tpu.vector_store %arg6[%c0_74, %c0_75], %120 {strides = array<i32>} : memref<2x3xf32, #tpu.memory_space<vmem>>, vector<2x3xf32>,
    } else {
    }
    return
  }
  func.func @transform_0(%arg0: i32) -> (i32, i32, i32, i32) {
    %c0_i32 = arith.constant 0 : i32
    %c0_i32_0 = arith.constant 0 : i32
    %c0_i32_1 = arith.constant 0 : i32
    %c0_i32_2 = arith.constant 0 : i32
    %c0_i32_3 = arith.constant 0 : i32
    return %c0_i32, %c0_i32_0, %c0_i32_1, %c0_i32_2 : i32, i32, i32, i32
  }
  func.func @transform_1(%arg0: i32) -> (i32, i32) {
    %c0_i32 = arith.constant 0 : i32
    %c0_i32_0 = arith.constant 0 : i32
    %c0_i32_1 = arith.constant 0 : i32
    return %c0_i32, %c0_i32_0 : i32, i32
  }
  func.func @transform_2(%arg0: i32) -> i32 {
    %c0_i32 = arith.constant 0 : i32
    %c0_i32_0 = arith.constant 0 : i32
    return %c0_i32 : i32
  }
  func.func @transform_3(%arg0: i32) -> (i32, i32, i32, i32) {
    %c0_i32 = arith.constant 0 : i32
    %c0_i32_0 = arith.constant 0 : i32
    %c0_i32_1 = arith.constant 0 : i32
    %c0_i32_2 = arith.constant 0 : i32
    return %arg0, %c0_i32, %c0_i32_0, %c0_i32_1 : i32, i32, i32, i32
  }
  func.func @transform_4(%arg0: i32) -> (i32, i32) {
    %c0_i32 = arith.constant 0 : i32
    %c0_i32_0 = arith.constant 0 : i32
    %c0_i32_1 = arith.constant 0 : i32
    return %c0_i32, %c0_i32_0 : i32, i32
  }
  func.func @transform_5(%arg0: i32) -> (i32, i32) {
    %c0_i32 = arith.constant 0 : i32
    %c0_i32_0 = arith.constant 0 : i32
    %c0_i32_1 = arith.constant 0 : i32
    return %c0_i32, %c0_i32_0 : i32, i32
  }
}

</mosaic_0001>

<llo_original>
// kernel: forward.1
$region0: #{forward.1}
  #allocation0 [shape = 'u32[]', space=smem, size = 0x4, offset = 0x4, fixed_abs, tag = 'smem constant byte address 0x4 - core index']
  #allocation1 [shape = 'u32[144,128]{1,0:T(1,128)}', space=vmem, size = 0x12000, scoped, tag = 'internal scratch']
  #allocation2 [shape = 'f32[2,3]{1,0:T(2,128)}', space=vmem, size = 0x400, scoped, tag = 'scratch operand']
  %s0 = inlined_call_operand.vmem [shape: f32[2,1,150,150], index: 0, kind: input, shape index: {}]
  %s1 = inlined_call_operand.vmem [shape: f32[4,9], index: 1, kind: input, shape index: {}]
  %s2 = inlined_call_operand.vmem [shape: f32[4], index: 2, kind: input, shape index: {}]
  %s3 = inlined_call_operand.vmem [shape: f32[4,3,148,148], index: 3, kind: input, shape index: {}]
  %s4 = inlined_call_operand.vmem [shape: f32[1,3], index: 4, kind: input, shape index: {}]
  %s5 = inlined_call_operand.hbm [shape: f32[2,3], index: 5, kind: output, shape index: {}]
  %s6 = sld [smem:[#allocation0]]
  $region69: #{forward.1} parent=0
    _
  %s8 = ssub.s32 1, %s6
  %s9 = scalar_select 0, %s8, %s6
  $region1: #{forward.1} parent=0
    #allocation3 [shape = 'u8[2048]{0}', space=smem, size = 0x800, scoped, tag = 'input window, operand 1, single buffered']
    #allocation4 [shape = 's32[2]{0}', space=sflag, size = 0x8, scoped, tag = 'scoped memory for forward.1']
    #allocation5 [shape = 's32[2]{0}', space=sflag, size = 0x8, scoped, tag = 'scoped memory for forward.1']
    #allocation6 [shape = 'u8[512]{0}', space=smem, size = 0x200, scoped, tag = 'input window, operand 2, single buffered']
    #allocation7 [shape = 's32[1]{0}', space=sflag, size = 0x4, scoped, tag = 'scoped memory for forward.1']
    #allocation8 [shape = 'u8[1024]{0}', space=vmem, size = 0x400, scoped, tag = 'output window, operand 0, single buffered']
    %10 = vsyncpa [#allocation5], 0
    %11 = vsyncpa [#allocation7], 0
    %12 = vsyncpa [#allocation4], 0
    loop: start=0, step=1, limit=6
    $region2: #{forward.1} parent=1 // loop_pre_header
      _
    $region3: #{forward.1} parent=1 // loop_header
      %s14 = sphi 0, %s18
      %p15 = scmp.ge.s32.totalorder %s14, 6
      %s22 = sphi 0, %s22
      %s24 = sphi 0, %s22
      %s25 = sphi 0, %s24
      %s39 = sphi 0, %s25
      %s43 = sphi 0, %s43
      %s45 = sphi 0, %s43
      %s46 = sphi 0, %s45
      %s60 = sphi 0, %s46
      %s64 = sphi 0, %s64
      %s66 = sphi 0, %s64
      %s67 = sphi 0, %s66
      %s81 = sphi 0, %s67
      %s87 = sphi 0, %s89
      %s90 = sphi 0, %s87
      %s91 = sphi 0, %s90
      %s107 = sphi 0, %s91
      %s111 = sphi 0, %s111
      %s113 = sphi 0, %s111
      %s114 = sphi 0, %s113
      %s128 = sphi 0, %s114
      %s132 = sphi 0, %s132
      %s134 = sphi 0, %s132
      %s135 = sphi 0, %s134
      %s149 = sphi 0, %s135
    $region4: #{forward.1} parent=1 // loop_header_branch
      %17 = sbr.rel (%p15) target = $region8
    $region5: #{forward.1} parent=1 // loop_body
      %s19 = ssub.s32 %s14, 1
      %s20 = ssub.s32 %s14, 2
      %s21 = sadd.s32 %s14, 1
      %s23 = sadd.s32 %s22, 1
      %p26 = scmp.eq.s32.totalorder %s14, 3
      %p27 = scmp.ne.s32.totalorder %s22, %s24
      %p28 = scmp.eq.s32.totalorder %s14, 0
      %p29 = por %p27, %p28
      %p30 = scmp.ne.s32.totalorder %s22, %s24
      %p31 = scmp.eq.s32.totalorder %s19, 3
      %p32 = por %p30, %p31
      %p33 = scmp.ne.s32.totalorder %s24, %s25
      %p34 = scmp.eq.s32.totalorder %s19, 0
      %p35 = por %p33, %p34
      %p36 = scmp.ne.s32.totalorder %s24, %s25
      %p37 = scmp.eq.s32.totalorder %s20, 3
      %p38 = por %p36, %p37
      %p40 = scmp.ne.s32.totalorder %s25, %s39
      %p41 = scmp.eq.s32.totalorder %s20, 0
      %p42 = por %p40, %p41
      %s44 = sadd.s32 %s43, 1
      %p47 = scmp.eq.s32.totalorder %s14, 3
      %p48 = scmp.ne.s32.totalorder %s43, %s45
      %p49 = scmp.eq.s32.totalorder %s14, 0
      %p50 = por %p48, %p49
      %p51 = scmp.ne.s32.totalorder %s43, %s45
      %p52 = scmp.eq.s32.totalorder %s19, 3
      %p53 = por %p51, %p52
      %p54 = scmp.ne.s32.totalorder %s45, %s46
      %p55 = scmp.eq.s32.totalorder %s19, 0
      %p56 = por %p54, %p55
      %p57 = scmp.ne.s32.totalorder %s45, %s46
      %p58 = scmp.eq.s32.totalorder %s20, 3
      %p59 = por %p57, %p58
      %p61 = scmp.ne.s32.totalorder %s46, %s60
      %p62 = scmp.eq.s32.totalorder %s20, 0
      %p63 = por %p61, %p62
      %s65 = sadd.s32 %s64, 1
      %p68 = scmp.eq.s32.totalorder %s14, 3
      %p69 = scmp.ne.s32.totalorder %s64, %s66
      %p70 = scmp.eq.s32.totalorder %s14, 0
      %p71 = por %p69, %p70
      %p72 = scmp.ne.s32.totalorder %s64, %s66
      %p73 = scmp.eq.s32.totalorder %s19, 3
      %p74 = por %p72, %p73
      %p75 = scmp.ne.s32.totalorder %s66, %s67
      %p76 = scmp.eq.s32.totalorder %s19, 0
      %p77 = por %p75, %p76
      %p78 = scmp.ne.s32.totalorder %s66, %s67
      %p79 = scmp.eq.s32.totalorder %s20, 3
      %p80 = por %p78, %p79
      %p82 = scmp.ne.s32.totalorder %s67, %s81
      %p83 = scmp.eq.s32.totalorder %s20, 0
      %p84 = por %p82, %p83
      %s85 = ssub.s32 %s14, %s21
      %p86 = scmp.eq.s32.totalorder %s85, 0
      %s88 = sadd.s32 %s87, 1
      %s89 = scalar_select %p86, %s87, %s88
      %p92 = pneg %p86
      %p93 = scmp.eq.s32.totalorder %s14, 3
      %p94 = por %p92, %p93
      %p95 = scmp.ne.s32.totalorder %s87, %s90
      %p96 = scmp.eq.s32.totalorder %s14, 0
      %p97 = por %p95, %p96
      %p98 = scmp.ne.s32.totalorder %s87, %s90
      %p99 = scmp.eq.s32.totalorder %s19, 3
      %p100 = por %p98, %p99
      %p101 = scmp.ne.s32.totalorder %s90, %s91
      %p102 = scmp.eq.s32.totalorder %s19, 0
      %p103 = por %p101, %p102
      %p104 = scmp.ne.s32.totalorder %s90, %s91
      %p105 = scmp.eq.s32.totalorder %s20, 3
      %p106 = por %p104, %p105
      %p108 = scmp.ne.s32.totalorder %s91, %s107
      %p109 = scmp.eq.s32.totalorder %s20, 0
      %p110 = por %p108, %p109
      %s112 = sadd.s32 %s111, 1
      %p115 = scmp.eq.s32.totalorder %s14, 3
      %p116 = scmp.ne.s32.totalorder %s111, %s113
      %p117 = scmp.eq.s32.totalorder %s14, 0
      %p118 = por %p116, %p117
      %p119 = scmp.ne.s32.totalorder %s111, %s113
      %p120 = scmp.eq.s32.totalorder %s19, 3
      %p121 = por %p119, %p120
      %p122 = scmp.ne.s32.totalorder %s113, %s114
      %p123 = scmp.eq.s32.totalorder %s19, 0
      %p124 = por %p122, %p123
      %p125 = scmp.ne.s32.totalorder %s113, %s114
      %p126 = scmp.eq.s32.totalorder %s20, 3
      %p127 = por %p125, %p126
      %p129 = scmp.ne.s32.totalorder %s114, %s128
      %p130 = scmp.eq.s32.totalorder %s20, 0
      %p131 = por %p129, %p130
      %s133 = sadd.s32 %s132, 1
      %p136 = scmp.eq.s32.totalorder %s14, 3
      %p137 = scmp.ne.s32.totalorder %s132, %s134
      %p138 = scmp.eq.s32.totalorder %s14, 0
      %p139 = por %p137, %p138
      %p140 = scmp.ne.s32.totalorder %s132, %s134
      %p141 = scmp.eq.s32.totalorder %s19, 3
      %p142 = por %p140, %p141
      %p143 = scmp.ne.s32.totalorder %s134, %s135
      %p144 = scmp.eq.s32.totalorder %s19, 0
      %p145 = por %p143, %p144
      %p146 = scmp.ne.s32.totalorder %s134, %s135
      %p147 = scmp.eq.s32.totalorder %s20, 3
      %p148 = por %p146, %p147
      %p150 = scmp.ne.s32.totalorder %s135, %s149
      %p151 = scmp.eq.s32.totalorder %s20, 0
      %p152 = por %p150, %p151
      %p153 = scmp.le.s32.totalorder 1, %s14
      %p154 = scmp.lt.s32.totalorder %s14, 5
      %p155 = pnand %p153, %p154
      %p156 = pneg %p155
      // Predicated region
      $region9: #{forward.1} parent=5 // pred_check
        _
      $region10: #{forward.1} parent=5 // pred_check_branch
        %158 = sbr.rel (%p155) target = $region12
      $region11: #{forward.1} parent=5 // pred_region
        %s159 = ssub.s32 %s14, 1
        // Predicated region
        $region13: #{forward.1} parent=11 // pred_check
          %p160 = pneg %p35
        $region14: #{forward.1} parent=11 // pred_check_branch
          %162 = sbr.rel (%p160) target = $region16
        $region15: #{forward.1} parent=11 // pred_region
          _
        $region16: #{forward.1} parent=11 // pred_fallthru
          _
        // Predicated region
        $region17: #{forward.1} parent=11 // pred_check
          %p163 = pneg %p56
        $region18: #{forward.1} parent=11 // pred_check_branch
          %165 = sbr.rel (%p163) target = $region20
        $region19: #{forward.1} parent=11 // pred_region
          %s167 = ssub.s32 64, 64
          %168 = vsyncadd [#allocation5], %s167
          %s170 = sshll.u32 %s1, 4
          %s171 = int_to_ptr.vmem [resolvable:$true] %s170
          %173 = dma.vmem_to_smem %s171, 64, [#allocation3], [#allocation5]
        $region20: #{forward.1} parent=11 // pred_fallthru
          _
        // Predicated region
        $region21: #{forward.1} parent=11 // pred_check
          %p174 = pneg %p77
        $region22: #{forward.1} parent=11 // pred_check_branch
          %176 = sbr.rel (%p174) target = $region24
        $region23: #{forward.1} parent=11 // pred_region
          %s178 = ssub.s32 16, 16
          %179 = vsyncadd [#allocation7], %s178
          %s181 = sshll.u32 %s2, 4
          %s182 = int_to_ptr.vmem [resolvable:$true] %s181
          %184 = dma.vmem_to_smem %s182, 16, [#allocation6], [#allocation7]
        $region24: #{forward.1} parent=11 // pred_fallthru
          _
        // Predicated region
        $region25: #{forward.1} parent=11 // pred_check
          %p185 = pneg %p124
        $region26: #{forward.1} parent=11 // pred_check_branch
          %187 = sbr.rel (%p185) target = $region28
        $region27: #{forward.1} parent=11 // pred_region
          _
        $region28: #{forward.1} parent=11 // pred_fallthru
          _
      $region12: #{forward.1} parent=5 // pred_fallthru
        _
      %p188 = scmp.lt.s32.totalorder %s14, 4
      // Predicated region
      $region29: #{forward.1} parent=5 // pred_check
        %p189 = pneg %p188
      $region30: #{forward.1} parent=5 // pred_check_branch
        %191 = sbr.rel (%p189) target = $region32
      $region31: #{forward.1} parent=5 // pred_region
        // Predicated region
        $region33: #{forward.1} parent=31 // pred_check
          %p192 = pneg %p97
        $region34: #{forward.1} parent=31 // pred_check_branch
          %194 = sbr.rel (%p192) target = $region36
        $region35: #{forward.1} parent=31 // pred_region
          %p195 = scmp.lt.s32.totalorder %s14, 3
          %s196 = scalar_select %p195, %s14, 3
          %s197 = smul.addr %s196, 114
          %s198 = smul.addr %s197, 8
          %s199 = scalar_lea.vmem %s3, %s198
        $region36: #{forward.1} parent=31 // pred_fallthru
          _
      $region32: #{forward.1} parent=5 // pred_fallthru
        _
      %p200 = scmp.le.s32.totalorder 1, %s14
      %p201 = scmp.lt.s32.totalorder %s14, 5
      %p202 = pnand %p200, %p201
      %p203 = pneg %p202
      // Predicated region
      $region37: #{forward.1} parent=5 // pred_check
        _
      $region38: #{forward.1} parent=5 // pred_check_branch
        %205 = sbr.rel (%p202) target = $region40
      $region39: #{forward.1} parent=5 // pred_region
        %s206 = ssub.s32 %s14, 1
        // Predicated region
        $region41: #{forward.1} parent=39 // pred_check
          %p207 = pneg %p56
        $region42: #{forward.1} parent=39 // pred_check_branch
          %209 = sbr.rel (%p207) target = $region44
        $region43: #{forward.1} parent=39 // pred_region
          %210 = dma.done [#allocation5], 64
        $region44: #{forward.1} parent=39 // pred_fallthru
          _
        // Predicated region
        $region45: #{forward.1} parent=39 // pred_check
          %p211 = pneg %p77
        $region46: #{forward.1} parent=39 // pred_check_branch
          %213 = sbr.rel (%p211) target = $region48
        $region47: #{forward.1} parent=39 // pred_region
          %214 = dma.done [#allocation7], 16
        $region48: #{forward.1} parent=39 // pred_fallthru
          _
        %215 = sfence
        %p216 = pneg %p35
        %p217 = pneg %p32
        %p218 = pneg %p56
        %p219 = pneg %p53
        %p220 = pneg %p77
        %p221 = pneg %p74
        %p222 = scmp.lt.s32.totalorder %s19, 3
        %s223 = scalar_select %p222, %s19, 3
        %s224 = smul.addr %s223, 114
        %s225 = smul.addr %s224, 8
        %s226 = scalar_lea.vmem %s3, %s225
        %p227 = pneg %p103
        %p228 = pneg %p100
        %p229 = pneg %p124
        %p230 = pneg %p121
        %p231 = pneg %p145
        %p232 = pneg %p142
        %p233 = scmp.lt.s32.totalorder %s19, 3
        %s234 = scalar_select %p233, %s19, 3
        %s235 = smul.addr %s234, 114
        %s236 = smul.addr %s235, 8
        %s237 = scalar_lea.vmem %s3, %s236
        %p238 = scmp.eq.s32.totalorder %s19, 0
        // Predicated region
        $region49: #{forward.1} parent=39 // pred_check
          %p239 = pneg %p238
        $region50: #{forward.1} parent=39 // pred_check_branch
          %241 = sbr.rel (%p239) target = $region52
        $region51: #{forward.1} parent=39 // pred_region
          %vm242 = vcmask 17408
          %243 = vst.msk [vmem:[#allocation2] sm:$0x3] %vm242, 0.0
        $region52: #{forward.1} parent=39 // pred_fallthru
          _
        %v244 = vld [vmem:[%s0] sm:$0xff]
        %v245 = vld [vmem:[%s0 + $0x8] sm:$0xff]
        %v246 = vld [vmem:[%s0 + $0x10] sm:$0xff]
        %v247 = vld [vmem:[%s0 + $0x18] sm:$0xff]
        %v248 = vld [vmem:[%s0 + $0x20] sm:$0xff]
        %v249 = vld [vmem:[%s0 + $0x28] sm:$0xff]
        %v250 = vld [vmem:[%s0 + $0x30] sm:$0xff]
        %v251 = vld [vmem:[%s0 + $0x38] sm:$0xff]
        %v252 = vld [vmem:[%s0 + $0x40] sm:$0xff]
        %v253 = vld [vmem:[%s0 + $0x48] sm:$0xff]
        %v254 = vld [vmem:[%s0 + $0x50] sm:$0xff]
        %v255 = vld [vmem:[%s0 + $0x58] sm:$0xff]
        %v256 = vld [vmem:[%s0 + $0x60] sm:$0xff]
        %v257 = vld [vmem:[%s0 + $0x68] sm:$0xff]
        %v258 = vld [vmem:[%s0 + $0x70] sm:$0xff]
        %v259 = vld [vmem:[%s0 + $0x78] sm:$0xff]
        %v260 = vld [vmem:[%s0 + $0x80] sm:$0xff]
        %v261 = vld [vmem:[%s0 + $0x88] sm:$0xff]
        %v262 = vld [vmem:[%s0 + $0x90] sm:$0xff]
        %v263 = vld [vmem:[%s0 + $0x98] sm:$0xff]
        %v264 = vld [vmem:[%s0 + $0xa0] sm:$0xff]
        %v265 = vld [vmem:[%s0 + $0xa8] sm:$0xff]
        %v266 = vld [vmem:[%s0 + $0xb0] sm:$0xff]
        %v267 = vld [vmem:[%s0 + $0xb8] sm:$0xff]
        %v268 = vld [vmem:[%s0 + $0xc0] sm:$0xff]
        %v269 = vld [vmem:[%s0 + $0xc8] sm:$0xff]
        %v270 = vld [vmem:[%s0 + $0xd0] sm:$0xff]
        %v271 = vld [vmem:[%s0 + $0xd8] sm:$0xff]
        %v272 = vld [vmem:[%s0 + $0xe0] sm:$0xff]
        %v273 = vld [vmem:[%s0 + $0xe8] sm:$0xff]
        %v274 = vld [vmem:[%s0 + $0xf0] sm:$0xff]
        %v275 = vld [vmem:[%s0 + $0xf8] sm:$0xff]
        %v276 = vld [vmem:[%s0 + $0x100] sm:$0xff]
        %v277 = vld [vmem:[%s0 + $0x108] sm:$0xff]
        %v278 = vld [vmem:[%s0 + $0x110] sm:$0xff]
        %v279 = vld [vmem:[%s0 + $0x118] sm:$0xff]
        %v280 = vld [vmem:[%s0 + $0x120] sm:$0xf]
        %v281 = vld [vmem:[%s0 + $0x128] sm:$0xf]
        %v282 = vld [vmem:[%s0 + $0x130] sm:$0xff]
        %v283 = vld [vmem:[%s0 + $0x138] sm:$0xff]
        %v284 = vld [vmem:[%s0 + $0x140] sm:$0xff]
        %v285 = vld [vmem:[%s0 + $0x148] sm:$0xff]
        %v286 = vld [vmem:[%s0 + $0x150] sm:$0xff]
        %v287 = vld [vmem:[%s0 + $0x158] sm:$0xff]
        %v288 = vld [vmem:[%s0 + $0x160] sm:$0xff]
        %v289 = vld [vmem:[%s0 + $0x168] sm:$0xff]
        %v290 = vld [vmem:[%s0 + $0x170] sm:$0xff]
        %v291 = vld [vmem:[%s0 + $0x178] sm:$0xff]
        %v292 = vld [vmem:[%s0 + $0x180] sm:$0xff]
        %v293 = vld [vmem:[%s0 + $0x188] sm:$0xff]
        %v294 = vld [vmem:[%s0 + $0x190] sm:$0xff]
        %v295 = vld [vmem:[%s0 + $0x198] sm:$0xff]
        %v296 = vld [vmem:[%s0 + $0x1a0] sm:$0xff]
        %v297 = vld [vmem:[%s0 + $0x1a8] sm:$0xff]
        %v298 = vld [vmem:[%s0 + $0x1b0] sm:$0xff]
        %v299 = vld [vmem:[%s0 + $0x1b8] sm:$0xff]
        %v300 = vld [vmem:[%s0 + $0x1c0] sm:$0xff]
        %v301 = vld [vmem:[%s0 + $0x1c8] sm:$0xff]
        %v302 = vld [vmem:[%s0 + $0x1d0] sm:$0xff]
        %v303 = vld [vmem:[%s0 + $0x1d8] sm:$0xff]
        %v304 = vld [vmem:[%s0 + $0x1e0] sm:$0xff]
        %v305 = vld [vmem:[%s0 + $0x1e8] sm:$0xff]
        %v306 = vld [vmem:[%s0 + $0x1f0] sm:$0xff]
        %v307 = vld [vmem:[%s0 + $0x1f8] sm:$0xff]
        %v308 = vld [vmem:[%s0 + $0x200] sm:$0xff]
        %v309 = vld [vmem:[%s0 + $0x208] sm:$0xff]
        %v310 = vld [vmem:[%s0 + $0x210] sm:$0xff]
        %v311 = vld [vmem:[%s0 + $0x218] sm:$0xff]
        %v312 = vld [vmem:[%s0 + $0x220] sm:$0xff]
        %v313 = vld [vmem:[%s0 + $0x228] sm:$0xff]
        %v314 = vld [vmem:[%s0 + $0x230] sm:$0xff]
        %v315 = vld [vmem:[%s0 + $0x238] sm:$0xff]
        %v316 = vld [vmem:[%s0 + $0x240] sm:$0xff]
        %v317 = vld [vmem:[%s0 + $0x248] sm:$0xff]
        %v318 = vld [vmem:[%s0 + $0x250] sm:$0xf]
        %v319 = vld [vmem:[%s0 + $0x258] sm:$0xf]
        %s320 = smul.u32 %s19, 128
        %s321 = sld [smem:[#allocation3 + %s320]]
        %v322 = vstv %s321
        %v323 = vmul.f32 %v322, %v244
        %v324 = vmul.f32 %v322, %v245
        %v325 = vmul.f32 %v322, %v246
        %v326 = vmul.f32 %v322, %v247
        %v327 = vmul.f32 %v322, %v248
        %v328 = vmul.f32 %v322, %v249
        %v329 = vmul.f32 %v322, %v250
        %v330 = vmul.f32 %v322, %v251
        %v331 = vmul.f32 %v322, %v252
        %v332 = vmul.f32 %v322, %v253
        %v333 = vmul.f32 %v322, %v254
        %v334 = vmul.f32 %v322, %v255
        %v335 = vmul.f32 %v322, %v256
        %v336 = vmul.f32 %v322, %v257
        %v337 = vmul.f32 %v322, %v258
        %v338 = vmul.f32 %v322, %v259
        %v339 = vmul.f32 %v322, %v260
        %v340 = vmul.f32 %v322, %v261
        %v341 = vmul.f32 %v322, %v262
        %v342 = vmul.f32 %v322, %v263
        %v343 = vmul.f32 %v322, %v264
        %v344 = vmul.f32 %v322, %v265
        %v345 = vmul.f32 %v322, %v266
        %v346 = vmul.f32 %v322, %v267
        %v347 = vmul.f32 %v322, %v268
        %v348 = vmul.f32 %v322, %v269
        %v349 = vmul.f32 %v322, %v270
        %v350 = vmul.f32 %v322, %v271
        %v351 = vmul.f32 %v322, %v272
        %v352 = vmul.f32 %v322, %v273
        %v353 = vmul.f32 %v322, %v274
        %v354 = vmul.f32 %v322, %v275
        %v355 = vmul.f32 %v322, %v276
        %v356 = vmul.f32 %v322, %v277
        %v357 = vmul.f32 %v322, %v278
        %v358 = vmul.f32 %v322, %v279
        %v359 = vmul.f32 %v322, %v280
        %v360 = vmul.f32 %v322, %v281
        %v361 = vmul.f32 %v322, %v282
        %v362 = vmul.f32 %v322, %v283
        %v363 = vmul.f32 %v322, %v284
        %v364 = vmul.f32 %v322, %v285
        %v365 = vmul.f32 %v322, %v286
        %v366 = vmul.f32 %v322, %v287
        %v367 = vmul.f32 %v322, %v288
        %v368 = vmul.f32 %v322, %v289
        %v369 = vmul.f32 %v322, %v290
        %v370 = vmul.f32 %v322, %v291
        %v371 = vmul.f32 %v322, %v292
        %v372 = vmul.f32 %v322, %v293
        %v373 = vmul.f32 %v322, %v294
        %v374 = vmul.f32 %v322, %v295
        %v375 = vmul.f32 %v322, %v296
        %v376 = vmul.f32 %v322, %v297
        %v377 = vmul.f32 %v322, %v298
        %v378 = vmul.f32 %v322, %v299
        %v379 = vmul.f32 %v322, %v300
        %v380 = vmul.f32 %v322, %v301
        %v381 = vmul.f32 %v322, %v302
        %v382 = vmul.f32 %v322, %v303
        %v383 = vmul.f32 %v322, %v304
        %v384 = vmul.f32 %v322, %v305
        %v385 = vmul.f32 %v322, %v306
        %v386 = vmul.f32 %v322, %v307
        %v387 = vmul.f32 %v322, %v308
        %v388 = vmul.f32 %v322, %v309
        %v389 = vmul.f32 %v322, %v310
        %v390 = vmul.f32 %v322, %v311
        %v391 = vmul.f32 %v322, %v312
        %v392 = vmul.f32 %v322, %v313
        %v393 = vmul.f32 %v322, %v314
        %v394 = vmul.f32 %v322, %v315
        %v395 = vmul.f32 %v322, %v316
        %v396 = vmul.f32 %v322, %v317
        %v397 = vmul.f32 %v322, %v318
        %v398 = vmul.f32 %v322, %v319
        %v399 = vadd.f32 %v323, 0.0
        %v400 = vadd.f32 %v324, 0.0
        %v401 = vadd.f32 %v325, 0.0
        %v402 = vadd.f32 %v326, 0.0
        %v403 = vadd.f32 %v327, 0.0
        %v404 = vadd.f32 %v328, 0.0
        %v405 = vadd.f32 %v329, 0.0
        %v406 = vadd.f32 %v330, 0.0
        %v407 = vadd.f32 %v331, 0.0
        %v408 = vadd.f32 %v332, 0.0
        %v409 = vadd.f32 %v333, 0.0
        %v410 = vadd.f32 %v334, 0.0
        %v411 = vadd.f32 %v335, 0.0
        %v412 = vadd.f32 %v336, 0.0
        %v413 = vadd.f32 %v337, 0.0
        %v414 = vadd.f32 %v338, 0.0
        %v415 = vadd.f32 %v339, 0.0
        %v416 = vadd.f32 %v340, 0.0
        %v417 = vadd.f32 %v341, 0.0
        %v418 = vadd.f32 %v342, 0.0
        %v419 = vadd.f32 %v343, 0.0
        %v420 = vadd.f32 %v344, 0.0
        %v421 = vadd.f32 %v345, 0.0
        %v422 = vadd.f32 %v346, 0.0
        %v423 = vadd.f32 %v347, 0.0
        %v424 = vadd.f32 %v348, 0.0
        %v425 = vadd.f32 %v349, 0.0
        %v426 = vadd.f32 %v350, 0.0
        %v427 = vadd.f32 %v351, 0.0
        %v428 = vadd.f32 %v352, 0.0
        %v429 = vadd.f32 %v353, 0.0
        %v430 = vadd.f32 %v354, 0.0
        %v431 = vadd.f32 %v355, 0.0
        %v432 = vadd.f32 %v356, 0.0
        %v433 = vadd.f32 %v357, 0.0
        %v434 = vadd.f32 %v358, 0.0
        %v435 = vadd.f32 %v359, 0.0
        %v436 = vadd.f32 %v360, 0.0
        %v437 = vadd.f32 %v361, 0.0
        %v438 = vadd.f32 %v362, 0.0
        %v439 = vadd.f32 %v363, 0.0
        %v440 = vadd.f32 %v364, 0.0
        %v441 = vadd.f32 %v365, 0.0
        %v442 = vadd.f32 %v366, 0.0
        %v443 = vadd.f32 %v367, 0.0
        %v444 = vadd.f32 %v368, 0.0
        %v445 = vadd.f32 %v369, 0.0
        %v446 = vadd.f32 %v370, 0.0
        %v447 = vadd.f32 %v371, 0.0
        %v448 = vadd.f32 %v372, 0.0
        %v449 = vadd.f32 %v373, 0.0
        %v450 = vadd.f32 %v374, 0.0
        %v451 = vadd.f32 %v375, 0.0
        %v452 = vadd.f32 %v376, 0.0
        %v453 = vadd.f32 %v377, 0.0
        %v454 = vadd.f32 %v378, 0.0
        %v455 = vadd.f32 %v379, 0.0
        %v456 = vadd.f32 %v380, 0.0
        %v457 = vadd.f32 %v381, 0.0
        %v458 = vadd.f32 %v382, 0.0
        %v459 = vadd.f32 %v383, 0.0
        %v460 = vadd.f32 %v384, 0.0
        %v461 = vadd.f32 %v385, 0.0
        %v462 = vadd.f32 %v386, 0.0
        %v463 = vadd.f32 %v387, 0.0
        %v464 = vadd.f32 %v388, 0.0
        %v465 = vadd.f32 %v389, 0.0
        %v466 = vadd.f32 %v390, 0.0
        %v467 = vadd.f32 %v391, 0.0
        %v468 = vadd.f32 %v392, 0.0
        %v469 = vadd.f32 %v393, 0.0
        %v470 = vadd.f32 %v394, 0.0
        %v471 = vadd.f32 %v395, 0.0
        %v472 = vadd.f32 %v396, 0.0
        %v473 = vadd.f32 %v397, 0.0
        %v474 = vadd.f32 %v398, 0.0
        %s475 = sadd.s32 %s320, 1
        %s476 = sld [smem:[#allocation3 + %s475]]
        %v477 = vstv %s476
        %v478 = vmul.f32 %v477, %v244
        %v479 = vmul.f32 %v477, %v245
        %v480 = vmul.f32 %v477, %v246
        %v481 = vmul.f32 %v477, %v247
        %v482 = vmul.f32 %v477, %v248
        %v483 = vmul.f32 %v477, %v249
        %v484 = vmul.f32 %v477, %v250
        %v485 = vmul.f32 %v477, %v251
        %v486 = vmul.f32 %v477, %v252
        %v487 = vmul.f32 %v477, %v253
        %v488 = vmul.f32 %v477, %v254
        %v489 = vmul.f32 %v477, %v255
        %v490 = vmul.f32 %v477, %v256
        %v491 = vmul.f32 %v477, %v257
        %v492 = vmul.f32 %v477, %v258
        %v493 = vmul.f32 %v477, %v259
        %v494 = vmul.f32 %v477, %v260
        %v495 = vmul.f32 %v477, %v261
        %v496 = vmul.f32 %v477, %v262
        %v497 = vmul.f32 %v477, %v263
        %v498 = vmul.f32 %v477, %v264
        %v499 = vmul.f32 %v477, %v265
        %v500 = vmul.f32 %v477, %v266
        %v501 = vmul.f32 %v477, %v267
        %v502 = vmul.f32 %v477, %v268
        %v503 = vmul.f32 %v477, %v269
        %v504 = vmul.f32 %v477, %v270
        %v505 = vmul.f32 %v477, %v271
        %v506 = vmul.f32 %v477, %v272
        %v507 = vmul.f32 %v477, %v273
        %v508 = vmul.f32 %v477, %v274
        %v509 = vmul.f32 %v477, %v275
        %v510 = vmul.f32 %v477, %v276
        %v511 = vmul.f32 %v477, %v277
        %v512 = vmul.f32 %v477, %v278
        %v513 = vmul.f32 %v477, %v279
        %v514 = vmul.f32 %v477, %v280
        %v515 = vmul.f32 %v477, %v281
        %v516 = vmul.f32 %v477, %v282
        %v517 = vmul.f32 %v477, %v283
        %v518 = vmul.f32 %v477, %v284
        %v519 = vmul.f32 %v477, %v285
        %v520 = vmul.f32 %v477, %v286
        %v521 = vmul.f32 %v477, %v287
        %v522 = vmul.f32 %v477, %v288
        %v523 = vmul.f32 %v477, %v289
        %v524 = vmul.f32 %v477, %v290
        %v525 = vmul.f32 %v477, %v291
        %v526 = vmul.f32 %v477, %v292
        %v527 = vmul.f32 %v477, %v293
        %v528 = vmul.f32 %v477, %v294
        %v529 = vmul.f32 %v477, %v295
        %v530 = vmul.f32 %v477, %v296
        %v531 = vmul.f32 %v477, %v297
        %v532 = vmul.f32 %v477, %v298
        %v533 = vmul.f32 %v477, %v299
        %v534 = vmul.f32 %v477, %v300
        %v535 = vmul.f32 %v477, %v301
        %v536 = vmul.f32 %v477, %v302
        %v537 = vmul.f32 %v477, %v303
        %v538 = vmul.f32 %v477, %v304
        %v539 = vmul.f32 %v477, %v305
        %v540 = vmul.f32 %v477, %v306
        %v541 = vmul.f32 %v477, %v307
        %v542 = vmul.f32 %v477, %v308
        %v543 = vmul.f32 %v477, %v309
        %v544 = vmul.f32 %v477, %v310
        %v545 = vmul.f32 %v477, %v311
        %v546 = vmul.f32 %v477, %v312
        %v547 = vmul.f32 %v477, %v313
        %v548 = vmul.f32 %v477, %v314
        %v549 = vmul.f32 %v477, %v315
        %v550 = vmul.f32 %v477, %v316
        %v551 = vmul.f32 %v477, %v317
        %v552 = vmul.f32 %v477, %v318
        %v553 = vmul.f32 %v477, %v319
        %630 = vrot.lane.b32.xlu0 %v478, 127
        %v631 = vpop.permute.xlu0 %630
        %632 = vrot.lane.b32.xlu0 %v479, 127
        %v633 = vpop.permute.xlu0 %632
        %634 = vrot.lane.b32.xlu0 %v480, 127
        %v635 = vpop.permute.xlu0 %634
        %636 = vrot.lane.b32.xlu0 %v481, 127
        %v637 = vpop.permute.xlu0 %636
        %638 = vrot.lane.b32.xlu0 %v482, 127
        %v639 = vpop.permute.xlu0 %638
        %640 = vrot.lane.b32.xlu0 %v483, 127
        %v641 = vpop.permute.xlu0 %640
        %642 = vrot.lane.b32.xlu0 %v484, 127
        %v643 = vpop.permute.xlu0 %642
        %644 = vrot.lane.b32.xlu0 %v485, 127
        %v645 = vpop.permute.xlu0 %644
        %646 = vrot.lane.b32.xlu0 %v486, 127
        %v647 = vpop.permute.xlu0 %646
        %648 = vrot.lane.b32.xlu0 %v487, 127
        %v649 = vpop.permute.xlu0 %648
        %650 = vrot.lane.b32.xlu0 %v488, 127
        %v651 = vpop.permute.xlu0 %650
        %652 = vrot.lane.b32.xlu0 %v489, 127
        %v653 = vpop.permute.xlu0 %652
        %654 = vrot.lane.b32.xlu0 %v490, 127
        %v655 = vpop.permute.xlu0 %654
        %656 = vrot.lane.b32.xlu0 %v491, 127
        %v657 = vpop.permute.xlu0 %656
        %658 = vrot.lane.b32.xlu0 %v492, 127
        %v659 = vpop.permute.xlu0 %658
        %660 = vrot.lane.b32.xlu0 %v493, 127
        %v661 = vpop.permute.xlu0 %660
        %662 = vrot.lane.b32.xlu0 %v494, 127
        %v663 = vpop.permute.xlu0 %662
        %664 = vrot.lane.b32.xlu0 %v495, 127
        %v665 = vpop.permute.xlu0 %664
        %666 = vrot.lane.b32.xlu0 %v496, 127
        %v667 = vpop.permute.xlu0 %666
        %668 = vrot.lane.b32.xlu0 %v497, 127
        %v669 = vpop.permute.xlu0 %668
        %670 = vrot.lane.b32.xlu0 %v498, 127
        %v671 = vpop.permute.xlu0 %670
        %672 = vrot.lane.b32.xlu0 %v499, 127
        %v673 = vpop.permute.xlu0 %672
        %674 = vrot.lane.b32.xlu0 %v500, 127
        %v675 = vpop.permute.xlu0 %674
        %676 = vrot.lane.b32.xlu0 %v501, 127
        %v677 = vpop.permute.xlu0 %676
        %678 = vrot.lane.b32.xlu0 %v502, 127
        %v679 = vpop.permute.xlu0 %678
        %680 = vrot.lane.b32.xlu0 %v503, 127
        %v681 = vpop.permute.xlu0 %680
        %682 = vrot.lane.b32.xlu0 %v504, 127
        %v683 = vpop.permute.xlu0 %682
        %684 = vrot.lane.b32.xlu0 %v505, 127
        %v685 = vpop.permute.xlu0 %684
        %686 = vrot.lane.b32.xlu0 %v506, 127
        %v687 = vpop.permute.xlu0 %686
        %688 = vrot.lane.b32.xlu0 %v507, 127
        %v689 = vpop.permute.xlu0 %688
        %690 = vrot.lane.b32.xlu0 %v508, 127
        %v691 = vpop.permute.xlu0 %690
        %692 = vrot.lane.b32.xlu0 %v509, 127
        %v693 = vpop.permute.xlu0 %692
        %694 = vrot.lane.b32.xlu0 %v510, 127
        %v695 = vpop.permute.xlu0 %694
        %696 = vrot.lane.b32.xlu0 %v511, 127
        %v697 = vpop.permute.xlu0 %696
        %698 = vrot.lane.b32.xlu0 %v512, 127
        %v699 = vpop.permute.xlu0 %698
        %700 = vrot.lane.b32.xlu0 %v513, 127
        %v701 = vpop.permute.xlu0 %700
        %702 = vrot.lane.b32.xlu0 %v514, 127
        %v703 = vpop.permute.xlu0 %702
        %704 = vrot.lane.b32.xlu0 %v515, 127
        %v705 = vpop.permute.xlu0 %704
        %706 = vrot.lane.b32.xlu0 %v516, 127
        %v707 = vpop.permute.xlu0 %706
        %708 = vrot.lane.b32.xlu0 %v517, 127
        %v709 = vpop.permute.xlu0 %708
        %710 = vrot.lane.b32.xlu0 %v518, 127
        %v711 = vpop.permute.xlu0 %710
        %712 = vrot.lane.b32.xlu0 %v519, 127
        %v713 = vpop.permute.xlu0 %712
        %714 = vrot.lane.b32.xlu0 %v520, 127
        %v715 = vpop.permute.xlu0 %714
        %716 = vrot.lane.b32.xlu0 %v521, 127
        %v717 = vpop.permute.xlu0 %716
        %718 = vrot.lane.b32.xlu0 %v522, 127
        %v719 = vpop.permute.xlu0 %718
        %720 = vrot.lane.b32.xlu0 %v523, 127
        %v721 = vpop.permute.xlu0 %720
        %722 = vrot.lane.b32.xlu0 %v524, 127
        %v723 = vpop.permute.xlu0 %722
        %724 = vrot.lane.b32.xlu0 %v525, 127
        %v725 = vpop.permute.xlu0 %724
        %726 = vrot.lane.b32.xlu0 %v526, 127
        %v727 = vpop.permute.xlu0 %726
        %728 = vrot.lane.b32.xlu0 %v527, 127
        %v729 = vpop.permute.xlu0 %728
        %730 = vrot.lane.b32.xlu0 %v528, 127
        %v731 = vpop.permute.xlu0 %730
        %732 = vrot.lane.b32.xlu0 %v529, 127
        %v733 = vpop.permute.xlu0 %732
        %734 = vrot.lane.b32.xlu0 %v530, 127
        %v735 = vpop.permute.xlu0 %734
        %736 = vrot.lane.b32.xlu0 %v531, 127
        %v737 = vpop.permute.xlu0 %736
        %738 = vrot.lane.b32.xlu0 %v532, 127
        %v739 = vpop.permute.xlu0 %738
        %740 = vrot.lane.b32.xlu0 %v533, 127
        %v741 = vpop.permute.xlu0 %740
        %742 = vrot.lane.b32.xlu0 %v534, 127
        %v743 = vpop.permute.xlu0 %742
        %744 = vrot.lane.b32.xlu0 %v535, 127
        %v745 = vpop.permute.xlu0 %744
        %746 = vrot.lane.b32.xlu0 %v536, 127
        %v747 = vpop.permute.xlu0 %746
        %748 = vrot.lane.b32.xlu0 %v537, 127
        %v749 = vpop.permute.xlu0 %748
        %750 = vrot.lane.b32.xlu0 %v538, 127
        %v751 = vpop.permute.xlu0 %750
        %752 = vrot.lane.b32.xlu0 %v539, 127
        %v753 = vpop.permute.xlu0 %752
        %754 = vrot.lane.b32.xlu0 %v540, 127
        %v755 = vpop.permute.xlu0 %754
        %756 = vrot.lane.b32.xlu0 %v541, 127
        %v757 = vpop.permute.xlu0 %756
        %758 = vrot.lane.b32.xlu0 %v542, 127
        %v759 = vpop.permute.xlu0 %758
        %760 = vrot.lane.b32.xlu0 %v543, 127
        %v761 = vpop.permute.xlu0 %760
        %762 = vrot.lane.b32.xlu0 %v544, 127
        %v763 = vpop.permute.xlu0 %762
        %764 = vrot.lane.b32.xlu0 %v545, 127
        %v765 = vpop.permute.xlu0 %764
        %766 = vrot.lane.b32.xlu0 %v546, 127
        %v767 = vpop.permute.xlu0 %766
        %768 = vrot.lane.b32.xlu0 %v547, 127
        %v769 = vpop.permute.xlu0 %768
        %770 = vrot.lane.b32.xlu0 %v548, 127
        %v771 = vpop.permute.xlu0 %770
        %772 = vrot.lane.b32.xlu0 %v549, 127
        %v773 = vpop.permute.xlu0 %772
        %774 = vrot.lane.b32.xlu0 %v550, 127
        %v775 = vpop.permute.xlu0 %774
        %776 = vrot.lane.b32.xlu0 %v551, 127
        %v777 = vpop.permute.xlu0 %776
        %778 = vrot.lane.b32.xlu0 %v552, 127
        %v779 = vpop.permute.xlu0 %778
        %780 = vrot.lane.b32.xlu0 %v553, 127
        %v781 = vpop.permute.xlu0 %780
        %vm782 = vcmask 1039360
        %v783 = vsel %vm782, %v631, %v633
        %v784 = vsel %vm782, %v635, %v637
        %v785 = vsel %vm782, %v639, %v641
        %v786 = vsel %vm782, %v643, %v645
        %v787 = vsel %vm782, %v647, %v649
        %v788 = vsel %vm782, %v651, %v653
        %v789 = vsel %vm782, %v655, %v657
        %v790 = vsel %vm782, %v659, %v661
        %v791 = vsel %vm782, %v663, %v665
        %v792 = vsel %vm782, %v667, %v669
        %v793 = vsel %vm782, %v671, %v673
        %v794 = vsel %vm782, %v675, %v677
        %v795 = vsel %vm782, %v679, %v681
        %v796 = vsel %vm782, %v683, %v685
        %v797 = vsel %vm782, %v687, %v689
        %v798 = vsel %vm782, %v691, %v693
        %v799 = vsel %vm782, %v695, %v697
        %v800 = vsel %vm782, %v699, %v701
        %v801 = vsel %vm782, %v703, %v705
        %v802 = vsel %vm782, %v707, %v709
        %v803 = vsel %vm782, %v711, %v713
        %v804 = vsel %vm782, %v715, %v717
        %v805 = vsel %vm782, %v719, %v721
        %v806 = vsel %vm782, %v723, %v725
        %v807 = vsel %vm782, %v727, %v729
        %v808 = vsel %vm782, %v731, %v733
        %v809 = vsel %vm782, %v735, %v737
        %v810 = vsel %vm782, %v739, %v741
        %v811 = vsel %vm782, %v743, %v745
        %v812 = vsel %vm782, %v747, %v749
        %v813 = vsel %vm782, %v751, %v753
        %v814 = vsel %vm782, %v755, %v757
        %v815 = vsel %vm782, %v759, %v761
        %v816 = vsel %vm782, %v763, %v765
        %v817 = vsel %vm782, %v767, %v769
        %v818 = vsel %vm782, %v771, %v773
        %v819 = vsel %vm782, %v775, %v777
        %v820 = vsel %vm782, %v779, %v781
        %v897 = vadd.f32 %v399, %v783
        %v898 = vadd.f32 %v400, %v633
        %v899 = vadd.f32 %v401, %v784
        %v900 = vadd.f32 %v402, %v637
        %v901 = vadd.f32 %v403, %v785
        %v902 = vadd.f32 %v404, %v641
        %v903 = vadd.f32 %v405, %v786
        %v904 = vadd.f32 %v406, %v645
        %v905 = vadd.f32 %v407, %v787
        %v906 = vadd.f32 %v408, %v649
        %v907 = vadd.f32 %v409, %v788
        %v908 = vadd.f32 %v410, %v653
        %v909 = vadd.f32 %v411, %v789
        %v910 = vadd.f32 %v412, %v657
        %v911 = vadd.f32 %v413, %v790
        %v912 = vadd.f32 %v414, %v661
        %v913 = vadd.f32 %v415, %v791
        %v914 = vadd.f32 %v416, %v665
        %v915 = vadd.f32 %v417, %v792
        %v916 = vadd.f32 %v418, %v669
        %v917 = vadd.f32 %v419, %v793
        %v918 = vadd.f32 %v420, %v673
        %v919 = vadd.f32 %v421, %v794
        %v920 = vadd.f32 %v422, %v677
        %v921 = vadd.f32 %v423, %v795
        %v922 = vadd.f32 %v424, %v681
        %v923 = vadd.f32 %v425, %v796
        %v924 = vadd.f32 %v426, %v685
        %v925 = vadd.f32 %v427, %v797
        %v926 = vadd.f32 %v428, %v689
        %v927 = vadd.f32 %v429, %v798
        %v928 = vadd.f32 %v430, %v693
        %v929 = vadd.f32 %v431, %v799
        %v930 = vadd.f32 %v432, %v697
        %v931 = vadd.f32 %v433, %v800
        %v932 = vadd.f32 %v434, %v701
        %v933 = vadd.f32 %v435, %v801
        %v934 = vadd.f32 %v436, %v705
        %v935 = vadd.f32 %v437, %v802
        %v936 = vadd.f32 %v438, %v709
        %v937 = vadd.f32 %v439, %v803
        %v938 = vadd.f32 %v440, %v713
        %v939 = vadd.f32 %v441, %v804
        %v940 = vadd.f32 %v442, %v717
        %v941 = vadd.f32 %v443, %v805
        %v942 = vadd.f32 %v444, %v721
        %v943 = vadd.f32 %v445, %v806
        %v944 = vadd.f32 %v446, %v725
        %v945 = vadd.f32 %v447, %v807
        %v946 = vadd.f32 %v448, %v729
        %v947 = vadd.f32 %v449, %v808
        %v948 = vadd.f32 %v450, %v733
        %v949 = vadd.f32 %v451, %v809
        %v950 = vadd.f32 %v452, %v737
        %v951 = vadd.f32 %v453, %v810
        %v952 = vadd.f32 %v454, %v741
        %v953 = vadd.f32 %v455, %v811
        %v954 = vadd.f32 %v456, %v745
        %v955 = vadd.f32 %v457, %v812
        %v956 = vadd.f32 %v458, %v749
        %v957 = vadd.f32 %v459, %v813
        %v958 = vadd.f32 %v460, %v753
        %v959 = vadd.f32 %v461, %v814
        %v960 = vadd.f32 %v462, %v757
        %v961 = vadd.f32 %v463, %v815
        %v962 = vadd.f32 %v464, %v761
        %v963 = vadd.f32 %v465, %v816
        %v964 = vadd.f32 %v466, %v765
        %v965 = vadd.f32 %v467, %v817
        %v966 = vadd.f32 %v468, %v769
        %v967 = vadd.f32 %v469, %v818
        %v968 = vadd.f32 %v470, %v773
        %v969 = vadd.f32 %v471, %v819
        %v970 = vadd.f32 %v472, %v777
        %v971 = vadd.f32 %v473, %v820
        %v972 = vadd.f32 %v474, %v781
        %s973 = sadd.s32 %s320, 2
        %s974 = sld [smem:[#allocation3 + %s973]]
        %v975 = vstv %s974
        %v976 = vmul.f32 %v975, %v244
        %v977 = vmul.f32 %v975, %v245
        %v978 = vmul.f32 %v975, %v246
        %v979 = vmul.f32 %v975, %v247
        %v980 = vmul.f32 %v975, %v248
        %v981 = vmul.f32 %v975, %v249
        %v982 = vmul.f32 %v975, %v250
        %v983 = vmul.f32 %v975, %v251
        %v984 = vmul.f32 %v975, %v252
        %v985 = vmul.f32 %v975, %v253
        %v986 = vmul.f32 %v975, %v254
        %v987 = vmul.f32 %v975, %v255
        %v988 = vmul.f32 %v975, %v256
        %v989 = vmul.f32 %v975, %v257
        %v990 = vmul.f32 %v975, %v258
        %v991 = vmul.f32 %v975, %v259
        %v992 = vmul.f32 %v975, %v260
        %v993 = vmul.f32 %v975, %v261
        %v994 = vmul.f32 %v975, %v262
        %v995 = vmul.f32 %v975, %v263
        %v996 = vmul.f32 %v975, %v264
        %v997 = vmul.f32 %v975, %v265
        %v998 = vmul.f32 %v975, %v266
        %v999 = vmul.f32 %v975, %v267
        %v1000 = vmul.f32 %v975, %v268
        %v1001 = vmul.f32 %v975, %v269
        %v1002 = vmul.f32 %v975, %v270
        %v1003 = vmul.f32 %v975, %v271
        %v1004 = vmul.f32 %v975, %v272
        %v1005 = vmul.f32 %v975, %v273
        %v1006 = vmul.f32 %v975, %v274
        %v1007 = vmul.f32 %v975, %v275
        %v1008 = vmul.f32 %v975, %v276
        %v1009 = vmul.f32 %v975, %v277
        %v1010 = vmul.f32 %v975, %v278
        %v1011 = vmul.f32 %v975, %v279
        %v1012 = vmul.f32 %v975, %v280
        %v1013 = vmul.f32 %v975, %v281
        %v1014 = vmul.f32 %v975, %v282
        %v1015 = vmul.f32 %v975, %v283
        %v1016 = vmul.f32 %v975, %v284
        %v1017 = vmul.f32 %v975, %v285
        %v1018 = vmul.f32 %v975, %v286
        %v1019 = vmul.f32 %v975, %v287
        %v1020 = vmul.f32 %v975, %v288
        %v1021 = vmul.f32 %v975, %v289
        %v1022 = vmul.f32 %v975, %v290
        %v1023 = vmul.f32 %v975, %v291
        %v1024 = vmul.f32 %v975, %v292
        %v1025 = vmul.f32 %v975, %v293
        %v1026 = vmul.f32 %v975, %v294
        %v1027 = vmul.f32 %v975, %v295
        %v1028 = vmul.f32 %v975, %v296
        %v1029 = vmul.f32 %v975, %v297
        %v1030 = vmul.f32 %v975, %v298
        %v1031 = vmul.f32 %v975, %v299
        %v1032 = vmul.f32 %v975, %v300
        %v1033 = vmul.f32 %v975, %v301
        %v1034 = vmul.f32 %v975, %v302
        %v1035 = vmul.f32 %v975, %v303
        %v1036 = vmul.f32 %v975, %v304
        %v1037 = vmul.f32 %v975, %v305
        %v1038 = vmul.f32 %v975, %v306
        %v1039 = vmul.f32 %v975, %v307
        %v1040 = vmul.f32 %v975, %v308
        %v1041 = vmul.f32 %v975, %v309
        %v1042 = vmul.f32 %v975, %v310
        %v1043 = vmul.f32 %v975, %v311
        %v1044 = vmul.f32 %v975, %v312
        %v1045 = vmul.f32 %v975, %v313
        %v1046 = vmul.f32 %v975, %v314
        %v1047 = vmul.f32 %v975, %v315
        %v1048 = vmul.f32 %v975, %v316
        %v1049 = vmul.f32 %v975, %v317
        %v1050 = vmul.f32 %v975, %v318
        %v1051 = vmul.f32 %v975, %v319
        %1128 = vrot.lane.b32.xlu0 %v976, 126
        %v1129 = vpop.permute.xlu0 %1128
        %1130 = vrot.lane.b32.xlu0 %v977, 126
        %v1131 = vpop.permute.xlu0 %1130
        %1132 = vrot.lane.b32.xlu0 %v978, 126
        %v1133 = vpop.permute.xlu0 %1132
        %1134 = vrot.lane.b32.xlu0 %v979, 126
        %v1135 = vpop.permute.xlu0 %1134
        %1136 = vrot.lane.b32.xlu0 %v980, 126
        %v1137 = vpop.permute.xlu0 %1136
        %1138 = vrot.lane.b32.xlu0 %v981, 126
        %v1139 = vpop.permute.xlu0 %1138
        %1140 = vrot.lane.b32.xlu0 %v982, 126
        %v1141 = vpop.permute.xlu0 %1140
        %1142 = vrot.lane.b32.xlu0 %v983, 126
        %v1143 = vpop.permute.xlu0 %1142
        %1144 = vrot.lane.b32.xlu0 %v984, 126
        %v1145 = vpop.permute.xlu0 %1144
        %1146 = vrot.lane.b32.xlu0 %v985, 126
        %v1147 = vpop.permute.xlu0 %1146
        %1148 = vrot.lane.b32.xlu0 %v986, 126
        %v1149 = vpop.permute.xlu0 %1148
        %1150 = vrot.lane.b32.xlu0 %v987, 126
        %v1151 = vpop.permute.xlu0 %1150
        %1152 = vrot.lane.b32.xlu0 %v988, 126
        %v1153 = vpop.permute.xlu0 %1152
        %1154 = vrot.lane.b32.xlu0 %v989, 126
        %v1155 = vpop.permute.xlu0 %1154
        %1156 = vrot.lane.b32.xlu0 %v990, 126
        %v1157 = vpop.permute.xlu0 %1156
        %1158 = vrot.lane.b32.xlu0 %v991, 126
        %v1159 = vpop.permute.xlu0 %1158
        %1160 = vrot.lane.b32.xlu0 %v992, 126
        %v1161 = vpop.permute.xlu0 %1160
        %1162 = vrot.lane.b32.xlu0 %v993, 126
        %v1163 = vpop.permute.xlu0 %1162
        %1164 = vrot.lane.b32.xlu0 %v994, 126
        %v1165 = vpop.permute.xlu0 %1164
        %1166 = vrot.lane.b32.xlu0 %v995, 126
        %v1167 = vpop.permute.xlu0 %1166
        %1168 = vrot.lane.b32.xlu0 %v996, 126
        %v1169 = vpop.permute.xlu0 %1168
        %1170 = vrot.lane.b32.xlu0 %v997, 126
        %v1171 = vpop.permute.xlu0 %1170
        %1172 = vrot.lane.b32.xlu0 %v998, 126
        %v1173 = vpop.permute.xlu0 %1172
        %1174 = vrot.lane.b32.xlu0 %v999, 126
        %v1175 = vpop.permute.xlu0 %1174
        %1176 = vrot.lane.b32.xlu0 %v1000, 126
        %v1177 = vpop.permute.xlu0 %1176
        %1178 = vrot.lane.b32.xlu0 %v1001, 126
        %v1179 = vpop.permute.xlu0 %1178
        %1180 = vrot.lane.b32.xlu0 %v1002, 126
        %v1181 = vpop.permute.xlu0 %1180
        %1182 = vrot.lane.b32.xlu0 %v1003, 126
        %v1183 = vpop.permute.xlu0 %1182
        %1184 = vrot.lane.b32.xlu0 %v1004, 126
        %v1185 = vpop.permute.xlu0 %1184
        %1186 = vrot.lane.b32.xlu0 %v1005, 126
        %v1187 = vpop.permute.xlu0 %1186
        %1188 = vrot.lane.b32.xlu0 %v1006, 126
        %v1189 = vpop.permute.xlu0 %1188
        %1190 = vrot.lane.b32.xlu0 %v1007, 126
        %v1191 = vpop.permute.xlu0 %1190
        %1192 = vrot.lane.b32.xlu0 %v1008, 126
        %v1193 = vpop.permute.xlu0 %1192
        %1194 = vrot.lane.b32.xlu0 %v1009, 126
        %v1195 = vpop.permute.xlu0 %1194
        %1196 = vrot.lane.b32.xlu0 %v1010, 126
        %v1197 = vpop.permute.xlu0 %1196
        %1198 = vrot.lane.b32.xlu0 %v1011, 126
        %v1199 = vpop.permute.xlu0 %1198
        %1200 = vrot.lane.b32.xlu0 %v1012, 126
        %v1201 = vpop.permute.xlu0 %1200
        %1202 = vrot.lane.b32.xlu0 %v1013, 126
        %v1203 = vpop.permute.xlu0 %1202
        %1204 = vrot.lane.b32.xlu0 %v1014, 126
        %v1205 = vpop.permute.xlu0 %1204
        %1206 = vrot.lane.b32.xlu0 %v1015, 126
        %v1207 = vpop.permute.xlu0 %1206
        %1208 = vrot.lane.b32.xlu0 %v1016, 126
        %v1209 = vpop.permute.xlu0 %1208
        %1210 = vrot.lane.b32.xlu0 %v1017, 126
        %v1211 = vpop.permute.xlu0 %1210
        %1212 = vrot.lane.b32.xlu0 %v1018, 126
        %v1213 = vpop.permute.xlu0 %1212
        %1214 = vrot.lane.b32.xlu0 %v1019, 126
        %v1215 = vpop.permute.xlu0 %1214
        %1216 = vrot.lane.b32.xlu0 %v1020, 126
        %v1217 = vpop.permute.xlu0 %1216
        %1218 = vrot.lane.b32.xlu0 %v1021, 126
        %v1219 = vpop.permute.xlu0 %1218
        %1220 = vrot.lane.b32.xlu0 %v1022, 126
        %v1221 = vpop.permute.xlu0 %1220
        %1222 = vrot.lane.b32.xlu0 %v1023, 126
        %v1223 = vpop.permute.xlu0 %1222
        %1224 = vrot.lane.b32.xlu0 %v1024, 126
        %v1225 = vpop.permute.xlu0 %1224
        %1226 = vrot.lane.b32.xlu0 %v1025, 126
        %v1227 = vpop.permute.xlu0 %1226
        %1228 = vrot.lane.b32.xlu0 %v1026, 126
        %v1229 = vpop.permute.xlu0 %1228
        %1230 = vrot.lane.b32.xlu0 %v1027, 126
        %v1231 = vpop.permute.xlu0 %1230
        %1232 = vrot.lane.b32.xlu0 %v1028, 126
        %v1233 = vpop.permute.xlu0 %1232
        %1234 = vrot.lane.b32.xlu0 %v1029, 126
        %v1235 = vpop.permute.xlu0 %1234
        %1236 = vrot.lane.b32.xlu0 %v1030, 126
        %v1237 = vpop.permute.xlu0 %1236
        %1238 = vrot.lane.b32.xlu0 %v1031, 126
        %v1239 = vpop.permute.xlu0 %1238
        %1240 = vrot.lane.b32.xlu0 %v1032, 126
        %v1241 = vpop.permute.xlu0 %1240
        %1242 = vrot.lane.b32.xlu0 %v1033, 126
        %v1243 = vpop.permute.xlu0 %1242
        %1244 = vrot.lane.b32.xlu0 %v1034, 126
        %v1245 = vpop.permute.xlu0 %1244
        %1246 = vrot.lane.b32.xlu0 %v1035, 126
        %v1247 = vpop.permute.xlu0 %1246
        %1248 = vrot.lane.b32.xlu0 %v1036, 126
        %v1249 = vpop.permute.xlu0 %1248
        %1250 = vrot.lane.b32.xlu0 %v1037, 126
        %v1251 = vpop.permute.xlu0 %1250
        %1252 = vrot.lane.b32.xlu0 %v1038, 126
        %v1253 = vpop.permute.xlu0 %1252
        %1254 = vrot.lane.b32.xlu0 %v1039, 126
        %v1255 = vpop.permute.xlu0 %1254
        %1256 = vrot.lane.b32.xlu0 %v1040, 126
        %v1257 = vpop.permute.xlu0 %1256
        %1258 = vrot.lane.b32.xlu0 %v1041, 126
        %v1259 = vpop.permute.xlu0 %1258
        %1260 = vrot.lane.b32.xlu0 %v1042, 126
        %v1261 = vpop.permute.xlu0 %1260
        %1262 = vrot.lane.b32.xlu0 %v1043, 126
        %v1263 = vpop.permute.xlu0 %1262
        %1264 = vrot.lane.b32.xlu0 %v1044, 126
        %v1265 = vpop.permute.xlu0 %1264
        %1266 = vrot.lane.b32.xlu0 %v1045, 126
        %v1267 = vpop.permute.xlu0 %1266
        %1268 = vrot.lane.b32.xlu0 %v1046, 126
        %v1269 = vpop.permute.xlu0 %1268
        %1270 = vrot.lane.b32.xlu0 %v1047, 126
        %v1271 = vpop.permute.xlu0 %1270
        %1272 = vrot.lane.b32.xlu0 %v1048, 126
        %v1273 = vpop.permute.xlu0 %1272
        %1274 = vrot.lane.b32.xlu0 %v1049, 126
        %v1275 = vpop.permute.xlu0 %1274
        %1276 = vrot.lane.b32.xlu0 %v1050, 126
        %v1277 = vpop.permute.xlu0 %1276
        %1278 = vrot.lane.b32.xlu0 %v1051, 126
        %v1279 = vpop.permute.xlu0 %1278
        %vm1280 = vcmask 1031168
        %v1281 = vsel %vm1280, %v1129, %v1131
        %v1282 = vsel %vm1280, %v1133, %v1135
        %v1283 = vsel %vm1280, %v1137, %v1139
        %v1284 = vsel %vm1280, %v1141, %v1143
        %v1285 = vsel %vm1280, %v1145, %v1147
        %v1286 = vsel %vm1280, %v1149, %v1151
        %v1287 = vsel %vm1280, %v1153, %v1155
        %v1288 = vsel %vm1280, %v1157, %v1159
        %v1289 = vsel %vm1280, %v1161, %v1163
        %v1290 = vsel %vm1280, %v1165, %v1167
        %v1291 = vsel %vm1280, %v1169, %v1171
        %v1292 = vsel %vm1280, %v1173, %v1175
        %v1293 = vsel %vm1280, %v1177, %v1179
        %v1294 = vsel %vm1280, %v1181, %v1183
        %v1295 = vsel %vm1280, %v1185, %v1187
        %v1296 = vsel %vm1280, %v1189, %v1191
        %v1297 = vsel %vm1280, %v1193, %v1195
        %v1298 = vsel %vm1280, %v1197, %v1199
        %v1299 = vsel %vm1280, %v1201, %v1203
        %v1300 = vsel %vm1280, %v1205, %v1207
        %v1301 = vsel %vm1280, %v1209, %v1211
        %v1302 = vsel %vm1280, %v1213, %v1215
        %v1303 = vsel %vm1280, %v1217, %v1219
        %v1304 = vsel %vm1280, %v1221, %v1223
        %v1305 = vsel %vm1280, %v1225, %v1227
        %v1306 = vsel %vm1280, %v1229, %v1231
        %v1307 = vsel %vm1280, %v1233, %v1235
        %v1308 = vsel %vm1280, %v1237, %v1239
        %v1309 = vsel %vm1280, %v1241, %v1243
        %v1310 = vsel %vm1280, %v1245, %v1247
        %v1311 = vsel %vm1280, %v1249, %v1251
        %v1312 = vsel %vm1280, %v1253, %v1255
        %v1313 = vsel %vm1280, %v1257, %v1259
        %v1314 = vsel %vm1280, %v1261, %v1263
        %v1315 = vsel %vm1280, %v1265, %v1267
        %v1316 = vsel %vm1280, %v1269, %v1271
        %v1317 = vsel %vm1280, %v1273, %v1275
        %v1318 = vsel %vm1280, %v1277, %v1279
        %v1395 = vadd.f32 %v897, %v1281
        %v1396 = vadd.f32 %v898, %v1131
        %v1397 = vadd.f32 %v899, %v1282
        %v1398 = vadd.f32 %v900, %v1135
        %v1399 = vadd.f32 %v901, %v1283
        %v1400 = vadd.f32 %v902, %v1139
        %v1401 = vadd.f32 %v903, %v1284
        %v1402 = vadd.f32 %v904, %v1143
        %v1403 = vadd.f32 %v905, %v1285
        %v1404 = vadd.f32 %v906, %v1147
        %v1405 = vadd.f32 %v907, %v1286
        %v1406 = vadd.f32 %v908, %v1151
        %v1407 = vadd.f32 %v909, %v1287
        %v1408 = vadd.f32 %v910, %v1155
        %v1409 = vadd.f32 %v911, %v1288
        %v1410 = vadd.f32 %v912, %v1159
        %v1411 = vadd.f32 %v913, %v1289
        %v1412 = vadd.f32 %v914, %v1163
        %v1413 = vadd.f32 %v915, %v1290
        %v1414 = vadd.f32 %v916, %v1167
        %v1415 = vadd.f32 %v917, %v1291
        %v1416 = vadd.f32 %v918, %v1171
        %v1417 = vadd.f32 %v919, %v1292
        %v1418 = vadd.f32 %v920, %v1175
        %v1419 = vadd.f32 %v921, %v1293
        %v1420 = vadd.f32 %v922, %v1179
        %v1421 = vadd.f32 %v923, %v1294
        %v1422 = vadd.f32 %v924, %v1183
        %v1423 = vadd.f32 %v925, %v1295
        %v1424 = vadd.f32 %v926, %v1187
        %v1425 = vadd.f32 %v927, %v1296
        %v1426 = vadd.f32 %v928, %v1191
        %v1427 = vadd.f32 %v929, %v1297
        %v1428 = vadd.f32 %v930, %v1195
        %v1429 = vadd.f32 %v931, %v1298
        %v1430 = vadd.f32 %v932, %v1199
        %v1431 = vadd.f32 %v933, %v1299
        %v1432 = vadd.f32 %v934, %v1203
        %v1433 = vadd.f32 %v935, %v1300
        %v1434 = vadd.f32 %v936, %v1207
        %v1435 = vadd.f32 %v937, %v1301
        %v1436 = vadd.f32 %v938, %v1211
        %v1437 = vadd.f32 %v939, %v1302
        %v1438 = vadd.f32 %v940, %v1215
        %v1439 = vadd.f32 %v941, %v1303
        %v1440 = vadd.f32 %v942, %v1219
        %v1441 = vadd.f32 %v943, %v1304
        %v1442 = vadd.f32 %v944, %v1223
        %v1443 = vadd.f32 %v945, %v1305
        %v1444 = vadd.f32 %v946, %v1227
        %v1445 = vadd.f32 %v947, %v1306
        %v1446 = vadd.f32 %v948, %v1231
        %v1447 = vadd.f32 %v949, %v1307
        %v1448 = vadd.f32 %v950, %v1235
        %v1449 = vadd.f32 %v951, %v1308
        %v1450 = vadd.f32 %v952, %v1239
        %v1451 = vadd.f32 %v953, %v1309
        %v1452 = vadd.f32 %v954, %v1243
        %v1453 = vadd.f32 %v955, %v1310
        %v1454 = vadd.f32 %v956, %v1247
        %v1455 = vadd.f32 %v957, %v1311
        %v1456 = vadd.f32 %v958, %v1251
        %v1457 = vadd.f32 %v959, %v1312
        %v1458 = vadd.f32 %v960, %v1255
        %v1459 = vadd.f32 %v961, %v1313
        %v1460 = vadd.f32 %v962, %v1259
        %v1461 = vadd.f32 %v963, %v1314
        %v1462 = vadd.f32 %v964, %v1263
        %v1463 = vadd.f32 %v965, %v1315
        %v1464 = vadd.f32 %v966, %v1267
        %v1465 = vadd.f32 %v967, %v1316
        %v1466 = vadd.f32 %v968, %v1271
        %v1467 = vadd.f32 %v969, %v1317
        %v1468 = vadd.f32 %v970, %v1275
        %v1469 = vadd.f32 %v971, %v1318
        %v1470 = vadd.f32 %v972, %v1279
        %v1471 = vld [vmem:[%s0] sm:$0xfe]
        %v1472 = vld [vmem:[%s0 + $0x8] sm:$0xfe]
        %v1473 = vld [vmem:[%s0 + $0x120] sm:$0x1f]
        %v1474 = vld [vmem:[%s0 + $0x128] sm:$0x1f]
        %v1475 = vld [vmem:[%s0 + $0x130] sm:$0xfe]
        %v1476 = vld [vmem:[%s0 + $0x138] sm:$0xfe]
        %v1477 = vld [vmem:[%s0 + $0x250] sm:$0x1f]
        %v1478 = vld [vmem:[%s0 + $0x258] sm:$0x1f]
        %s1479 = sadd.s32 %s320, 3
        %s1480 = sld [smem:[#allocation3 + %s1479]]
        %v1481 = vstv %s1480
        %v1482 = vmul.f32 %v1481, %v1471
        %v1483 = vmul.f32 %v1481, %v1472
        %v1484 = vmul.f32 %v1481, %v246
        %v1485 = vmul.f32 %v1481, %v247
        %v1486 = vmul.f32 %v1481, %v248
        %v1487 = vmul.f32 %v1481, %v249
        %v1488 = vmul.f32 %v1481, %v250
        %v1489 = vmul.f32 %v1481, %v251
        %v1490 = vmul.f32 %v1481, %v252
        %v1491 = vmul.f32 %v1481, %v253
        %v1492 = vmul.f32 %v1481, %v254
        %v1493 = vmul.f32 %v1481, %v255
        %v1494 = vmul.f32 %v1481, %v256
        %v1495 = vmul.f32 %v1481, %v257
        %v1496 = vmul.f32 %v1481, %v258
        %v1497 = vmul.f32 %v1481, %v259
        %v1498 = vmul.f32 %v1481, %v260
        %v1499 = vmul.f32 %v1481, %v261
        %v1500 = vmul.f32 %v1481, %v262
        %v1501 = vmul.f32 %v1481, %v263
        %v1502 = vmul.f32 %v1481, %v264
        %v1503 = vmul.f32 %v1481, %v265
        %v1504 = vmul.f32 %v1481, %v266
        %v1505 = vmul.f32 %v1481, %v267
        %v1506 = vmul.f32 %v1481, %v268
        %v1507 = vmul.f32 %v1481, %v269
        %v1508 = vmul.f32 %v1481, %v270
        %v1509 = vmul.f32 %v1481, %v271
        %v1510 = vmul.f32 %v1481, %v272
        %v1511 = vmul.f32 %v1481, %v273
        %v1512 = vmul.f32 %v1481, %v274
        %v1513 = vmul.f32 %v1481, %v275
        %v1514 = vmul.f32 %v1481, %v276
        %v1515 = vmul.f32 %v1481, %v277
        %v1516 = vmul.f32 %v1481, %v278
        %v1517 = vmul.f32 %v1481, %v279
        %v1518 = vmul.f32 %v1481, %v1473
        %v1519 = vmul.f32 %v1481, %v1474
        %v1520 = vmul.f32 %v1481, %v1475
        %v1521 = vmul.f32 %v1481, %v1476
        %v1522 = vmul.f32 %v1481, %v284
        %v1523 = vmul.f32 %v1481, %v285
        %v1524 = vmul.f32 %v1481, %v286
        %v1525 = vmul.f32 %v1481, %v287
        %v1526 = vmul.f32 %v1481, %v288
        %v1527 = vmul.f32 %v1481, %v289
        %v1528 = vmul.f32 %v1481, %v290
        %v1529 = vmul.f32 %v1481, %v291
        %v1530 = vmul.f32 %v1481, %v292
        %v1531 = vmul.f32 %v1481, %v293
        %v1532 = vmul.f32 %v1481, %v294
        %v1533 = vmul.f32 %v1481, %v295
        %v1534 = vmul.f32 %v1481, %v296
        %v1535 = vmul.f32 %v1481, %v297
        %v1536 = vmul.f32 %v1481, %v298
        %v1537 = vmul.f32 %v1481, %v299
        %v1538 = vmul.f32 %v1481, %v300
        %v1539 = vmul.f32 %v1481, %v301
        %v1540 = vmul.f32 %v1481, %v302
        %v1541 = vmul.f32 %v1481, %v303
        %v1542 = vmul.f32 %v1481, %v304
        %v1543 = vmul.f32 %v1481, %v305
        %v1544 = vmul.f32 %v1481, %v306
        %v1545 = vmul.f32 %v1481, %v307
        %v1546 = vmul.f32 %v1481, %v308
        %v1547 = vmul.f32 %v1481, %v309
        %v1548 = vmul.f32 %v1481, %v310
        %v1549 = vmul.f32 %v1481, %v311
        %v1550 = vmul.f32 %v1481, %v312
        %v1551 = vmul.f32 %v1481, %v313
        %v1552 = vmul.f32 %v1481, %v314
        %v1553 = vmul.f32 %v1481, %v315
        %v1554 = vmul.f32 %v1481, %v316
        %v1555 = vmul.f32 %v1481, %v317
        %v1556 = vmul.f32 %v1481, %v1477
        %v1557 = vmul.f32 %v1481, %v1478
        %vm1634 = vcmask 1046528
        %v1635 = vrot.slane %v1482, 1
        %v1636 = vrot.slane %v1484, 1
        %v1637 = vsel %vm1634, %v1635, %v1636
        %v1638 = vrot.slane %v1483, 1
        %v1639 = vrot.slane %v1485, 1
        %v1640 = vsel %vm1634, %v1638, %v1639
        %v1641 = vrot.slane %v1486, 1
        %v1642 = vsel %vm1634, %v1636, %v1641
        %v1643 = vrot.slane %v1487, 1
        %v1644 = vsel %vm1634, %v1639, %v1643
        %v1645 = vrot.slane %v1488, 1
        %v1646 = vsel %vm1634, %v1641, %v1645
        %v1647 = vrot.slane %v1489, 1
        %v1648 = vsel %vm1634, %v1643, %v1647
        %v1649 = vrot.slane %v1490, 1
        %v1650 = vsel %vm1634, %v1645, %v1649
        %v1651 = vrot.slane %v1491, 1
        %v1652 = vsel %vm1634, %v1647, %v1651
        %v1653 = vrot.slane %v1492, 1
        %v1654 = vsel %vm1634, %v1649, %v1653
        %v1655 = vrot.slane %v1493, 1
        %v1656 = vsel %vm1634, %v1651, %v1655
        %v1657 = vrot.slane %v1494, 1
        %v1658 = vsel %vm1634, %v1653, %v1657
        %v1659 = vrot.slane %v1495, 1
        %v1660 = vsel %vm1634, %v1655, %v1659
        %v1661 = vrot.slane %v1496, 1
        %v1662 = vsel %vm1634, %v1657, %v1661
        %v1663 = vrot.slane %v1497, 1
        %v1664 = vsel %vm1634, %v1659, %v1663
        %v1665 = vrot.slane %v1498, 1
        %v1666 = vsel %vm1634, %v1661, %v1665
        %v1667 = vrot.slane %v1499, 1
        %v1668 = vsel %vm1634, %v1663, %v1667
        %v1669 = vrot.slane %v1500, 1
        %v1670 = vsel %vm1634, %v1665, %v1669
        %v1671 = vrot.slane %v1501, 1
        %v1672 = vsel %vm1634, %v1667, %v1671
        %v1673 = vrot.slane %v1502, 1
        %v1674 = vsel %vm1634, %v1669, %v1673
        %v1675 = vrot.slane %v1503, 1
        %v1676 = vsel %vm1634, %v1671, %v1675
        %v1677 = vrot.slane %v1504, 1
        %v1678 = vsel %vm1634, %v1673, %v1677
        %v1679 = vrot.slane %v1505, 1
        %v1680 = vsel %vm1634, %v1675, %v1679
        %v1681 = vrot.slane %v1506, 1
        %v1682 = vsel %vm1634, %v1677, %v1681
        %v1683 = vrot.slane %v1507, 1
        %v1684 = vsel %vm1634, %v1679, %v1683
        %v1685 = vrot.slane %v1508, 1
        %v1686 = vsel %vm1634, %v1681, %v1685
        %v1687 = vrot.slane %v1509, 1
        %v1688 = vsel %vm1634, %v1683, %v1687
        %v1689 = vrot.slane %v1510, 1
        %v1690 = vsel %vm1634, %v1685, %v1689
        %v1691 = vrot.slane %v1511, 1
        %v1692 = vsel %vm1634, %v1687, %v1691
        %v1693 = vrot.slane %v1512, 1
        %v1694 = vsel %vm1634, %v1689, %v1693
        %v1695 = vrot.slane %v1513, 1
        %v1696 = vsel %vm1634, %v1691, %v1695
        %v1697 = vrot.slane %v1514, 1
        %v1698 = vsel %vm1634, %v1693, %v1697
        %v1699 = vrot.slane %v1515, 1
        %v1700 = vsel %vm1634, %v1695, %v1699
        %v1701 = vrot.slane %v1516, 1
        %v1702 = vsel %vm1634, %v1697, %v1701
        %v1703 = vrot.slane %v1517, 1
        %v1704 = vsel %vm1634, %v1699, %v1703
        %v1705 = vrot.slane %v1518, 1
        %v1706 = vsel %vm1634, %v1701, %v1705
        %v1707 = vrot.slane %v1519, 1
        %v1708 = vsel %vm1634, %v1703, %v1707
        %v1709 = vrot.slane %v1520, 1
        %v1710 = vrot.slane %v1522, 1
        %v1711 = vsel %vm1634, %v1709, %v1710
        %v1712 = vrot.slane %v1521, 1
        %v1713 = vrot.slane %v1523, 1
        %v1714 = vsel %vm1634, %v1712, %v1713
        %v1715 = vrot.slane %v1524, 1
        %v1716 = vsel %vm1634, %v1710, %v1715
        %v1717 = vrot.slane %v1525, 1
        %v1718 = vsel %vm1634, %v1713, %v1717
        %v1719 = vrot.slane %v1526, 1
        %v1720 = vsel %vm1634, %v1715, %v1719
        %v1721 = vrot.slane %v1527, 1
        %v1722 = vsel %vm1634, %v1717, %v1721
        %v1723 = vrot.slane %v1528, 1
        %v1724 = vsel %vm1634, %v1719, %v1723
        %v1725 = vrot.slane %v1529, 1
        %v1726 = vsel %vm1634, %v1721, %v1725
        %v1727 = vrot.slane %v1530, 1
        %v1728 = vsel %vm1634, %v1723, %v1727
        %v1729 = vrot.slane %v1531, 1
        %v1730 = vsel %vm1634, %v1725, %v1729
        %v1731 = vrot.slane %v1532, 1
        %v1732 = vsel %vm1634, %v1727, %v1731
        %v1733 = vrot.slane %v1533, 1
        %v1734 = vsel %vm1634, %v1729, %v1733
        %v1735 = vrot.slane %v1534, 1
        %v1736 = vsel %vm1634, %v1731, %v1735
        %v1737 = vrot.slane %v1535, 1
        %v1738 = vsel %vm1634, %v1733, %v1737
        %v1739 = vrot.slane %v1536, 1
        %v1740 = vsel %vm1634, %v1735, %v1739
        %v1741 = vrot.slane %v1537, 1
        %v1742 = vsel %vm1634, %v1737, %v1741
        %v1743 = vrot.slane %v1538, 1
        %v1744 = vsel %vm1634, %v1739, %v1743
        %v1745 = vrot.slane %v1539, 1
        %v1746 = vsel %vm1634, %v1741, %v1745
        %v1747 = vrot.slane %v1540, 1
        %v1748 = vsel %vm1634, %v1743, %v1747
        %v1749 = vrot.slane %v1541, 1
        %v1750 = vsel %vm1634, %v1745, %v1749
        %v1751 = vrot.slane %v1542, 1
        %v1752 = vsel %vm1634, %v1747, %v1751
        %v1753 = vrot.slane %v1543, 1
        %v1754 = vsel %vm1634, %v1749, %v1753
        %v1755 = vrot.slane %v1544, 1
        %v1756 = vsel %vm1634, %v1751, %v1755
        %v1757 = vrot.slane %v1545, 1
        %v1758 = vsel %vm1634, %v1753, %v1757
        %v1759 = vrot.slane %v1546, 1
        %v1760 = vsel %vm1634, %v1755, %v1759
        %v1761 = vrot.slane %v1547, 1
        %v1762 = vsel %vm1634, %v1757, %v1761
        %v1763 = vrot.slane %v1548, 1
        %v1764 = vsel %vm1634, %v1759, %v1763
        %v1765 = vrot.slane %v1549, 1
        %v1766 = vsel %vm1634, %v1761, %v1765
        %v1767 = vrot.slane %v1550, 1
        %v1768 = vsel %vm1634, %v1763, %v1767
        %v1769 = vrot.slane %v1551, 1
        %v1770 = vsel %vm1634, %v1765, %v1769
        %v1771 = vrot.slane %v1552, 1
        %v1772 = vsel %vm1634, %v1767, %v1771
        %v1773 = vrot.slane %v1553, 1
        %v1774 = vsel %vm1634, %v1769, %v1773
        %v1775 = vrot.slane %v1554, 1
        %v1776 = vsel %vm1634, %v1771, %v1775
        %v1777 = vrot.slane %v1555, 1
        %v1778 = vsel %vm1634, %v1773, %v1777
        %v1779 = vrot.slane %v1556, 1
        %v1780 = vsel %vm1634, %v1775, %v1779
        %v1781 = vrot.slane %v1557, 1
        %v1782 = vsel %vm1634, %v1777, %v1781
        %v1859 = vadd.f32 %v1395, %v1637
        %v1860 = vadd.f32 %v1396, %v1640
        %v1861 = vadd.f32 %v1397, %v1642
        %v1862 = vadd.f32 %v1398, %v1644
        %v1863 = vadd.f32 %v1399, %v1646
        %v1864 = vadd.f32 %v1400, %v1648
        %v1865 = vadd.f32 %v1401, %v1650
        %v1866 = vadd.f32 %v1402, %v1652
        %v1867 = vadd.f32 %v1403, %v1654
        %v1868 = vadd.f32 %v1404, %v1656
        %v1869 = vadd.f32 %v1405, %v1658
        %v1870 = vadd.f32 %v1406, %v1660
        %v1871 = vadd.f32 %v1407, %v1662
        %v1872 = vadd.f32 %v1408, %v1664
        %v1873 = vadd.f32 %v1409, %v1666
        %v1874 = vadd.f32 %v1410, %v1668
        %v1875 = vadd.f32 %v1411, %v1670
        %v1876 = vadd.f32 %v1412, %v1672
        %v1877 = vadd.f32 %v1413, %v1674
        %v1878 = vadd.f32 %v1414, %v1676
        %v1879 = vadd.f32 %v1415, %v1678
        %v1880 = vadd.f32 %v1416, %v1680
        %v1881 = vadd.f32 %v1417, %v1682
        %v1882 = vadd.f32 %v1418, %v1684
        %v1883 = vadd.f32 %v1419, %v1686
        %v1884 = vadd.f32 %v1420, %v1688
        %v1885 = vadd.f32 %v1421, %v1690
        %v1886 = vadd.f32 %v1422, %v1692
        %v1887 = vadd.f32 %v1423, %v1694
        %v1888 = vadd.f32 %v1424, %v1696
        %v1889 = vadd.f32 %v1425, %v1698
        %v1890 = vadd.f32 %v1426, %v1700
        %v1891 = vadd.f32 %v1427, %v1702
        %v1892 = vadd.f32 %v1428, %v1704
        %v1893 = vadd.f32 %v1429, %v1706
        %v1894 = vadd.f32 %v1430, %v1708
        %v1895 = vadd.f32 %v1431, %v1705
        %v1896 = vadd.f32 %v1432, %v1707
        %v1897 = vadd.f32 %v1433, %v1711
        %v1898 = vadd.f32 %v1434, %v1714
        %v1899 = vadd.f32 %v1435, %v1716
        %v1900 = vadd.f32 %v1436, %v1718
        %v1901 = vadd.f32 %v1437, %v1720
        %v1902 = vadd.f32 %v1438, %v1722
        %v1903 = vadd.f32 %v1439, %v1724
        %v1904 = vadd.f32 %v1440, %v1726
        %v1905 = vadd.f32 %v1441, %v1728
        %v1906 = vadd.f32 %v1442, %v1730
        %v1907 = vadd.f32 %v1443, %v1732
        %v1908 = vadd.f32 %v1444, %v1734
        %v1909 = vadd.f32 %v1445, %v1736
        %v1910 = vadd.f32 %v1446, %v1738
        %v1911 = vadd.f32 %v1447, %v1740
        %v1912 = vadd.f32 %v1448, %v1742
        %v1913 = vadd.f32 %v1449, %v1744
        %v1914 = vadd.f32 %v1450, %v1746
        %v1915 = vadd.f32 %v1451, %v1748
        %v1916 = vadd.f32 %v1452, %v1750
        %v1917 = vadd.f32 %v1453, %v1752
        %v1918 = vadd.f32 %v1454, %v1754
        %v1919 = vadd.f32 %v1455, %v1756
        %v1920 = vadd.f32 %v1456, %v1758
        %v1921 = vadd.f32 %v1457, %v1760
        %v1922 = vadd.f32 %v1458, %v1762
        %v1923 = vadd.f32 %v1459, %v1764
        %v1924 = vadd.f32 %v1460, %v1766
        %v1925 = vadd.f32 %v1461, %v1768
        %v1926 = vadd.f32 %v1462, %v1770
        %v1927 = vadd.f32 %v1463, %v1772
        %v1928 = vadd.f32 %v1464, %v1774
        %v1929 = vadd.f32 %v1465, %v1776
        %v1930 = vadd.f32 %v1466, %v1778
        %v1931 = vadd.f32 %v1467, %v1780
        %v1932 = vadd.f32 %v1468, %v1782
        %v1933 = vadd.f32 %v1469, %v1779
        %v1934 = vadd.f32 %v1470, %v1781
        %s1935 = sadd.s32 %s320, 4
        %s1936 = sld [smem:[#allocation3 + %s1935]]
        %v1937 = vstv %s1936
        %v1938 = vmul.f32 %v1937, %v1471
        %v1939 = vmul.f32 %v1937, %v1472
        %v1940 = vmul.f32 %v1937, %v246
        %v1941 = vmul.f32 %v1937, %v247
        %v1942 = vmul.f32 %v1937, %v248
        %v1943 = vmul.f32 %v1937, %v249
        %v1944 = vmul.f32 %v1937, %v250
        %v1945 = vmul.f32 %v1937, %v251
        %v1946 = vmul.f32 %v1937, %v252
        %v1947 = vmul.f32 %v1937, %v253
        %v1948 = vmul.f32 %v1937, %v254
        %v1949 = vmul.f32 %v1937, %v255
        %v1950 = vmul.f32 %v1937, %v256
        %v1951 = vmul.f32 %v1937, %v257
        %v1952 = vmul.f32 %v1937, %v258
        %v1953 = vmul.f32 %v1937, %v259
        %v1954 = vmul.f32 %v1937, %v260
        %v1955 = vmul.f32 %v1937, %v261
        %v1956 = vmul.f32 %v1937, %v262
        %v1957 = vmul.f32 %v1937, %v263
        %v1958 = vmul.f32 %v1937, %v264
        %v1959 = vmul.f32 %v1937, %v265
        %v1960 = vmul.f32 %v1937, %v266
        %v1961 = vmul.f32 %v1937, %v267
        %v1962 = vmul.f32 %v1937, %v268
        %v1963 = vmul.f32 %v1937, %v269
        %v1964 = vmul.f32 %v1937, %v270
        %v1965 = vmul.f32 %v1937, %v271
        %v1966 = vmul.f32 %v1937, %v272
        %v1967 = vmul.f32 %v1937, %v273
        %v1968 = vmul.f32 %v1937, %v274
        %v1969 = vmul.f32 %v1937, %v275
        %v1970 = vmul.f32 %v1937, %v276
        %v1971 = vmul.f32 %v1937, %v277
        %v1972 = vmul.f32 %v1937, %v278
        %v1973 = vmul.f32 %v1937, %v279
        %v1974 = vmul.f32 %v1937, %v1473
        %v1975 = vmul.f32 %v1937, %v1474
        %v1976 = vmul.f32 %v1937, %v1475
        %v1977 = vmul.f32 %v1937, %v1476
        %v1978 = vmul.f32 %v1937, %v284
        %v1979 = vmul.f32 %v1937, %v285
        %v1980 = vmul.f32 %v1937, %v286
        %v1981 = vmul.f32 %v1937, %v287
        %v1982 = vmul.f32 %v1937, %v288
        %v1983 = vmul.f32 %v1937, %v289
        %v1984 = vmul.f32 %v1937, %v290
        %v1985 = vmul.f32 %v1937, %v291
        %v1986 = vmul.f32 %v1937, %v292
        %v1987 = vmul.f32 %v1937, %v293
        %v1988 = vmul.f32 %v1937, %v294
        %v1989 = vmul.f32 %v1937, %v295
        %v1990 = vmul.f32 %v1937, %v296
        %v1991 = vmul.f32 %v1937, %v297
        %v1992 = vmul.f32 %v1937, %v298
        %v1993 = vmul.f32 %v1937, %v299
        %v1994 = vmul.f32 %v1937, %v300
        %v1995 = vmul.f32 %v1937, %v301
        %v1996 = vmul.f32 %v1937, %v302
        %v1997 = vmul.f32 %v1937, %v303
        %v1998 = vmul.f32 %v1937, %v304
        %v1999 = vmul.f32 %v1937, %v305
        %v2000 = vmul.f32 %v1937, %v306
        %v2001 = vmul.f32 %v1937, %v307
        %v2002 = vmul.f32 %v1937, %v308
        %v2003 = vmul.f32 %v1937, %v309
        %v2004 = vmul.f32 %v1937, %v310
        %v2005 = vmul.f32 %v1937, %v311
        %v2006 = vmul.f32 %v1937, %v312
        %v2007 = vmul.f32 %v1937, %v313
        %v2008 = vmul.f32 %v1937, %v314
        %v2009 = vmul.f32 %v1937, %v315
        %v2010 = vmul.f32 %v1937, %v316
        %v2011 = vmul.f32 %v1937, %v317
        %v2012 = vmul.f32 %v1937, %v1477
        %v2013 = vmul.f32 %v1937, %v1478
        %v2090 = vrot.slane %v1938, 1
        %v2091 = vrot.slane %v1940, 1
        %v2092 = vsel %vm1634, %v2090, %v2091
        %v2093 = vrot.slane %v1939, 1
        %v2094 = vrot.slane %v1941, 1
        %v2095 = vsel %vm1634, %v2093, %v2094
        %v2096 = vrot.slane %v1942, 1
        %v2097 = vsel %vm1634, %v2091, %v2096
        %v2098 = vrot.slane %v1943, 1
        %v2099 = vsel %vm1634, %v2094, %v2098
        %v2100 = vrot.slane %v1944, 1
        %v2101 = vsel %vm1634, %v2096, %v2100
        %v2102 = vrot.slane %v1945, 1
        %v2103 = vsel %vm1634, %v2098, %v2102
        %v2104 = vrot.slane %v1946, 1
        %v2105 = vsel %vm1634, %v2100, %v2104
        %v2106 = vrot.slane %v1947, 1
        %v2107 = vsel %vm1634, %v2102, %v2106
        %v2108 = vrot.slane %v1948, 1
        %v2109 = vsel %vm1634, %v2104, %v2108
        %v2110 = vrot.slane %v1949, 1
        %v2111 = vsel %vm1634, %v2106, %v2110
        %v2112 = vrot.slane %v1950, 1
        %v2113 = vsel %vm1634, %v2108, %v2112
        %v2114 = vrot.slane %v1951, 1
        %v2115 = vsel %vm1634, %v2110, %v2114
        %v2116 = vrot.slane %v1952, 1
        %v2117 = vsel %vm1634, %v2112, %v2116
        %v2118 = vrot.slane %v1953, 1
        %v2119 = vsel %vm1634, %v2114, %v2118
        %v2120 = vrot.slane %v1954, 1
        %v2121 = vsel %vm1634, %v2116, %v2120
        %v2122 = vrot.slane %v1955, 1
        %v2123 = vsel %vm1634, %v2118, %v2122
        %v2124 = vrot.slane %v1956, 1
        %v2125 = vsel %vm1634, %v2120, %v2124
        %v2126 = vrot.slane %v1957, 1
        %v2127 = vsel %vm1634, %v2122, %v2126
        %v2128 = vrot.slane %v1958, 1
        %v2129 = vsel %vm1634, %v2124, %v2128
        %v2130 = vrot.slane %v1959, 1
        %v2131 = vsel %vm1634, %v2126, %v2130
        %v2132 = vrot.slane %v1960, 1
        %v2133 = vsel %vm1634, %v2128, %v2132
        %v2134 = vrot.slane %v1961, 1
        %v2135 = vsel %vm1634, %v2130, %v2134
        %v2136 = vrot.slane %v1962, 1
        %v2137 = vsel %vm1634, %v2132, %v2136
        %v2138 = vrot.slane %v1963, 1
        %v2139 = vsel %vm1634, %v2134, %v2138
        %v2140 = vrot.slane %v1964, 1
        %v2141 = vsel %vm1634, %v2136, %v2140
        %v2142 = vrot.slane %v1965, 1
        %v2143 = vsel %vm1634, %v2138, %v2142
        %v2144 = vrot.slane %v1966, 1
        %v2145 = vsel %vm1634, %v2140, %v2144
        %v2146 = vrot.slane %v1967, 1
        %v2147 = vsel %vm1634, %v2142, %v2146
        %v2148 = vrot.slane %v1968, 1
        %v2149 = vsel %vm1634, %v2144, %v2148
        %v2150 = vrot.slane %v1969, 1
        %v2151 = vsel %vm1634, %v2146, %v2150
        %v2152 = vrot.slane %v1970, 1
        %v2153 = vsel %vm1634, %v2148, %v2152
        %v2154 = vrot.slane %v1971, 1
        %v2155 = vsel %vm1634, %v2150, %v2154
        %v2156 = vrot.slane %v1972, 1
        %v2157 = vsel %vm1634, %v2152, %v2156
        %v2158 = vrot.slane %v1973, 1
        %v2159 = vsel %vm1634, %v2154, %v2158
        %v2160 = vrot.slane %v1974, 1
        %v2161 = vsel %vm1634, %v2156, %v2160
        %v2162 = vrot.slane %v1975, 1
        %v2163 = vsel %vm1634, %v2158, %v2162
        %v2164 = vrot.slane %v1976, 1
        %v2165 = vrot.slane %v1978, 1
        %v2166 = vsel %vm1634, %v2164, %v2165
        %v2167 = vrot.slane %v1977, 1
        %v2168 = vrot.slane %v1979, 1
        %v2169 = vsel %vm1634, %v2167, %v2168
        %v2170 = vrot.slane %v1980, 1
        %v2171 = vsel %vm1634, %v2165, %v2170
        %v2172 = vrot.slane %v1981, 1
        %v2173 = vsel %vm1634, %v2168, %v2172
        %v2174 = vrot.slane %v1982, 1
        %v2175 = vsel %vm1634, %v2170, %v2174
        %v2176 = vrot.slane %v1983, 1
        %v2177 = vsel %vm1634, %v2172, %v2176
        %v2178 = vrot.slane %v1984, 1
        %v2179 = vsel %vm1634, %v2174, %v2178
        %v2180 = vrot.slane %v1985, 1
        %v2181 = vsel %vm1634, %v2176, %v2180
        %v2182 = vrot.slane %v1986, 1
        %v2183 = vsel %vm1634, %v2178, %v2182
        %v2184 = vrot.slane %v1987, 1
        %v2185 = vsel %vm1634, %v2180, %v2184
        %v2186 = vrot.slane %v1988, 1
        %v2187 = vsel %vm1634, %v2182, %v2186
        %v2188 = vrot.slane %v1989, 1
        %v2189 = vsel %vm1634, %v2184, %v2188
        %v2190 = vrot.slane %v1990, 1
        %v2191 = vsel %vm1634, %v2186, %v2190
        %v2192 = vrot.slane %v1991, 1
        %v2193 = vsel %vm1634, %v2188, %v2192
        %v2194 = vrot.slane %v1992, 1
        %v2195 = vsel %vm1634, %v2190, %v2194
        %v2196 = vrot.slane %v1993, 1
        %v2197 = vsel %vm1634, %v2192, %v2196
        %v2198 = vrot.slane %v1994, 1
        %v2199 = vsel %vm1634, %v2194, %v2198
        %v2200 = vrot.slane %v1995, 1
        %v2201 = vsel %vm1634, %v2196, %v2200
        %v2202 = vrot.slane %v1996, 1
        %v2203 = vsel %vm1634, %v2198, %v2202
        %v2204 = vrot.slane %v1997, 1
        %v2205 = vsel %vm1634, %v2200, %v2204
        %v2206 = vrot.slane %v1998, 1
        %v2207 = vsel %vm1634, %v2202, %v2206
        %v2208 = vrot.slane %v1999, 1
        %v2209 = vsel %vm1634, %v2204, %v2208
        %v2210 = vrot.slane %v2000, 1
        %v2211 = vsel %vm1634, %v2206, %v2210
        %v2212 = vrot.slane %v2001, 1
        %v2213 = vsel %vm1634, %v2208, %v2212
        %v2214 = vrot.slane %v2002, 1
        %v2215 = vsel %vm1634, %v2210, %v2214
        %v2216 = vrot.slane %v2003, 1
        %v2217 = vsel %vm1634, %v2212, %v2216
        %v2218 = vrot.slane %v2004, 1
        %v2219 = vsel %vm1634, %v2214, %v2218
        %v2220 = vrot.slane %v2005, 1
        %v2221 = vsel %vm1634, %v2216, %v2220
        %v2222 = vrot.slane %v2006, 1
        %v2223 = vsel %vm1634, %v2218, %v2222
        %v2224 = vrot.slane %v2007, 1
        %v2225 = vsel %vm1634, %v2220, %v2224
        %v2226 = vrot.slane %v2008, 1
        %v2227 = vsel %vm1634, %v2222, %v2226
        %v2228 = vrot.slane %v2009, 1
        %v2229 = vsel %vm1634, %v2224, %v2228
        %v2230 = vrot.slane %v2010, 1
        %v2231 = vsel %vm1634, %v2226, %v2230
        %v2232 = vrot.slane %v2011, 1
        %v2233 = vsel %vm1634, %v2228, %v2232
        %v2234 = vrot.slane %v2012, 1
        %v2235 = vsel %vm1634, %v2230, %v2234
        %v2236 = vrot.slane %v2013, 1
        %v2237 = vsel %vm1634, %v2232, %v2236
        %2238 = vrot.lane.b32.xlu0 %v2092, 127
        %v2239 = vpop.permute.xlu0 %2238
        %2240 = vrot.lane.b32.xlu0 %v2095, 127
        %v2241 = vpop.permute.xlu0 %2240
        %2242 = vrot.lane.b32.xlu0 %v2097, 127
        %v2243 = vpop.permute.xlu0 %2242
        %2244 = vrot.lane.b32.xlu0 %v2099, 127
        %v2245 = vpop.permute.xlu0 %2244
        %2246 = vrot.lane.b32.xlu0 %v2101, 127
        %v2247 = vpop.permute.xlu0 %2246
        %2248 = vrot.lane.b32.xlu0 %v2103, 127
        %v2249 = vpop.permute.xlu0 %2248
        %2250 = vrot.lane.b32.xlu0 %v2105, 127
        %v2251 = vpop.permute.xlu0 %2250
        %2252 = vrot.lane.b32.xlu0 %v2107, 127
        %v2253 = vpop.permute.xlu0 %2252
        %2254 = vrot.lane.b32.xlu0 %v2109, 127
        %v2255 = vpop.permute.xlu0 %2254
        %2256 = vrot.lane.b32.xlu0 %v2111, 127
        %v2257 = vpop.permute.xlu0 %2256
        %2258 = vrot.lane.b32.xlu0 %v2113, 127
        %v2259 = vpop.permute.xlu0 %2258
        %2260 = vrot.lane.b32.xlu0 %v2115, 127
        %v2261 = vpop.permute.xlu0 %2260
        %2262 = vrot.lane.b32.xlu0 %v2117, 127
        %v2263 = vpop.permute.xlu0 %2262
        %2264 = vrot.lane.b32.xlu0 %v2119, 127
        %v2265 = vpop.permute.xlu0 %2264
        %2266 = vrot.lane.b32.xlu0 %v2121, 127
        %v2267 = vpop.permute.xlu0 %2266
        %2268 = vrot.lane.b32.xlu0 %v2123, 127
        %v2269 = vpop.permute.xlu0 %2268
        %2270 = vrot.lane.b32.xlu0 %v2125, 127
        %v2271 = vpop.permute.xlu0 %2270
        %2272 = vrot.lane.b32.xlu0 %v2127, 127
        %v2273 = vpop.permute.xlu0 %2272
        %2274 = vrot.lane.b32.xlu0 %v2129, 127
        %v2275 = vpop.permute.xlu0 %2274
        %2276 = vrot.lane.b32.xlu0 %v2131, 127
        %v2277 = vpop.permute.xlu0 %2276
        %2278 = vrot.lane.b32.xlu0 %v2133, 127
        %v2279 = vpop.permute.xlu0 %2278
        %2280 = vrot.lane.b32.xlu0 %v2135, 127
        %v2281 = vpop.permute.xlu0 %2280
        %2282 = vrot.lane.b32.xlu0 %v2137, 127
        %v2283 = vpop.permute.xlu0 %2282
        %2284 = vrot.lane.b32.xlu0 %v2139, 127
        %v2285 = vpop.permute.xlu0 %2284
        %2286 = vrot.lane.b32.xlu0 %v2141, 127
        %v2287 = vpop.permute.xlu0 %2286
        %2288 = vrot.lane.b32.xlu0 %v2143, 127
        %v2289 = vpop.permute.xlu0 %2288
        %2290 = vrot.lane.b32.xlu0 %v2145, 127
        %v2291 = vpop.permute.xlu0 %2290
        %2292 = vrot.lane.b32.xlu0 %v2147, 127
        %v2293 = vpop.permute.xlu0 %2292
        %2294 = vrot.lane.b32.xlu0 %v2149, 127
        %v2295 = vpop.permute.xlu0 %2294
        %2296 = vrot.lane.b32.xlu0 %v2151, 127
        %v2297 = vpop.permute.xlu0 %2296
        %2298 = vrot.lane.b32.xlu0 %v2153, 127
        %v2299 = vpop.permute.xlu0 %2298
        %2300 = vrot.lane.b32.xlu0 %v2155, 127
        %v2301 = vpop.permute.xlu0 %2300
        %2302 = vrot.lane.b32.xlu0 %v2157, 127
        %v2303 = vpop.permute.xlu0 %2302
        %2304 = vrot.lane.b32.xlu0 %v2159, 127
        %v2305 = vpop.permute.xlu0 %2304
        %2306 = vrot.lane.b32.xlu0 %v2161, 127
        %v2307 = vpop.permute.xlu0 %2306
        %2308 = vrot.lane.b32.xlu0 %v2163, 127
        %v2309 = vpop.permute.xlu0 %2308
        %2310 = vrot.lane.b32.xlu0 %v2160, 127
        %v2311 = vpop.permute.xlu0 %2310
        %2312 = vrot.lane.b32.xlu0 %v2162, 127
        %v2313 = vpop.permute.xlu0 %2312
        %2314 = vrot.lane.b32.xlu0 %v2166, 127
        %v2315 = vpop.permute.xlu0 %2314
        %2316 = vrot.lane.b32.xlu0 %v2169, 127
        %v2317 = vpop.permute.xlu0 %2316
        %2318 = vrot.lane.b32.xlu0 %v2171, 127
        %v2319 = vpop.permute.xlu0 %2318
        %2320 = vrot.lane.b32.xlu0 %v2173, 127
        %v2321 = vpop.permute.xlu0 %2320
        %2322 = vrot.lane.b32.xlu0 %v2175, 127
        %v2323 = vpop.permute.xlu0 %2322
        %2324 = vrot.lane.b32.xlu0 %v2177, 127
        %v2325 = vpop.permute.xlu0 %2324
        %2326 = vrot.lane.b32.xlu0 %v2179, 127
        %v2327 = vpop.permute.xlu0 %2326
        %2328 = vrot.lane.b32.xlu0 %v2181, 127
        %v2329 = vpop.permute.xlu0 %2328
        %2330 = vrot.lane.b32.xlu0 %v2183, 127
        %v2331 = vpop.permute.xlu0 %2330
        %2332 = vrot.lane.b32.xlu0 %v2185, 127
        %v2333 = vpop.permute.xlu0 %2332
        %2334 = vrot.lane.b32.xlu0 %v2187, 127
        %v2335 = vpop.permute.xlu0 %2334
        %2336 = vrot.lane.b32.xlu0 %v2189, 127
        %v2337 = vpop.permute.xlu0 %2336
        %2338 = vrot.lane.b32.xlu0 %v2191, 127
        %v2339 = vpop.permute.xlu0 %2338
        %2340 = vrot.lane.b32.xlu0 %v2193, 127
        %v2341 = vpop.permute.xlu0 %2340
        %2342 = vrot.lane.b32.xlu0 %v2195, 127
        %v2343 = vpop.permute.xlu0 %2342
        %2344 = vrot.lane.b32.xlu0 %v2197, 127
        %v2345 = vpop.permute.xlu0 %2344
        %2346 = vrot.lane.b32.xlu0 %v2199, 127
        %v2347 = vpop.permute.xlu0 %2346
        %2348 = vrot.lane.b32.xlu0 %v2201, 127
        %v2349 = vpop.permute.xlu0 %2348
        %2350 = vrot.lane.b32.xlu0 %v2203, 127
        %v2351 = vpop.permute.xlu0 %2350
        %2352 = vrot.lane.b32.xlu0 %v2205, 127
        %v2353 = vpop.permute.xlu0 %2352
        %2354 = vrot.lane.b32.xlu0 %v2207, 127
        %v2355 = vpop.permute.xlu0 %2354
        %2356 = vrot.lane.b32.xlu0 %v2209, 127
        %v2357 = vpop.permute.xlu0 %2356
        %2358 = vrot.lane.b32.xlu0 %v2211, 127
        %v2359 = vpop.permute.xlu0 %2358
        %2360 = vrot.lane.b32.xlu0 %v2213, 127
        %v2361 = vpop.permute.xlu0 %2360
        %2362 = vrot.lane.b32.xlu0 %v2215, 127
        %v2363 = vpop.permute.xlu0 %2362
        %2364 = vrot.lane.b32.xlu0 %v2217, 127
        %v2365 = vpop.permute.xlu0 %2364
        %2366 = vrot.lane.b32.xlu0 %v2219, 127
        %v2367 = vpop.permute.xlu0 %2366
        %2368 = vrot.lane.b32.xlu0 %v2221, 127
        %v2369 = vpop.permute.xlu0 %2368
        %2370 = vrot.lane.b32.xlu0 %v2223, 127
        %v2371 = vpop.permute.xlu0 %2370
        %2372 = vrot.lane.b32.xlu0 %v2225, 127
        %v2373 = vpop.permute.xlu0 %2372
        %2374 = vrot.lane.b32.xlu0 %v2227, 127
        %v2375 = vpop.permute.xlu0 %2374
        %2376 = vrot.lane.b32.xlu0 %v2229, 127
        %v2377 = vpop.permute.xlu0 %2376
        %2378 = vrot.lane.b32.xlu0 %v2231, 127
        %v2379 = vpop.permute.xlu0 %2378
        %2380 = vrot.lane.b32.xlu0 %v2233, 127
        %v2381 = vpop.permute.xlu0 %2380
        %2382 = vrot.lane.b32.xlu0 %v2235, 127
        %v2383 = vpop.permute.xlu0 %2382
        %2384 = vrot.lane.b32.xlu0 %v2237, 127
        %v2385 = vpop.permute.xlu0 %2384
        %2386 = vrot.lane.b32.xlu0 %v2234, 127
        %v2387 = vpop.permute.xlu0 %2386
        %2388 = vrot.lane.b32.xlu0 %v2236, 127
        %v2389 = vpop.permute.xlu0 %2388
        %v2390 = vsel %vm782, %v2239, %v2241
        %v2391 = vsel %vm782, %v2243, %v2245
        %v2392 = vsel %vm782, %v2247, %v2249
        %v2393 = vsel %vm782, %v2251, %v2253
        %v2394 = vsel %vm782, %v2255, %v2257
        %v2395 = vsel %vm782, %v2259, %v2261
        %v2396 = vsel %vm782, %v2263, %v2265
        %v2397 = vsel %vm782, %v2267, %v2269
        %v2398 = vsel %vm782, %v2271, %v2273
        %v2399 = vsel %vm782, %v2275, %v2277
        %v2400 = vsel %vm782, %v2279, %v2281
        %v2401 = vsel %vm782, %v2283, %v2285
        %v2402 = vsel %vm782, %v2287, %v2289
        %v2403 = vsel %vm782, %v2291, %v2293
        %v2404 = vsel %vm782, %v2295, %v2297
        %v2405 = vsel %vm782, %v2299, %v2301
        %v2406 = vsel %vm782, %v2303, %v2305
        %v2407 = vsel %vm782, %v2307, %v2309
        %v2408 = vsel %vm782, %v2311, %v2313
        %v2409 = vsel %vm782, %v2315, %v2317
        %v2410 = vsel %vm782, %v2319, %v2321
        %v2411 = vsel %vm782, %v2323, %v2325
        %v2412 = vsel %vm782, %v2327, %v2329
        %v2413 = vsel %vm782, %v2331, %v2333
        %v2414 = vsel %vm782, %v2335, %v2337
        %v2415 = vsel %vm782, %v2339, %v2341
        %v2416 = vsel %vm782, %v2343, %v2345
        %v2417 = vsel %vm782, %v2347, %v2349
        %v2418 = vsel %vm782, %v2351, %v2353
        %v2419 = vsel %vm782, %v2355, %v2357
        %v2420 = vsel %vm782, %v2359, %v2361
        %v2421 = vsel %vm782, %v2363, %v2365
        %v2422 = vsel %vm782, %v2367, %v2369
        %v2423 = vsel %vm782, %v2371, %v2373
        %v2424 = vsel %vm782, %v2375, %v2377
        %v2425 = vsel %vm782, %v2379, %v2381
        %v2426 = vsel %vm782, %v2383, %v2385
        %v2427 = vsel %vm782, %v2387, %v2389
        %v2504 = vadd.f32 %v1859, %v2390
        %v2505 = vadd.f32 %v1860, %v2241
        %v2506 = vadd.f32 %v1861, %v2391
        %v2507 = vadd.f32 %v1862, %v2245
        %v2508 = vadd.f32 %v1863, %v2392
        %v2509 = vadd.f32 %v1864, %v2249
        %v2510 = vadd.f32 %v1865, %v2393
        %v2511 = vadd.f32 %v1866, %v2253
        %v2512 = vadd.f32 %v1867, %v2394
        %v2513 = vadd.f32 %v1868, %v2257
        %v2514 = vadd.f32 %v1869, %v2395
        %v2515 = vadd.f32 %v1870, %v2261
        %v2516 = vadd.f32 %v1871, %v2396
        %v2517 = vadd.f32 %v1872, %v2265
        %v2518 = vadd.f32 %v1873, %v2397
        %v2519 = vadd.f32 %v1874, %v2269
        %v2520 = vadd.f32 %v1875, %v2398
        %v2521 = vadd.f32 %v1876, %v2273
        %v2522 = vadd.f32 %v1877, %v2399
        %v2523 = vadd.f32 %v1878, %v2277
        %v2524 = vadd.f32 %v1879, %v2400
        %v2525 = vadd.f32 %v1880, %v2281
        %v2526 = vadd.f32 %v1881, %v2401
        %v2527 = vadd.f32 %v1882, %v2285
        %v2528 = vadd.f32 %v1883, %v2402
        %v2529 = vadd.f32 %v1884, %v2289
        %v2530 = vadd.f32 %v1885, %v2403
        %v2531 = vadd.f32 %v1886, %v2293
        %v2532 = vadd.f32 %v1887, %v2404
        %v2533 = vadd.f32 %v1888, %v2297
        %v2534 = vadd.f32 %v1889, %v2405
        %v2535 = vadd.f32 %v1890, %v2301
        %v2536 = vadd.f32 %v1891, %v2406
        %v2537 = vadd.f32 %v1892, %v2305
        %v2538 = vadd.f32 %v1893, %v2407
        %v2539 = vadd.f32 %v1894, %v2309
        %v2540 = vadd.f32 %v1895, %v2408
        %v2541 = vadd.f32 %v1896, %v2313
        %v2542 = vadd.f32 %v1897, %v2409
        %v2543 = vadd.f32 %v1898, %v2317
        %v2544 = vadd.f32 %v1899, %v2410
        %v2545 = vadd.f32 %v1900, %v2321
        %v2546 = vadd.f32 %v1901, %v2411
        %v2547 = vadd.f32 %v1902, %v2325
        %v2548 = vadd.f32 %v1903, %v2412
        %v2549 = vadd.f32 %v1904, %v2329
        %v2550 = vadd.f32 %v1905, %v2413
        %v2551 = vadd.f32 %v1906, %v2333
        %v2552 = vadd.f32 %v1907, %v2414
        %v2553 = vadd.f32 %v1908, %v2337
        %v2554 = vadd.f32 %v1909, %v2415
        %v2555 = vadd.f32 %v1910, %v2341
        %v2556 = vadd.f32 %v1911, %v2416
        %v2557 = vadd.f32 %v1912, %v2345
        %v2558 = vadd.f32 %v1913, %v2417
        %v2559 = vadd.f32 %v1914, %v2349
        %v2560 = vadd.f32 %v1915, %v2418
        %v2561 = vadd.f32 %v1916, %v2353
        %v2562 = vadd.f32 %v1917, %v2419
        %v2563 = vadd.f32 %v1918, %v2357
        %v2564 = vadd.f32 %v1919, %v2420
        %v2565 = vadd.f32 %v1920, %v2361
        %v2566 = vadd.f32 %v1921, %v2421
        %v2567 = vadd.f32 %v1922, %v2365
        %v2568 = vadd.f32 %v1923, %v2422
        %v2569 = vadd.f32 %v1924, %v2369
        %v2570 = vadd.f32 %v1925, %v2423
        %v2571 = vadd.f32 %v1926, %v2373
        %v2572 = vadd.f32 %v1927, %v2424
        %v2573 = vadd.f32 %v1928, %v2377
        %v2574 = vadd.f32 %v1929, %v2425
        %v2575 = vadd.f32 %v1930, %v2381
        %v2576 = vadd.f32 %v1931, %v2426
        %v2577 = vadd.f32 %v1932, %v2385
        %v2578 = vadd.f32 %v1933, %v2427
        %v2579 = vadd.f32 %v1934, %v2389
        %s2580 = sadd.s32 %s320, 5
        %s2581 = sld [smem:[#allocation3 + %s2580]]
        %v2582 = vstv %s2581
        %v2583 = vmul.f32 %v2582, %v1471
        %v2584 = vmul.f32 %v2582, %v1472
        %v2585 = vmul.f32 %v2582, %v246
        %v2586 = vmul.f32 %v2582, %v247
        %v2587 = vmul.f32 %v2582, %v248
        %v2588 = vmul.f32 %v2582, %v249
        %v2589 = vmul.f32 %v2582, %v250
        %v2590 = vmul.f32 %v2582, %v251
        %v2591 = vmul.f32 %v2582, %v252
        %v2592 = vmul.f32 %v2582, %v253
        %v2593 = vmul.f32 %v2582, %v254
        %v2594 = vmul.f32 %v2582, %v255
        %v2595 = vmul.f32 %v2582, %v256
        %v2596 = vmul.f32 %v2582, %v257
        %v2597 = vmul.f32 %v2582, %v258
        %v2598 = vmul.f32 %v2582, %v259
        %v2599 = vmul.f32 %v2582, %v260
        %v2600 = vmul.f32 %v2582, %v261
        %v2601 = vmul.f32 %v2582, %v262
        %v2602 = vmul.f32 %v2582, %v263
        %v2603 = vmul.f32 %v2582, %v264
        %v2604 = vmul.f32 %v2582, %v265
        %v2605 = vmul.f32 %v2582, %v266
        %v2606 = vmul.f32 %v2582, %v267
        %v2607 = vmul.f32 %v2582, %v268
        %v2608 = vmul.f32 %v2582, %v269
        %v2609 = vmul.f32 %v2582, %v270
        %v2610 = vmul.f32 %v2582, %v271
        %v2611 = vmul.f32 %v2582, %v272
        %v2612 = vmul.f32 %v2582, %v273
        %v2613 = vmul.f32 %v2582, %v274
        %v2614 = vmul.f32 %v2582, %v275
        %v2615 = vmul.f32 %v2582, %v276
        %v2616 = vmul.f32 %v2582, %v277
        %v2617 = vmul.f32 %v2582, %v278
        %v2618 = vmul.f32 %v2582, %v279
        %v2619 = vmul.f32 %v2582, %v1473
        %v2620 = vmul.f32 %v2582, %v1474
        %v2621 = vmul.f32 %v2582, %v1475
        %v2622 = vmul.f32 %v2582, %v1476
        %v2623 = vmul.f32 %v2582, %v284
        %v2624 = vmul.f32 %v2582, %v285
        %v2625 = vmul.f32 %v2582, %v286
        %v2626 = vmul.f32 %v2582, %v287
        %v2627 = vmul.f32 %v2582, %v288
        %v2628 = vmul.f32 %v2582, %v289
        %v2629 = vmul.f32 %v2582, %v290
        %v2630 = vmul.f32 %v2582, %v291
        %v2631 = vmul.f32 %v2582, %v292
        %v2632 = vmul.f32 %v2582, %v293
        %v2633 = vmul.f32 %v2582, %v294
        %v2634 = vmul.f32 %v2582, %v295
        %v2635 = vmul.f32 %v2582, %v296
        %v2636 = vmul.f32 %v2582, %v297
        %v2637 = vmul.f32 %v2582, %v298
        %v2638 = vmul.f32 %v2582, %v299
        %v2639 = vmul.f32 %v2582, %v300
        %v2640 = vmul.f32 %v2582, %v301
        %v2641 = vmul.f32 %v2582, %v302
        %v2642 = vmul.f32 %v2582, %v303
        %v2643 = vmul.f32 %v2582, %v304
        %v2644 = vmul.f32 %v2582, %v305
        %v2645 = vmul.f32 %v2582, %v306
        %v2646 = vmul.f32 %v2582, %v307
        %v2647 = vmul.f32 %v2582, %v308
        %v2648 = vmul.f32 %v2582, %v309
        %v2649 = vmul.f32 %v2582, %v310
        %v2650 = vmul.f32 %v2582, %v311
        %v2651 = vmul.f32 %v2582, %v312
        %v2652 = vmul.f32 %v2582, %v313
        %v2653 = vmul.f32 %v2582, %v314
        %v2654 = vmul.f32 %v2582, %v315
        %v2655 = vmul.f32 %v2582, %v316
        %v2656 = vmul.f32 %v2582, %v317
        %v2657 = vmul.f32 %v2582, %v1477
        %v2658 = vmul.f32 %v2582, %v1478
        %v2735 = vrot.slane %v2583, 1
        %v2736 = vrot.slane %v2585, 1
        %v2737 = vsel %vm1634, %v2735, %v2736
        %v2738 = vrot.slane %v2584, 1
        %v2739 = vrot.slane %v2586, 1
        %v2740 = vsel %vm1634, %v2738, %v2739
        %v2741 = vrot.slane %v2587, 1
        %v2742 = vsel %vm1634, %v2736, %v2741
        %v2743 = vrot.slane %v2588, 1
        %v2744 = vsel %vm1634, %v2739, %v2743
        %v2745 = vrot.slane %v2589, 1
        %v2746 = vsel %vm1634, %v2741, %v2745
        %v2747 = vrot.slane %v2590, 1
        %v2748 = vsel %vm1634, %v2743, %v2747
        %v2749 = vrot.slane %v2591, 1
        %v2750 = vsel %vm1634, %v2745, %v2749
        %v2751 = vrot.slane %v2592, 1
        %v2752 = vsel %vm1634, %v2747, %v2751
        %v2753 = vrot.slane %v2593, 1
        %v2754 = vsel %vm1634, %v2749, %v2753
        %v2755 = vrot.slane %v2594, 1
        %v2756 = vsel %vm1634, %v2751, %v2755
        %v2757 = vrot.slane %v2595, 1
        %v2758 = vsel %vm1634, %v2753, %v2757
        %v2759 = vrot.slane %v2596, 1
        %v2760 = vsel %vm1634, %v2755, %v2759
        %v2761 = vrot.slane %v2597, 1
        %v2762 = vsel %vm1634, %v2757, %v2761
        %v2763 = vrot.slane %v2598, 1
        %v2764 = vsel %vm1634, %v2759, %v2763
        %v2765 = vrot.slane %v2599, 1
        %v2766 = vsel %vm1634, %v2761, %v2765
        %v2767 = vrot.slane %v2600, 1
        %v2768 = vsel %vm1634, %v2763, %v2767
        %v2769 = vrot.slane %v2601, 1
        %v2770 = vsel %vm1634, %v2765, %v2769
        %v2771 = vrot.slane %v2602, 1
        %v2772 = vsel %vm1634, %v2767, %v2771
        %v2773 = vrot.slane %v2603, 1
        %v2774 = vsel %vm1634, %v2769, %v2773
        %v2775 = vrot.slane %v2604, 1
        %v2776 = vsel %vm1634, %v2771, %v2775
        %v2777 = vrot.slane %v2605, 1
        %v2778 = vsel %vm1634, %v2773, %v2777
        %v2779 = vrot.slane %v2606, 1
        %v2780 = vsel %vm1634, %v2775, %v2779
        %v2781 = vrot.slane %v2607, 1
        %v2782 = vsel %vm1634, %v2777, %v2781
        %v2783 = vrot.slane %v2608, 1
        %v2784 = vsel %vm1634, %v2779, %v2783
        %v2785 = vrot.slane %v2609, 1
        %v2786 = vsel %vm1634, %v2781, %v2785
        %v2787 = vrot.slane %v2610, 1
        %v2788 = vsel %vm1634, %v2783, %v2787
        %v2789 = vrot.slane %v2611, 1
        %v2790 = vsel %vm1634, %v2785, %v2789
        %v2791 = vrot.slane %v2612, 1
        %v2792 = vsel %vm1634, %v2787, %v2791
        %v2793 = vrot.slane %v2613, 1
        %v2794 = vsel %vm1634, %v2789, %v2793
        %v2795 = vrot.slane %v2614, 1
        %v2796 = vsel %vm1634, %v2791, %v2795
        %v2797 = vrot.slane %v2615, 1
        %v2798 = vsel %vm1634, %v2793, %v2797
        %v2799 = vrot.slane %v2616, 1
        %v2800 = vsel %vm1634, %v2795, %v2799
        %v2801 = vrot.slane %v2617, 1
        %v2802 = vsel %vm1634, %v2797, %v2801
        %v2803 = vrot.slane %v2618, 1
        %v2804 = vsel %vm1634, %v2799, %v2803
        %v2805 = vrot.slane %v2619, 1
        %v2806 = vsel %vm1634, %v2801, %v2805
        %v2807 = vrot.slane %v2620, 1
        %v2808 = vsel %vm1634, %v2803, %v2807
        %v2809 = vrot.slane %v2621, 1
        %v2810 = vrot.slane %v2623, 1
        %v2811 = vsel %vm1634, %v2809, %v2810
        %v2812 = vrot.slane %v2622, 1
        %v2813 = vrot.slane %v2624, 1
        %v2814 = vsel %vm1634, %v2812, %v2813
        %v2815 = vrot.slane %v2625, 1
        %v2816 = vsel %vm1634, %v2810, %v2815
        %v2817 = vrot.slane %v2626, 1
        %v2818 = vsel %vm1634, %v2813, %v2817
        %v2819 = vrot.slane %v2627, 1
        %v2820 = vsel %vm1634, %v2815, %v2819
        %v2821 = vrot.slane %v2628, 1
        %v2822 = vsel %vm1634, %v2817, %v2821
        %v2823 = vrot.slane %v2629, 1
        %v2824 = vsel %vm1634, %v2819, %v2823
        %v2825 = vrot.slane %v2630, 1
        %v2826 = vsel %vm1634, %v2821, %v2825
        %v2827 = vrot.slane %v2631, 1
        %v2828 = vsel %vm1634, %v2823, %v2827
        %v2829 = vrot.slane %v2632, 1
        %v2830 = vsel %vm1634, %v2825, %v2829
        %v2831 = vrot.slane %v2633, 1
        %v2832 = vsel %vm1634, %v2827, %v2831
        %v2833 = vrot.slane %v2634, 1
        %v2834 = vsel %vm1634, %v2829, %v2833
        %v2835 = vrot.slane %v2635, 1
        %v2836 = vsel %vm1634, %v2831, %v2835
        %v2837 = vrot.slane %v2636, 1
        %v2838 = vsel %vm1634, %v2833, %v2837
        %v2839 = vrot.slane %v2637, 1
        %v2840 = vsel %vm1634, %v2835, %v2839
        %v2841 = vrot.slane %v2638, 1
        %v2842 = vsel %vm1634, %v2837, %v2841
        %v2843 = vrot.slane %v2639, 1
        %v2844 = vsel %vm1634, %v2839, %v2843
        %v2845 = vrot.slane %v2640, 1
        %v2846 = vsel %vm1634, %v2841, %v2845
        %v2847 = vrot.slane %v2641, 1
        %v2848 = vsel %vm1634, %v2843, %v2847
        %v2849 = vrot.slane %v2642, 1
        %v2850 = vsel %vm1634, %v2845, %v2849
        %v2851 = vrot.slane %v2643, 1
        %v2852 = vsel %vm1634, %v2847, %v2851
        %v2853 = vrot.slane %v2644, 1
        %v2854 = vsel %vm1634, %v2849, %v2853
        %v2855 = vrot.slane %v2645, 1
        %v2856 = vsel %vm1634, %v2851, %v2855
        %v2857 = vrot.slane %v2646, 1
        %v2858 = vsel %vm1634, %v2853, %v2857
        %v2859 = vrot.slane %v2647, 1
        %v2860 = vsel %vm1634, %v2855, %v2859
        %v2861 = vrot.slane %v2648, 1
        %v2862 = vsel %vm1634, %v2857, %v2861
        %v2863 = vrot.slane %v2649, 1
        %v2864 = vsel %vm1634, %v2859, %v2863
        %v2865 = vrot.slane %v2650, 1
        %v2866 = vsel %vm1634, %v2861, %v2865
        %v2867 = vrot.slane %v2651, 1
        %v2868 = vsel %vm1634, %v2863, %v2867
        %v2869 = vrot.slane %v2652, 1
        %v2870 = vsel %vm1634, %v2865, %v2869
        %v2871 = vrot.slane %v2653, 1
        %v2872 = vsel %vm1634, %v2867, %v2871
        %v2873 = vrot.slane %v2654, 1
        %v2874 = vsel %vm1634, %v2869, %v2873
        %v2875 = vrot.slane %v2655, 1
        %v2876 = vsel %vm1634, %v2871, %v2875
        %v2877 = vrot.slane %v2656, 1
        %v2878 = vsel %vm1634, %v2873, %v2877
        %v2879 = vrot.slane %v2657, 1
        %v2880 = vsel %vm1634, %v2875, %v2879
        %v2881 = vrot.slane %v2658, 1
        %v2882 = vsel %vm1634, %v2877, %v2881
        %2883 = vrot.lane.b32.xlu0 %v2737, 126
        %v2884 = vpop.permute.xlu0 %2883
        %2885 = vrot.lane.b32.xlu0 %v2740, 126
        %v2886 = vpop.permute.xlu0 %2885
        %2887 = vrot.lane.b32.xlu0 %v2742, 126
        %v2888 = vpop.permute.xlu0 %2887
        %2889 = vrot.lane.b32.xlu0 %v2744, 126
        %v2890 = vpop.permute.xlu0 %2889
        %2891 = vrot.lane.b32.xlu0 %v2746, 126
        %v2892 = vpop.permute.xlu0 %2891
        %2893 = vrot.lane.b32.xlu0 %v2748, 126
        %v2894 = vpop.permute.xlu0 %2893
        %2895 = vrot.lane.b32.xlu0 %v2750, 126
        %v2896 = vpop.permute.xlu0 %2895
        %2897 = vrot.lane.b32.xlu0 %v2752, 126
        %v2898 = vpop.permute.xlu0 %2897
        %2899 = vrot.lane.b32.xlu0 %v2754, 126
        %v2900 = vpop.permute.xlu0 %2899
        %2901 = vrot.lane.b32.xlu0 %v2756, 126
        %v2902 = vpop.permute.xlu0 %2901
        %2903 = vrot.lane.b32.xlu0 %v2758, 126
        %v2904 = vpop.permute.xlu0 %2903
        %2905 = vrot.lane.b32.xlu0 %v2760, 126
        %v2906 = vpop.permute.xlu0 %2905
        %2907 = vrot.lane.b32.xlu0 %v2762, 126
        %v2908 = vpop.permute.xlu0 %2907
        %2909 = vrot.lane.b32.xlu0 %v2764, 126
        %v2910 = vpop.permute.xlu0 %2909
        %2911 = vrot.lane.b32.xlu0 %v2766, 126
        %v2912 = vpop.permute.xlu0 %2911
        %2913 = vrot.lane.b32.xlu0 %v2768, 126
        %v2914 = vpop.permute.xlu0 %2913
        %2915 = vrot.lane.b32.xlu0 %v2770, 126
        %v2916 = vpop.permute.xlu0 %2915
        %2917 = vrot.lane.b32.xlu0 %v2772, 126
        %v2918 = vpop.permute.xlu0 %2917
        %2919 = vrot.lane.b32.xlu0 %v2774, 126
        %v2920 = vpop.permute.xlu0 %2919
        %2921 = vrot.lane.b32.xlu0 %v2776, 126
        %v2922 = vpop.permute.xlu0 %2921
        %2923 = vrot.lane.b32.xlu0 %v2778, 126
        %v2924 = vpop.permute.xlu0 %2923
        %2925 = vrot.lane.b32.xlu0 %v2780, 126
        %v2926 = vpop.permute.xlu0 %2925
        %2927 = vrot.lane.b32.xlu0 %v2782, 126
        %v2928 = vpop.permute.xlu0 %2927
        %2929 = vrot.lane.b32.xlu0 %v2784, 126
        %v2930 = vpop.permute.xlu0 %2929
        %2931 = vrot.lane.b32.xlu0 %v2786, 126
        %v2932 = vpop.permute.xlu0 %2931
        %2933 = vrot.lane.b32.xlu0 %v2788, 126
        %v2934 = vpop.permute.xlu0 %2933
        %2935 = vrot.lane.b32.xlu0 %v2790, 126
        %v2936 = vpop.permute.xlu0 %2935
        %2937 = vrot.lane.b32.xlu0 %v2792, 126
        %v2938 = vpop.permute.xlu0 %2937
        %2939 = vrot.lane.b32.xlu0 %v2794, 126
        %v2940 = vpop.permute.xlu0 %2939
        %2941 = vrot.lane.b32.xlu0 %v2796, 126
        %v2942 = vpop.permute.xlu0 %2941
        %2943 = vrot.lane.b32.xlu0 %v2798, 126
        %v2944 = vpop.permute.xlu0 %2943
        %2945 = vrot.lane.b32.xlu0 %v2800, 126
        %v2946 = vpop.permute.xlu0 %2945
        %2947 = vrot.lane.b32.xlu0 %v2802, 126
        %v2948 = vpop.permute.xlu0 %2947
        %2949 = vrot.lane.b32.xlu0 %v2804, 126
        %v2950 = vpop.permute.xlu0 %2949
        %2951 = vrot.lane.b32.xlu0 %v2806, 126
        %v2952 = vpop.permute.xlu0 %2951
        %2953 = vrot.lane.b32.xlu0 %v2808, 126
        %v2954 = vpop.permute.xlu0 %2953
        %2955 = vrot.lane.b32.xlu0 %v2805, 126
        %v2956 = vpop.permute.xlu0 %2955
        %2957 = vrot.lane.b32.xlu0 %v2807, 126
        %v2958 = vpop.permute.xlu0 %2957
        %2959 = vrot.lane.b32.xlu0 %v2811, 126
        %v2960 = vpop.permute.xlu0 %2959
        %2961 = vrot.lane.b32.xlu0 %v2814, 126
        %v2962 = vpop.permute.xlu0 %2961
        %2963 = vrot.lane.b32.xlu0 %v2816, 126
        %v2964 = vpop.permute.xlu0 %2963
        %2965 = vrot.lane.b32.xlu0 %v2818, 126
        %v2966 = vpop.permute.xlu0 %2965
        %2967 = vrot.lane.b32.xlu0 %v2820, 126
        %v2968 = vpop.permute.xlu0 %2967
        %2969 = vrot.lane.b32.xlu0 %v2822, 126
        %v2970 = vpop.permute.xlu0 %2969
        %2971 = vrot.lane.b32.xlu0 %v2824, 126
        %v2972 = vpop.permute.xlu0 %2971
        %2973 = vrot.lane.b32.xlu0 %v2826, 126
        %v2974 = vpop.permute.xlu0 %2973
        %2975 = vrot.lane.b32.xlu0 %v2828, 126
        %v2976 = vpop.permute.xlu0 %2975
        %2977 = vrot.lane.b32.xlu0 %v2830, 126
        %v2978 = vpop.permute.xlu0 %2977
        %2979 = vrot.lane.b32.xlu0 %v2832, 126
        %v2980 = vpop.permute.xlu0 %2979
        %2981 = vrot.lane.b32.xlu0 %v2834, 126
        %v2982 = vpop.permute.xlu0 %2981
        %2983 = vrot.lane.b32.xlu0 %v2836, 126
        %v2984 = vpop.permute.xlu0 %2983
        %2985 = vrot.lane.b32.xlu0 %v2838, 126
        %v2986 = vpop.permute.xlu0 %2985
        %2987 = vrot.lane.b32.xlu0 %v2840, 126
        %v2988 = vpop.permute.xlu0 %2987
        %2989 = vrot.lane.b32.xlu0 %v2842, 126
        %v2990 = vpop.permute.xlu0 %2989
        %2991 = vrot.lane.b32.xlu0 %v2844, 126
        %v2992 = vpop.permute.xlu0 %2991
        %2993 = vrot.lane.b32.xlu0 %v2846, 126
        %v2994 = vpop.permute.xlu0 %2993
        %2995 = vrot.lane.b32.xlu0 %v2848, 126
        %v2996 = vpop.permute.xlu0 %2995
        %2997 = vrot.lane.b32.xlu0 %v2850, 126
        %v2998 = vpop.permute.xlu0 %2997
        %2999 = vrot.lane.b32.xlu0 %v2852, 126
        %v3000 = vpop.permute.xlu0 %2999
        %3001 = vrot.lane.b32.xlu0 %v2854, 126
        %v3002 = vpop.permute.xlu0 %3001
        %3003 = vrot.lane.b32.xlu0 %v2856, 126
        %v3004 = vpop.permute.xlu0 %3003
        %3005 = vrot.lane.b32.xlu0 %v2858, 126
        %v3006 = vpop.permute.xlu0 %3005
        %3007 = vrot.lane.b32.xlu0 %v2860, 126
        %v3008 = vpop.permute.xlu0 %3007
        %3009 = vrot.lane.b32.xlu0 %v2862, 126
        %v3010 = vpop.permute.xlu0 %3009
        %3011 = vrot.lane.b32.xlu0 %v2864, 126
        %v3012 = vpop.permute.xlu0 %3011
        %3013 = vrot.lane.b32.xlu0 %v2866, 126
        %v3014 = vpop.permute.xlu0 %3013
        %3015 = vrot.lane.b32.xlu0 %v2868, 126
        %v3016 = vpop.permute.xlu0 %3015
        %3017 = vrot.lane.b32.xlu0 %v2870, 126
        %v3018 = vpop.permute.xlu0 %3017
        %3019 = vrot.lane.b32.xlu0 %v2872, 126
        %v3020 = vpop.permute.xlu0 %3019
        %3021 = vrot.lane.b32.xlu0 %v2874, 126
        %v3022 = vpop.permute.xlu0 %3021
        %3023 = vrot.lane.b32.xlu0 %v2876, 126
        %v3024 = vpop.permute.xlu0 %3023
        %3025 = vrot.lane.b32.xlu0 %v2878, 126
        %v3026 = vpop.permute.xlu0 %3025
        %3027 = vrot.lane.b32.xlu0 %v2880, 126
        %v3028 = vpop.permute.xlu0 %3027
        %3029 = vrot.lane.b32.xlu0 %v2882, 126
        %v3030 = vpop.permute.xlu0 %3029
        %3031 = vrot.lane.b32.xlu0 %v2879, 126
        %v3032 = vpop.permute.xlu0 %3031
        %3033 = vrot.lane.b32.xlu0 %v2881, 126
        %v3034 = vpop.permute.xlu0 %3033
        %v3035 = vsel %vm1280, %v2884, %v2886
        %v3036 = vsel %vm1280, %v2888, %v2890
        %v3037 = vsel %vm1280, %v2892, %v2894
        %v3038 = vsel %vm1280, %v2896, %v2898
        %v3039 = vsel %vm1280, %v2900, %v2902
        %v3040 = vsel %vm1280, %v2904, %v2906
        %v3041 = vsel %vm1280, %v2908, %v2910
        %v3042 = vsel %vm1280, %v2912, %v2914
        %v3043 = vsel %vm1280, %v2916, %v2918
        %v3044 = vsel %vm1280, %v2920, %v2922
        %v3045 = vsel %vm1280, %v2924, %v2926
        %v3046 = vsel %vm1280, %v2928, %v2930
        %v3047 = vsel %vm1280, %v2932, %v2934
        %v3048 = vsel %vm1280, %v2936, %v2938
        %v3049 = vsel %vm1280, %v2940, %v2942
        %v3050 = vsel %vm1280, %v2944, %v2946
        %v3051 = vsel %vm1280, %v2948, %v2950
        %v3052 = vsel %vm1280, %v2952, %v2954
        %v3053 = vsel %vm1280, %v2956, %v2958
        %v3054 = vsel %vm1280, %v2960, %v2962
        %v3055 = vsel %vm1280, %v2964, %v2966
        %v3056 = vsel %vm1280, %v2968, %v2970
        %v3057 = vsel %vm1280, %v2972, %v2974
        %v3058 = vsel %vm1280, %v2976, %v2978
        %v3059 = vsel %vm1280, %v2980, %v2982
        %v3060 = vsel %vm1280, %v2984, %v2986
        %v3061 = vsel %vm1280, %v2988, %v2990
        %v3062 = vsel %vm1280, %v2992, %v2994
        %v3063 = vsel %vm1280, %v2996, %v2998
        %v3064 = vsel %vm1280, %v3000, %v3002
        %v3065 = vsel %vm1280, %v3004, %v3006
        %v3066 = vsel %vm1280, %v3008, %v3010
        %v3067 = vsel %vm1280, %v3012, %v3014
        %v3068 = vsel %vm1280, %v3016, %v3018
        %v3069 = vsel %vm1280, %v3020, %v3022
        %v3070 = vsel %vm1280, %v3024, %v3026
        %v3071 = vsel %vm1280, %v3028, %v3030
        %v3072 = vsel %vm1280, %v3032, %v3034
        %v3149 = vadd.f32 %v2504, %v3035
        %v3150 = vadd.f32 %v2505, %v2886
        %v3151 = vadd.f32 %v2506, %v3036
        %v3152 = vadd.f32 %v2507, %v2890
        %v3153 = vadd.f32 %v2508, %v3037
        %v3154 = vadd.f32 %v2509, %v2894
        %v3155 = vadd.f32 %v2510, %v3038
        %v3156 = vadd.f32 %v2511, %v2898
        %v3157 = vadd.f32 %v2512, %v3039
        %v3158 = vadd.f32 %v2513, %v2902
        %v3159 = vadd.f32 %v2514, %v3040
        %v3160 = vadd.f32 %v2515, %v2906
        %v3161 = vadd.f32 %v2516, %v3041
        %v3162 = vadd.f32 %v2517, %v2910
        %v3163 = vadd.f32 %v2518, %v3042
        %v3164 = vadd.f32 %v2519, %v2914
        %v3165 = vadd.f32 %v2520, %v3043
        %v3166 = vadd.f32 %v2521, %v2918
        %v3167 = vadd.f32 %v2522, %v3044
        %v3168 = vadd.f32 %v2523, %v2922
        %v3169 = vadd.f32 %v2524, %v3045
        %v3170 = vadd.f32 %v2525, %v2926
        %v3171 = vadd.f32 %v2526, %v3046
        %v3172 = vadd.f32 %v2527, %v2930
        %v3173 = vadd.f32 %v2528, %v3047
        %v3174 = vadd.f32 %v2529, %v2934
        %v3175 = vadd.f32 %v2530, %v3048
        %v3176 = vadd.f32 %v2531, %v2938
        %v3177 = vadd.f32 %v2532, %v3049
        %v3178 = vadd.f32 %v2533, %v2942
        %v3179 = vadd.f32 %v2534, %v3050
        %v3180 = vadd.f32 %v2535, %v2946
        %v3181 = vadd.f32 %v2536, %v3051
        %v3182 = vadd.f32 %v2537, %v2950
        %v3183 = vadd.f32 %v2538, %v3052
        %v3184 = vadd.f32 %v2539, %v2954
        %v3185 = vadd.f32 %v2540, %v3053
        %v3186 = vadd.f32 %v2541, %v2958
        %v3187 = vadd.f32 %v2542, %v3054
        %v3188 = vadd.f32 %v2543, %v2962
        %v3189 = vadd.f32 %v2544, %v3055
        %v3190 = vadd.f32 %v2545, %v2966
        %v3191 = vadd.f32 %v2546, %v3056
        %v3192 = vadd.f32 %v2547, %v2970
        %v3193 = vadd.f32 %v2548, %v3057
        %v3194 = vadd.f32 %v2549, %v2974
        %v3195 = vadd.f32 %v2550, %v3058
        %v3196 = vadd.f32 %v2551, %v2978
        %v3197 = vadd.f32 %v2552, %v3059
        %v3198 = vadd.f32 %v2553, %v2982
        %v3199 = vadd.f32 %v2554, %v3060
        %v3200 = vadd.f32 %v2555, %v2986
        %v3201 = vadd.f32 %v2556, %v3061
        %v3202 = vadd.f32 %v2557, %v2990
        %v3203 = vadd.f32 %v2558, %v3062
        %v3204 = vadd.f32 %v2559, %v2994
        %v3205 = vadd.f32 %v2560, %v3063
        %v3206 = vadd.f32 %v2561, %v2998
        %v3207 = vadd.f32 %v2562, %v3064
        %v3208 = vadd.f32 %v2563, %v3002
        %v3209 = vadd.f32 %v2564, %v3065
        %v3210 = vadd.f32 %v2565, %v3006
        %v3211 = vadd.f32 %v2566, %v3066
        %v3212 = vadd.f32 %v2567, %v3010
        %v3213 = vadd.f32 %v2568, %v3067
        %v3214 = vadd.f32 %v2569, %v3014
        %v3215 = vadd.f32 %v2570, %v3068
        %v3216 = vadd.f32 %v2571, %v3018
        %v3217 = vadd.f32 %v2572, %v3069
        %v3218 = vadd.f32 %v2573, %v3022
        %v3219 = vadd.f32 %v2574, %v3070
        %v3220 = vadd.f32 %v2575, %v3026
        %v3221 = vadd.f32 %v2576, %v3071
        %v3222 = vadd.f32 %v2577, %v3030
        %v3223 = vadd.f32 %v2578, %v3072
        %v3224 = vadd.f32 %v2579, %v3034
        %v3225 = vld [vmem:[%s0] sm:$0xfc]
        %v3226 = vld [vmem:[%s0 + $0x8] sm:$0xfc]
        %v3227 = vld [vmem:[%s0 + $0x120] sm:$0x3f]
        %v3228 = vld [vmem:[%s0 + $0x128] sm:$0x3f]
        %v3229 = vld [vmem:[%s0 + $0x130] sm:$0xfc]
        %v3230 = vld [vmem:[%s0 + $0x138] sm:$0xfc]
        %v3231 = vld [vmem:[%s0 + $0x250] sm:$0x3f]
        %v3232 = vld [vmem:[%s0 + $0x258] sm:$0x3f]
        %s3233 = sadd.s32 %s320, 6
        %s3234 = sld [smem:[#allocation3 + %s3233]]
        %v3235 = vstv %s3234
        %v3236 = vmul.f32 %v3235, %v3225
        %v3237 = vmul.f32 %v3235, %v3226
        %v3238 = vmul.f32 %v3235, %v246
        %v3239 = vmul.f32 %v3235, %v247
        %v3240 = vmul.f32 %v3235, %v248
        %v3241 = vmul.f32 %v3235, %v249
        %v3242 = vmul.f32 %v3235, %v250
        %v3243 = vmul.f32 %v3235, %v251
        %v3244 = vmul.f32 %v3235, %v252
        %v3245 = vmul.f32 %v3235, %v253
        %v3246 = vmul.f32 %v3235, %v254
        %v3247 = vmul.f32 %v3235, %v255
        %v3248 = vmul.f32 %v3235, %v256
        %v3249 = vmul.f32 %v3235, %v257
        %v3250 = vmul.f32 %v3235, %v258
        %v3251 = vmul.f32 %v3235, %v259
        %v3252 = vmul.f32 %v3235, %v260
        %v3253 = vmul.f32 %v3235, %v261
        %v3254 = vmul.f32 %v3235, %v262
        %v3255 = vmul.f32 %v3235, %v263
        %v3256 = vmul.f32 %v3235, %v264
        %v3257 = vmul.f32 %v3235, %v265
        %v3258 = vmul.f32 %v3235, %v266
        %v3259 = vmul.f32 %v3235, %v267
        %v3260 = vmul.f32 %v3235, %v268
        %v3261 = vmul.f32 %v3235, %v269
        %v3262 = vmul.f32 %v3235, %v270
        %v3263 = vmul.f32 %v3235, %v271
        %v3264 = vmul.f32 %v3235, %v272
        %v3265 = vmul.f32 %v3235, %v273
        %v3266 = vmul.f32 %v3235, %v274
        %v3267 = vmul.f32 %v3235, %v275
        %v3268 = vmul.f32 %v3235, %v276
        %v3269 = vmul.f32 %v3235, %v277
        %v3270 = vmul.f32 %v3235, %v278
        %v3271 = vmul.f32 %v3235, %v279
        %v3272 = vmul.f32 %v3235, %v3227
        %v3273 = vmul.f32 %v3235, %v3228
        %v3274 = vmul.f32 %v3235, %v3229
        %v3275 = vmul.f32 %v3235, %v3230
        %v3276 = vmul.f32 %v3235, %v284
        %v3277 = vmul.f32 %v3235, %v285
        %v3278 = vmul.f32 %v3235, %v286
        %v3279 = vmul.f32 %v3235, %v287
        %v3280 = vmul.f32 %v3235, %v288
        %v3281 = vmul.f32 %v3235, %v289
        %v3282 = vmul.f32 %v3235, %v290
        %v3283 = vmul.f32 %v3235, %v291
        %v3284 = vmul.f32 %v3235, %v292
        %v3285 = vmul.f32 %v3235, %v293
        %v3286 = vmul.f32 %v3235, %v294
        %v3287 = vmul.f32 %v3235, %v295
        %v3288 = vmul.f32 %v3235, %v296
        %v3289 = vmul.f32 %v3235, %v297
        %v3290 = vmul.f32 %v3235, %v298
        %v3291 = vmul.f32 %v3235, %v299
        %v3292 = vmul.f32 %v3235, %v300
        %v3293 = vmul.f32 %v3235, %v301
        %v3294 = vmul.f32 %v3235, %v302
        %v3295 = vmul.f32 %v3235, %v303
        %v3296 = vmul.f32 %v3235, %v304
        %v3297 = vmul.f32 %v3235, %v305
        %v3298 = vmul.f32 %v3235, %v306
        %v3299 = vmul.f32 %v3235, %v307
        %v3300 = vmul.f32 %v3235, %v308
        %v3301 = vmul.f32 %v3235, %v309
        %v3302 = vmul.f32 %v3235, %v310
        %v3303 = vmul.f32 %v3235, %v311
        %v3304 = vmul.f32 %v3235, %v312
        %v3305 = vmul.f32 %v3235, %v313
        %v3306 = vmul.f32 %v3235, %v314
        %v3307 = vmul.f32 %v3235, %v315
        %v3308 = vmul.f32 %v3235, %v316
        %v3309 = vmul.f32 %v3235, %v317
        %v3310 = vmul.f32 %v3235, %v3231
        %v3311 = vmul.f32 %v3235, %v3232
        %vm3388 = vcmask 1045504
        %v3389 = vrot.slane %v3236, 2
        %v3390 = vrot.slane %v3238, 2
        %v3391 = vsel %vm3388, %v3389, %v3390
        %v3392 = vrot.slane %v3237, 2
        %v3393 = vrot.slane %v3239, 2
        %v3394 = vsel %vm3388, %v3392, %v3393
        %v3395 = vrot.slane %v3240, 2
        %v3396 = vsel %vm3388, %v3390, %v3395
        %v3397 = vrot.slane %v3241, 2
        %v3398 = vsel %vm3388, %v3393, %v3397
        %v3399 = vrot.slane %v3242, 2
        %v3400 = vsel %vm3388, %v3395, %v3399
        %v3401 = vrot.slane %v3243, 2
        %v3402 = vsel %vm3388, %v3397, %v3401
        %v3403 = vrot.slane %v3244, 2
        %v3404 = vsel %vm3388, %v3399, %v3403
        %v3405 = vrot.slane %v3245, 2
        %v3406 = vsel %vm3388, %v3401, %v3405
        %v3407 = vrot.slane %v3246, 2
        %v3408 = vsel %vm3388, %v3403, %v3407
        %v3409 = vrot.slane %v3247, 2
        %v3410 = vsel %vm3388, %v3405, %v3409
        %v3411 = vrot.slane %v3248, 2
        %v3412 = vsel %vm3388, %v3407, %v3411
        %v3413 = vrot.slane %v3249, 2
        %v3414 = vsel %vm3388, %v3409, %v3413
        %v3415 = vrot.slane %v3250, 2
        %v3416 = vsel %vm3388, %v3411, %v3415
        %v3417 = vrot.slane %v3251, 2
        %v3418 = vsel %vm3388, %v3413, %v3417
        %v3419 = vrot.slane %v3252, 2
        %v3420 = vsel %vm3388, %v3415, %v3419
        %v3421 = vrot.slane %v3253, 2
        %v3422 = vsel %vm3388, %v3417, %v3421
        %v3423 = vrot.slane %v3254, 2
        %v3424 = vsel %vm3388, %v3419, %v3423
        %v3425 = vrot.slane %v3255, 2
        %v3426 = vsel %vm3388, %v3421, %v3425
        %v3427 = vrot.slane %v3256, 2
        %v3428 = vsel %vm3388, %v3423, %v3427
        %v3429 = vrot.slane %v3257, 2
        %v3430 = vsel %vm3388, %v3425, %v3429
        %v3431 = vrot.slane %v3258, 2
        %v3432 = vsel %vm3388, %v3427, %v3431
        %v3433 = vrot.slane %v3259, 2
        %v3434 = vsel %vm3388, %v3429, %v3433
        %v3435 = vrot.slane %v3260, 2
        %v3436 = vsel %vm3388, %v3431, %v3435
        %v3437 = vrot.slane %v3261, 2
        %v3438 = vsel %vm3388, %v3433, %v3437
        %v3439 = vrot.slane %v3262, 2
        %v3440 = vsel %vm3388, %v3435, %v3439
        %v3441 = vrot.slane %v3263, 2
        %v3442 = vsel %vm3388, %v3437, %v3441
        %v3443 = vrot.slane %v3264, 2
        %v3444 = vsel %vm3388, %v3439, %v3443
        %v3445 = vrot.slane %v3265, 2
        %v3446 = vsel %vm3388, %v3441, %v3445
        %v3447 = vrot.slane %v3266, 2
        %v3448 = vsel %vm3388, %v3443, %v3447
        %v3449 = vrot.slane %v3267, 2
        %v3450 = vsel %vm3388, %v3445, %v3449
        %v3451 = vrot.slane %v3268, 2
        %v3452 = vsel %vm3388, %v3447, %v3451
        %v3453 = vrot.slane %v3269, 2
        %v3454 = vsel %vm3388, %v3449, %v3453
        %v3455 = vrot.slane %v3270, 2
        %v3456 = vsel %vm3388, %v3451, %v3455
        %v3457 = vrot.slane %v3271, 2
        %v3458 = vsel %vm3388, %v3453, %v3457
        %v3459 = vrot.slane %v3272, 2
        %v3460 = vsel %vm3388, %v3455, %v3459
        %v3461 = vrot.slane %v3273, 2
        %v3462 = vsel %vm3388, %v3457, %v3461
        %v3463 = vrot.slane %v3274, 2
        %v3464 = vrot.slane %v3276, 2
        %v3465 = vsel %vm3388, %v3463, %v3464
        %v3466 = vrot.slane %v3275, 2
        %v3467 = vrot.slane %v3277, 2
        %v3468 = vsel %vm3388, %v3466, %v3467
        %v3469 = vrot.slane %v3278, 2
        %v3470 = vsel %vm3388, %v3464, %v3469
        %v3471 = vrot.slane %v3279, 2
        %v3472 = vsel %vm3388, %v3467, %v3471
        %v3473 = vrot.slane %v3280, 2
        %v3474 = vsel %vm3388, %v3469, %v3473
        %v3475 = vrot.slane %v3281, 2
        %v3476 = vsel %vm3388, %v3471, %v3475
        %v3477 = vrot.slane %v3282, 2
        %v3478 = vsel %vm3388, %v3473, %v3477
        %v3479 = vrot.slane %v3283, 2
        %v3480 = vsel %vm3388, %v3475, %v3479
        %v3481 = vrot.slane %v3284, 2
        %v3482 = vsel %vm3388, %v3477, %v3481
        %v3483 = vrot.slane %v3285, 2
        %v3484 = vsel %vm3388, %v3479, %v3483
        %v3485 = vrot.slane %v3286, 2
        %v3486 = vsel %vm3388, %v3481, %v3485
        %v3487 = vrot.slane %v3287, 2
        %v3488 = vsel %vm3388, %v3483, %v3487
        %v3489 = vrot.slane %v3288, 2
        %v3490 = vsel %vm3388, %v3485, %v3489
        %v3491 = vrot.slane %v3289, 2
        %v3492 = vsel %vm3388, %v3487, %v3491
        %v3493 = vrot.slane %v3290, 2
        %v3494 = vsel %vm3388, %v3489, %v3493
        %v3495 = vrot.slane %v3291, 2
        %v3496 = vsel %vm3388, %v3491, %v3495
        %v3497 = vrot.slane %v3292, 2
        %v3498 = vsel %vm3388, %v3493, %v3497
        %v3499 = vrot.slane %v3293, 2
        %v3500 = vsel %vm3388, %v3495, %v3499
        %v3501 = vrot.slane %v3294, 2
        %v3502 = vsel %vm3388, %v3497, %v3501
        %v3503 = vrot.slane %v3295, 2
        %v3504 = vsel %vm3388, %v3499, %v3503
        %v3505 = vrot.slane %v3296, 2
        %v3506 = vsel %vm3388, %v3501, %v3505
        %v3507 = vrot.slane %v3297, 2
        %v3508 = vsel %vm3388, %v3503, %v3507
        %v3509 = vrot.slane %v3298, 2
        %v3510 = vsel %vm3388, %v3505, %v3509
        %v3511 = vrot.slane %v3299, 2
        %v3512 = vsel %vm3388, %v3507, %v3511
        %v3513 = vrot.slane %v3300, 2
        %v3514 = vsel %vm3388, %v3509, %v3513
        %v3515 = vrot.slane %v3301, 2
        %v3516 = vsel %vm3388, %v3511, %v3515
        %v3517 = vrot.slane %v3302, 2
        %v3518 = vsel %vm3388, %v3513, %v3517
        %v3519 = vrot.slane %v3303, 2
        %v3520 = vsel %vm3388, %v3515, %v3519
        %v3521 = vrot.slane %v3304, 2
        %v3522 = vsel %vm3388, %v3517, %v3521
        %v3523 = vrot.slane %v3305, 2
        %v3524 = vsel %vm3388, %v3519, %v3523
        %v3525 = vrot.slane %v3306, 2
        %v3526 = vsel %vm3388, %v3521, %v3525
        %v3527 = vrot.slane %v3307, 2
        %v3528 = vsel %vm3388, %v3523, %v3527
        %v3529 = vrot.slane %v3308, 2
        %v3530 = vsel %vm3388, %v3525, %v3529
        %v3531 = vrot.slane %v3309, 2
        %v3532 = vsel %vm3388, %v3527, %v3531
        %v3533 = vrot.slane %v3310, 2
        %v3534 = vsel %vm3388, %v3529, %v3533
        %v3535 = vrot.slane %v3311, 2
        %v3536 = vsel %vm3388, %v3531, %v3535
        %v3613 = vadd.f32 %v3149, %v3391
        %v3614 = vadd.f32 %v3150, %v3394
        %v3615 = vadd.f32 %v3151, %v3396
        %v3616 = vadd.f32 %v3152, %v3398
        %v3617 = vadd.f32 %v3153, %v3400
        %v3618 = vadd.f32 %v3154, %v3402
        %v3619 = vadd.f32 %v3155, %v3404
        %v3620 = vadd.f32 %v3156, %v3406
        %v3621 = vadd.f32 %v3157, %v3408
        %v3622 = vadd.f32 %v3158, %v3410
        %v3623 = vadd.f32 %v3159, %v3412
        %v3624 = vadd.f32 %v3160, %v3414
        %v3625 = vadd.f32 %v3161, %v3416
        %v3626 = vadd.f32 %v3162, %v3418
        %v3627 = vadd.f32 %v3163, %v3420
        %v3628 = vadd.f32 %v3164, %v3422
        %v3629 = vadd.f32 %v3165, %v3424
        %v3630 = vadd.f32 %v3166, %v3426
        %v3631 = vadd.f32 %v3167, %v3428
        %v3632 = vadd.f32 %v3168, %v3430
        %v3633 = vadd.f32 %v3169, %v3432
        %v3634 = vadd.f32 %v3170, %v3434
        %v3635 = vadd.f32 %v3171, %v3436
        %v3636 = vadd.f32 %v3172, %v3438
        %v3637 = vadd.f32 %v3173, %v3440
        %v3638 = vadd.f32 %v3174, %v3442
        %v3639 = vadd.f32 %v3175, %v3444
        %v3640 = vadd.f32 %v3176, %v3446
        %v3641 = vadd.f32 %v3177, %v3448
        %v3642 = vadd.f32 %v3178, %v3450
        %v3643 = vadd.f32 %v3179, %v3452
        %v3644 = vadd.f32 %v3180, %v3454
        %v3645 = vadd.f32 %v3181, %v3456
        %v3646 = vadd.f32 %v3182, %v3458
        %v3647 = vadd.f32 %v3183, %v3460
        %v3648 = vadd.f32 %v3184, %v3462
        %v3649 = vadd.f32 %v3185, %v3459
        %v3650 = vadd.f32 %v3186, %v3461
        %v3651 = vadd.f32 %v3187, %v3465
        %v3652 = vadd.f32 %v3188, %v3468
        %v3653 = vadd.f32 %v3189, %v3470
        %v3654 = vadd.f32 %v3190, %v3472
        %v3655 = vadd.f32 %v3191, %v3474
        %v3656 = vadd.f32 %v3192, %v3476
        %v3657 = vadd.f32 %v3193, %v3478
        %v3658 = vadd.f32 %v3194, %v3480
        %v3659 = vadd.f32 %v3195, %v3482
        %v3660 = vadd.f32 %v3196, %v3484
        %v3661 = vadd.f32 %v3197, %v3486
        %v3662 = vadd.f32 %v3198, %v3488
        %v3663 = vadd.f32 %v3199, %v3490
        %v3664 = vadd.f32 %v3200, %v3492
        %v3665 = vadd.f32 %v3201, %v3494
        %v3666 = vadd.f32 %v3202, %v3496
        %v3667 = vadd.f32 %v3203, %v3498
        %v3668 = vadd.f32 %v3204, %v3500
        %v3669 = vadd.f32 %v3205, %v3502
        %v3670 = vadd.f32 %v3206, %v3504
        %v3671 = vadd.f32 %v3207, %v3506
        %v3672 = vadd.f32 %v3208, %v3508
        %v3673 = vadd.f32 %v3209, %v3510
        %v3674 = vadd.f32 %v3210, %v3512
        %v3675 = vadd.f32 %v3211, %v3514
        %v3676 = vadd.f32 %v3212, %v3516
        %v3677 = vadd.f32 %v3213, %v3518
        %v3678 = vadd.f32 %v3214, %v3520
        %v3679 = vadd.f32 %v3215, %v3522
        %v3680 = vadd.f32 %v3216, %v3524
        %v3681 = vadd.f32 %v3217, %v3526
        %v3682 = vadd.f32 %v3218, %v3528
        %v3683 = vadd.f32 %v3219, %v3530
        %v3684 = vadd.f32 %v3220, %v3532
        %v3685 = vadd.f32 %v3221, %v3534
        %v3686 = vadd.f32 %v3222, %v3536
        %v3687 = vadd.f32 %v3223, %v3533
        %v3688 = vadd.f32 %v3224, %v3535
        %s3689 = sadd.s32 %s320, 7
        %s3690 = sld [smem:[#allocation3 + %s3689]]
        %v3691 = vstv %s3690
        %v3692 = vmul.f32 %v3691, %v3225
        %v3693 = vmul.f32 %v3691, %v3226
        %v3694 = vmul.f32 %v3691, %v246
        %v3695 = vmul.f32 %v3691, %v247
        %v3696 = vmul.f32 %v3691, %v248
        %v3697 = vmul.f32 %v3691, %v249
        %v3698 = vmul.f32 %v3691, %v250
        %v3699 = vmul.f32 %v3691, %v251
        %v3700 = vmul.f32 %v3691, %v252
        %v3701 = vmul.f32 %v3691, %v253
        %v3702 = vmul.f32 %v3691, %v254
        %v3703 = vmul.f32 %v3691, %v255
        %v3704 = vmul.f32 %v3691, %v256
        %v3705 = vmul.f32 %v3691, %v257
        %v3706 = vmul.f32 %v3691, %v258
        %v3707 = vmul.f32 %v3691, %v259
        %v3708 = vmul.f32 %v3691, %v260
        %v3709 = vmul.f32 %v3691, %v261
        %v3710 = vmul.f32 %v3691, %v262
        %v3711 = vmul.f32 %v3691, %v263
        %v3712 = vmul.f32 %v3691, %v264
        %v3713 = vmul.f32 %v3691, %v265
        %v3714 = vmul.f32 %v3691, %v266
        %v3715 = vmul.f32 %v3691, %v267
        %v3716 = vmul.f32 %v3691, %v268
        %v3717 = vmul.f32 %v3691, %v269
        %v3718 = vmul.f32 %v3691, %v270
        %v3719 = vmul.f32 %v3691, %v271
        %v3720 = vmul.f32 %v3691, %v272
        %v3721 = vmul.f32 %v3691, %v273
        %v3722 = vmul.f32 %v3691, %v274
        %v3723 = vmul.f32 %v3691, %v275
        %v3724 = vmul.f32 %v3691, %v276
        %v3725 = vmul.f32 %v3691, %v277
        %v3726 = vmul.f32 %v3691, %v278
        %v3727 = vmul.f32 %v3691, %v279
        %v3728 = vmul.f32 %v3691, %v3227
        %v3729 = vmul.f32 %v3691, %v3228
        %v3730 = vmul.f32 %v3691, %v3229
        %v3731 = vmul.f32 %v3691, %v3230
        %v3732 = vmul.f32 %v3691, %v284
        %v3733 = vmul.f32 %v3691, %v285
        %v3734 = vmul.f32 %v3691, %v286
        %v3735 = vmul.f32 %v3691, %v287
        %v3736 = vmul.f32 %v3691, %v288
        %v3737 = vmul.f32 %v3691, %v289
        %v3738 = vmul.f32 %v3691, %v290
        %v3739 = vmul.f32 %v3691, %v291
        %v3740 = vmul.f32 %v3691, %v292
        %v3741 = vmul.f32 %v3691, %v293
        %v3742 = vmul.f32 %v3691, %v294
        %v3743 = vmul.f32 %v3691, %v295
        %v3744 = vmul.f32 %v3691, %v296
        %v3745 = vmul.f32 %v3691, %v297
        %v3746 = vmul.f32 %v3691, %v298
        %v3747 = vmul.f32 %v3691, %v299
        %v3748 = vmul.f32 %v3691, %v300
        %v3749 = vmul.f32 %v3691, %v301
        %v3750 = vmul.f32 %v3691, %v302
        %v3751 = vmul.f32 %v3691, %v303
        %v3752 = vmul.f32 %v3691, %v304
        %v3753 = vmul.f32 %v3691, %v305
        %v3754 = vmul.f32 %v3691, %v306
        %v3755 = vmul.f32 %v3691, %v307
        %v3756 = vmul.f32 %v3691, %v308
        %v3757 = vmul.f32 %v3691, %v309
        %v3758 = vmul.f32 %v3691, %v310
        %v3759 = vmul.f32 %v3691, %v311
        %v3760 = vmul.f32 %v3691, %v312
        %v3761 = vmul.f32 %v3691, %v313
        %v3762 = vmul.f32 %v3691, %v314
        %v3763 = vmul.f32 %v3691, %v315
        %v3764 = vmul.f32 %v3691, %v316
        %v3765 = vmul.f32 %v3691, %v317
        %v3766 = vmul.f32 %v3691, %v3231
        %v3767 = vmul.f32 %v3691, %v3232
        %v3844 = vrot.slane %v3692, 2
        %v3845 = vrot.slane %v3694, 2
        %v3846 = vsel %vm3388, %v3844, %v3845
        %v3847 = vrot.slane %v3693, 2
        %v3848 = vrot.slane %v3695, 2
        %v3849 = vsel %vm3388, %v3847, %v3848
        %v3850 = vrot.slane %v3696, 2
        %v3851 = vsel %vm3388, %v3845, %v3850
        %v3852 = vrot.slane %v3697, 2
        %v3853 = vsel %vm3388, %v3848, %v3852
        %v3854 = vrot.slane %v3698, 2
        %v3855 = vsel %vm3388, %v3850, %v3854
        %v3856 = vrot.slane %v3699, 2
        %v3857 = vsel %vm3388, %v3852, %v3856
        %v3858 = vrot.slane %v3700, 2
        %v3859 = vsel %vm3388, %v3854, %v3858
        %v3860 = vrot.slane %v3701, 2
        %v3861 = vsel %vm3388, %v3856, %v3860
        %v3862 = vrot.slane %v3702, 2
        %v3863 = vsel %vm3388, %v3858, %v3862
        %v3864 = vrot.slane %v3703, 2
        %v3865 = vsel %vm3388, %v3860, %v3864
        %v3866 = vrot.slane %v3704, 2
        %v3867 = vsel %vm3388, %v3862, %v3866
        %v3868 = vrot.slane %v3705, 2
        %v3869 = vsel %vm3388, %v3864, %v3868
        %v3870 = vrot.slane %v3706, 2
        %v3871 = vsel %vm3388, %v3866, %v3870
        %v3872 = vrot.slane %v3707, 2
        %v3873 = vsel %vm3388, %v3868, %v3872
        %v3874 = vrot.slane %v3708, 2
        %v3875 = vsel %vm3388, %v3870, %v3874
        %v3876 = vrot.slane %v3709, 2
        %v3877 = vsel %vm3388, %v3872, %v3876
        %v3878 = vrot.slane %v3710, 2
        %v3879 = vsel %vm3388, %v3874, %v3878
        %v3880 = vrot.slane %v3711, 2
        %v3881 = vsel %vm3388, %v3876, %v3880
        %v3882 = vrot.slane %v3712, 2
        %v3883 = vsel %vm3388, %v3878, %v3882
        %v3884 = vrot.slane %v3713, 2
        %v3885 = vsel %vm3388, %v3880, %v3884
        %v3886 = vrot.slane %v3714, 2
        %v3887 = vsel %vm3388, %v3882, %v3886
        %v3888 = vrot.slane %v3715, 2
        %v3889 = vsel %vm3388, %v3884, %v3888
        %v3890 = vrot.slane %v3716, 2
        %v3891 = vsel %vm3388, %v3886, %v3890
        %v3892 = vrot.slane %v3717, 2
        %v3893 = vsel %vm3388, %v3888, %v3892
        %v3894 = vrot.slane %v3718, 2
        %v3895 = vsel %vm3388, %v3890, %v3894
        %v3896 = vrot.slane %v3719, 2
        %v3897 = vsel %vm3388, %v3892, %v3896
        %v3898 = vrot.slane %v3720, 2
        %v3899 = vsel %vm3388, %v3894, %v3898
        %v3900 = vrot.slane %v3721, 2
        %v3901 = vsel %vm3388, %v3896, %v3900
        %v3902 = vrot.slane %v3722, 2
        %v3903 = vsel %vm3388, %v3898, %v3902
        %v3904 = vrot.slane %v3723, 2
        %v3905 = vsel %vm3388, %v3900, %v3904
        %v3906 = vrot.slane %v3724, 2
        %v3907 = vsel %vm3388, %v3902, %v3906
        %v3908 = vrot.slane %v3725, 2
        %v3909 = vsel %vm3388, %v3904, %v3908
        %v3910 = vrot.slane %v3726, 2
        %v3911 = vsel %vm3388, %v3906, %v3910
        %v3912 = vrot.slane %v3727, 2
        %v3913 = vsel %vm3388, %v3908, %v3912
        %v3914 = vrot.slane %v3728, 2
        %v3915 = vsel %vm3388, %v3910, %v3914
        %v3916 = vrot.slane %v3729, 2
        %v3917 = vsel %vm3388, %v3912, %v3916
        %v3918 = vrot.slane %v3730, 2
        %v3919 = vrot.slane %v3732, 2
        %v3920 = vsel %vm3388, %v3918, %v3919
        %v3921 = vrot.slane %v3731, 2
        %v3922 = vrot.slane %v3733, 2
        %v3923 = vsel %vm3388, %v3921, %v3922
        %v3924 = vrot.slane %v3734, 2
        %v3925 = vsel %vm3388, %v3919, %v3924
        %v3926 = vrot.slane %v3735, 2
        %v3927 = vsel %vm3388, %v3922, %v3926
        %v3928 = vrot.slane %v3736, 2
        %v3929 = vsel %vm3388, %v3924, %v3928
        %v3930 = vrot.slane %v3737, 2
        %v3931 = vsel %vm3388, %v3926, %v3930
        %v3932 = vrot.slane %v3738, 2
        %v3933 = vsel %vm3388, %v3928, %v3932
        %v3934 = vrot.slane %v3739, 2
        %v3935 = vsel %vm3388, %v3930, %v3934
        %v3936 = vrot.slane %v3740, 2
        %v3937 = vsel %vm3388, %v3932, %v3936
        %v3938 = vrot.slane %v3741, 2
        %v3939 = vsel %vm3388, %v3934, %v3938
        %v3940 = vrot.slane %v3742, 2
        %v3941 = vsel %vm3388, %v3936, %v3940
        %v3942 = vrot.slane %v3743, 2
        %v3943 = vsel %vm3388, %v3938, %v3942
        %v3944 = vrot.slane %v3744, 2
        %v3945 = vsel %vm3388, %v3940, %v3944
        %v3946 = vrot.slane %v3745, 2
        %v3947 = vsel %vm3388, %v3942, %v3946
        %v3948 = vrot.slane %v3746, 2
        %v3949 = vsel %vm3388, %v3944, %v3948
        %v3950 = vrot.slane %v3747, 2
        %v3951 = vsel %vm3388, %v3946, %v3950
        %v3952 = vrot.slane %v3748, 2
        %v3953 = vsel %vm3388, %v3948, %v3952
        %v3954 = vrot.slane %v3749, 2
        %v3955 = vsel %vm3388, %v3950, %v3954
        %v3956 = vrot.slane %v3750, 2
        %v3957 = vsel %vm3388, %v3952, %v3956
        %v3958 = vrot.slane %v3751, 2
        %v3959 = vsel %vm3388, %v3954, %v3958
        %v3960 = vrot.slane %v3752, 2
        %v3961 = vsel %vm3388, %v3956, %v3960
        %v3962 = vrot.slane %v3753, 2
        %v3963 = vsel %vm3388, %v3958, %v3962
        %v3964 = vrot.slane %v3754, 2
        %v3965 = vsel %vm3388, %v3960, %v3964
        %v3966 = vrot.slane %v3755, 2
        %v3967 = vsel %vm3388, %v3962, %v3966
        %v3968 = vrot.slane %v3756, 2
        %v3969 = vsel %vm3388, %v3964, %v3968
        %v3970 = vrot.slane %v3757, 2
        %v3971 = vsel %vm3388, %v3966, %v3970
        %v3972 = vrot.slane %v3758, 2
        %v3973 = vsel %vm3388, %v3968, %v3972
        %v3974 = vrot.slane %v3759, 2
        %v3975 = vsel %vm3388, %v3970, %v3974
        %v3976 = vrot.slane %v3760, 2
        %v3977 = vsel %vm3388, %v3972, %v3976
        %v3978 = vrot.slane %v3761, 2
        %v3979 = vsel %vm3388, %v3974, %v3978
        %v3980 = vrot.slane %v3762, 2
        %v3981 = vsel %vm3388, %v3976, %v3980
        %v3982 = vrot.slane %v3763, 2
        %v3983 = vsel %vm3388, %v3978, %v3982
        %v3984 = vrot.slane %v3764, 2
        %v3985 = vsel %vm3388, %v3980, %v3984
        %v3986 = vrot.slane %v3765, 2
        %v3987 = vsel %vm3388, %v3982, %v3986
        %v3988 = vrot.slane %v3766, 2
        %v3989 = vsel %vm3388, %v3984, %v3988
        %v3990 = vrot.slane %v3767, 2
        %v3991 = vsel %vm3388, %v3986, %v3990
        %3992 = vrot.lane.b32.xlu0 %v3846, 127
        %v3993 = vpop.permute.xlu0 %3992
        %3994 = vrot.lane.b32.xlu0 %v3849, 127
        %v3995 = vpop.permute.xlu0 %3994
        %3996 = vrot.lane.b32.xlu0 %v3851, 127
        %v3997 = vpop.permute.xlu0 %3996
        %3998 = vrot.lane.b32.xlu0 %v3853, 127
        %v3999 = vpop.permute.xlu0 %3998
        %4000 = vrot.lane.b32.xlu0 %v3855, 127
        %v4001 = vpop.permute.xlu0 %4000
        %4002 = vrot.lane.b32.xlu0 %v3857, 127
        %v4003 = vpop.permute.xlu0 %4002
        %4004 = vrot.lane.b32.xlu0 %v3859, 127
        %v4005 = vpop.permute.xlu0 %4004
        %4006 = vrot.lane.b32.xlu0 %v3861, 127
        %v4007 = vpop.permute.xlu0 %4006
        %4008 = vrot.lane.b32.xlu0 %v3863, 127
        %v4009 = vpop.permute.xlu0 %4008
        %4010 = vrot.lane.b32.xlu0 %v3865, 127
        %v4011 = vpop.permute.xlu0 %4010
        %4012 = vrot.lane.b32.xlu0 %v3867, 127
        %v4013 = vpop.permute.xlu0 %4012
        %4014 = vrot.lane.b32.xlu0 %v3869, 127
        %v4015 = vpop.permute.xlu0 %4014
        %4016 = vrot.lane.b32.xlu0 %v3871, 127
        %v4017 = vpop.permute.xlu0 %4016
        %4018 = vrot.lane.b32.xlu0 %v3873, 127
        %v4019 = vpop.permute.xlu0 %4018
        %4020 = vrot.lane.b32.xlu0 %v3875, 127
        %v4021 = vpop.permute.xlu0 %4020
        %4022 = vrot.lane.b32.xlu0 %v3877, 127
        %v4023 = vpop.permute.xlu0 %4022
        %4024 = vrot.lane.b32.xlu0 %v3879, 127
        %v4025 = vpop.permute.xlu0 %4024
        %4026 = vrot.lane.b32.xlu0 %v3881, 127
        %v4027 = vpop.permute.xlu0 %4026
        %4028 = vrot.lane.b32.xlu0 %v3883, 127
        %v4029 = vpop.permute.xlu0 %4028
        %4030 = vrot.lane.b32.xlu0 %v3885, 127
        %v4031 = vpop.permute.xlu0 %4030
        %4032 = vrot.lane.b32.xlu0 %v3887, 127
        %v4033 = vpop.permute.xlu0 %4032
        %4034 = vrot.lane.b32.xlu0 %v3889, 127
        %v4035 = vpop.permute.xlu0 %4034
        %4036 = vrot.lane.b32.xlu0 %v3891, 127
        %v4037 = vpop.permute.xlu0 %4036
        %4038 = vrot.lane.b32.xlu0 %v3893, 127
        %v4039 = vpop.permute.xlu0 %4038
        %4040 = vrot.lane.b32.xlu0 %v3895, 127
        %v4041 = vpop.permute.xlu0 %4040
        %4042 = vrot.lane.b32.xlu0 %v3897, 127
        %v4043 = vpop.permute.xlu0 %4042
        %4044 = vrot.lane.b32.xlu0 %v3899, 127
        %v4045 = vpop.permute.xlu0 %4044
        %4046 = vrot.lane.b32.xlu0 %v3901, 127
        %v4047 = vpop.permute.xlu0 %4046
        %4048 = vrot.lane.b32.xlu0 %v3903, 127
        %v4049 = vpop.permute.xlu0 %4048
        %4050 = vrot.lane.b32.xlu0 %v3905, 127
        %v4051 = vpop.permute.xlu0 %4050
        %4052 = vrot.lane.b32.xlu0 %v3907, 127
        %v4053 = vpop.permute.xlu0 %4052
        %4054 = vrot.lane.b32.xlu0 %v3909, 127
        %v4055 = vpop.permute.xlu0 %4054
        %4056 = vrot.lane.b32.xlu0 %v3911, 127
        %v4057 = vpop.permute.xlu0 %4056
        %4058 = vrot.lane.b32.xlu0 %v3913, 127
        %v4059 = vpop.permute.xlu0 %4058
        %4060 = vrot.lane.b32.xlu0 %v3915, 127
        %v4061 = vpop.permute.xlu0 %4060
        %4062 = vrot.lane.b32.xlu0 %v3917, 127
        %v4063 = vpop.permute.xlu0 %4062
        %4064 = vrot.lane.b32.xlu0 %v3914, 127
        %v4065 = vpop.permute.xlu0 %4064
        %4066 = vrot.lane.b32.xlu0 %v3916, 127
        %v4067 = vpop.permute.xlu0 %4066
        %4068 = vrot.lane.b32.xlu0 %v3920, 127
        %v4069 = vpop.permute.xlu0 %4068
        %4070 = vrot.lane.b32.xlu0 %v3923, 127
        %v4071 = vpop.permute.xlu0 %4070
        %4072 = vrot.lane.b32.xlu0 %v3925, 127
        %v4073 = vpop.permute.xlu0 %4072
        %4074 = vrot.lane.b32.xlu0 %v3927, 127
        %v4075 = vpop.permute.xlu0 %4074
        %4076 = vrot.lane.b32.xlu0 %v3929, 127
        %v4077 = vpop.permute.xlu0 %4076
        %4078 = vrot.lane.b32.xlu0 %v3931, 127
        %v4079 = vpop.permute.xlu0 %4078
        %4080 = vrot.lane.b32.xlu0 %v3933, 127
        %v4081 = vpop.permute.xlu0 %4080
        %4082 = vrot.lane.b32.xlu0 %v3935, 127
        %v4083 = vpop.permute.xlu0 %4082
        %4084 = vrot.lane.b32.xlu0 %v3937, 127
        %v4085 = vpop.permute.xlu0 %4084
        %4086 = vrot.lane.b32.xlu0 %v3939, 127
        %v4087 = vpop.permute.xlu0 %4086
        %4088 = vrot.lane.b32.xlu0 %v3941, 127
        %v4089 = vpop.permute.xlu0 %4088
        %4090 = vrot.lane.b32.xlu0 %v3943, 127
        %v4091 = vpop.permute.xlu0 %4090
        %4092 = vrot.lane.b32.xlu0 %v3945, 127
        %v4093 = vpop.permute.xlu0 %4092
        %4094 = vrot.lane.b32.xlu0 %v3947, 127
        %v4095 = vpop.permute.xlu0 %4094
        %4096 = vrot.lane.b32.xlu0 %v3949, 127
        %v4097 = vpop.permute.xlu0 %4096
        %4098 = vrot.lane.b32.xlu0 %v3951, 127
        %v4099 = vpop.permute.xlu0 %4098
        %4100 = vrot.lane.b32.xlu0 %v3953, 127
        %v4101 = vpop.permute.xlu0 %4100
        %4102 = vrot.lane.b32.xlu0 %v3955, 127
        %v4103 = vpop.permute.xlu0 %4102
        %4104 = vrot.lane.b32.xlu0 %v3957, 127
        %v4105 = vpop.permute.xlu0 %4104
        %4106 = vrot.lane.b32.xlu0 %v3959, 127
        %v4107 = vpop.permute.xlu0 %4106
        %4108 = vrot.lane.b32.xlu0 %v3961, 127
        %v4109 = vpop.permute.xlu0 %4108
        %4110 = vrot.lane.b32.xlu0 %v3963, 127
        %v4111 = vpop.permute.xlu0 %4110
        %4112 = vrot.lane.b32.xlu0 %v3965, 127
        %v4113 = vpop.permute.xlu0 %4112
        %4114 = vrot.lane.b32.xlu0 %v3967, 127
        %v4115 = vpop.permute.xlu0 %4114
        %4116 = vrot.lane.b32.xlu0 %v3969, 127
        %v4117 = vpop.permute.xlu0 %4116
        %4118 = vrot.lane.b32.xlu0 %v3971, 127
        %v4119 = vpop.permute.xlu0 %4118
        %4120 = vrot.lane.b32.xlu0 %v3973, 127
        %v4121 = vpop.permute.xlu0 %4120
        %4122 = vrot.lane.b32.xlu0 %v3975, 127
        %v4123 = vpop.permute.xlu0 %4122
        %4124 = vrot.lane.b32.xlu0 %v3977, 127
        %v4125 = vpop.permute.xlu0 %4124
        %4126 = vrot.lane.b32.xlu0 %v3979, 127
        %v4127 = vpop.permute.xlu0 %4126
        %4128 = vrot.lane.b32.xlu0 %v3981, 127
        %v4129 = vpop.permute.xlu0 %4128
        %4130 = vrot.lane.b32.xlu0 %v3983, 127
        %v4131 = vpop.permute.xlu0 %4130
        %4132 = vrot.lane.b32.xlu0 %v3985, 127
        %v4133 = vpop.permute.xlu0 %4132
        %4134 = vrot.lane.b32.xlu0 %v3987, 127
        %v4135 = vpop.permute.xlu0 %4134
        %4136 = vrot.lane.b32.xlu0 %v3989, 127
        %v4137 = vpop.permute.xlu0 %4136
        %4138 = vrot.lane.b32.xlu0 %v3991, 127
        %v4139 = vpop.permute.xlu0 %4138
        %4140 = vrot.lane.b32.xlu0 %v3988, 127
        %v4141 = vpop.permute.xlu0 %4140
        %4142 = vrot.lane.b32.xlu0 %v3990, 127
        %v4143 = vpop.permute.xlu0 %4142
        %v4144 = vsel %vm782, %v3993, %v3995
        %v4145 = vsel %vm782, %v3997, %v3999
        %v4146 = vsel %vm782, %v4001, %v4003
        %v4147 = vsel %vm782, %v4005, %v4007
        %v4148 = vsel %vm782, %v4009, %v4011
        %v4149 = vsel %vm782, %v4013, %v4015
        %v4150 = vsel %vm782, %v4017, %v4019
        %v4151 = vsel %vm782, %v4021, %v4023
        %v4152 = vsel %vm782, %v4025, %v4027
        %v4153 = vsel %vm782, %v4029, %v4031
        %v4154 = vsel %vm782, %v4033, %v4035
        %v4155 = vsel %vm782, %v4037, %v4039
        %v4156 = vsel %vm782, %v4041, %v4043
        %v4157 = vsel %vm782, %v4045, %v4047
        %v4158 = vsel %vm782, %v4049, %v4051
        %v4159 = vsel %vm782, %v4053, %v4055
        %v4160 = vsel %vm782, %v4057, %v4059
        %v4161 = vsel %vm782, %v4061, %v4063
        %v4162 = vsel %vm782, %v4065, %v4067
        %v4163 = vsel %vm782, %v4069, %v4071
        %v4164 = vsel %vm782, %v4073, %v4075
        %v4165 = vsel %vm782, %v4077, %v4079
        %v4166 = vsel %vm782, %v4081, %v4083
        %v4167 = vsel %vm782, %v4085, %v4087
        %v4168 = vsel %vm782, %v4089, %v4091
        %v4169 = vsel %vm782, %v4093, %v4095
        %v4170 = vsel %vm782, %v4097, %v4099
        %v4171 = vsel %vm782, %v4101, %v4103
        %v4172 = vsel %vm782, %v4105, %v4107
        %v4173 = vsel %vm782, %v4109, %v4111
        %v4174 = vsel %vm782, %v4113, %v4115
        %v4175 = vsel %vm782, %v4117, %v4119
        %v4176 = vsel %vm782, %v4121, %v4123
        %v4177 = vsel %vm782, %v4125, %v4127
        %v4178 = vsel %vm782, %v4129, %v4131
        %v4179 = vsel %vm782, %v4133, %v4135
        %v4180 = vsel %vm782, %v4137, %v4139
        %v4181 = vsel %vm782, %v4141, %v4143
        %v4258 = vadd.f32 %v3613, %v4144
        %v4259 = vadd.f32 %v3614, %v3995
        %v4260 = vadd.f32 %v3615, %v4145
        %v4261 = vadd.f32 %v3616, %v3999
        %v4262 = vadd.f32 %v3617, %v4146
        %v4263 = vadd.f32 %v3618, %v4003
        %v4264 = vadd.f32 %v3619, %v4147
        %v4265 = vadd.f32 %v3620, %v4007
        %v4266 = vadd.f32 %v3621, %v4148
        %v4267 = vadd.f32 %v3622, %v4011
        %v4268 = vadd.f32 %v3623, %v4149
        %v4269 = vadd.f32 %v3624, %v4015
        %v4270 = vadd.f32 %v3625, %v4150
        %v4271 = vadd.f32 %v3626, %v4019
        %v4272 = vadd.f32 %v3627, %v4151
        %v4273 = vadd.f32 %v3628, %v4023
        %v4274 = vadd.f32 %v3629, %v4152
        %v4275 = vadd.f32 %v3630, %v4027
        %v4276 = vadd.f32 %v3631, %v4153
        %v4277 = vadd.f32 %v3632, %v4031
        %v4278 = vadd.f32 %v3633, %v4154
        %v4279 = vadd.f32 %v3634, %v4035
        %v4280 = vadd.f32 %v3635, %v4155
        %v4281 = vadd.f32 %v3636, %v4039
        %v4282 = vadd.f32 %v3637, %v4156
        %v4283 = vadd.f32 %v3638, %v4043
        %v4284 = vadd.f32 %v3639, %v4157
        %v4285 = vadd.f32 %v3640, %v4047
        %v4286 = vadd.f32 %v3641, %v4158
        %v4287 = vadd.f32 %v3642, %v4051
        %v4288 = vadd.f32 %v3643, %v4159
        %v4289 = vadd.f32 %v3644, %v4055
        %v4290 = vadd.f32 %v3645, %v4160
        %v4291 = vadd.f32 %v3646, %v4059
        %v4292 = vadd.f32 %v3647, %v4161
        %v4293 = vadd.f32 %v3648, %v4063
        %v4294 = vadd.f32 %v3649, %v4162
        %v4295 = vadd.f32 %v3650, %v4067
        %v4296 = vadd.f32 %v3651, %v4163
        %v4297 = vadd.f32 %v3652, %v4071
        %v4298 = vadd.f32 %v3653, %v4164
        %v4299 = vadd.f32 %v3654, %v4075
        %v4300 = vadd.f32 %v3655, %v4165
        %v4301 = vadd.f32 %v3656, %v4079
        %v4302 = vadd.f32 %v3657, %v4166
        %v4303 = vadd.f32 %v3658, %v4083
        %v4304 = vadd.f32 %v3659, %v4167
        %v4305 = vadd.f32 %v3660, %v4087
        %v4306 = vadd.f32 %v3661, %v4168
        %v4307 = vadd.f32 %v3662, %v4091
        %v4308 = vadd.f32 %v3663, %v4169
        %v4309 = vadd.f32 %v3664, %v4095
        %v4310 = vadd.f32 %v3665, %v4170
        %v4311 = vadd.f32 %v3666, %v4099
        %v4312 = vadd.f32 %v3667, %v4171
        %v4313 = vadd.f32 %v3668, %v4103
        %v4314 = vadd.f32 %v3669, %v4172
        %v4315 = vadd.f32 %v3670, %v4107
        %v4316 = vadd.f32 %v3671, %v4173
        %v4317 = vadd.f32 %v3672, %v4111
        %v4318 = vadd.f32 %v3673, %v4174
        %v4319 = vadd.f32 %v3674, %v4115
        %v4320 = vadd.f32 %v3675, %v4175
        %v4321 = vadd.f32 %v3676, %v4119
        %v4322 = vadd.f32 %v3677, %v4176
        %v4323 = vadd.f32 %v3678, %v4123
        %v4324 = vadd.f32 %v3679, %v4177
        %v4325 = vadd.f32 %v3680, %v4127
        %v4326 = vadd.f32 %v3681, %v4178
        %v4327 = vadd.f32 %v3682, %v4131
        %v4328 = vadd.f32 %v3683, %v4179
        %v4329 = vadd.f32 %v3684, %v4135
        %v4330 = vadd.f32 %v3685, %v4180
        %v4331 = vadd.f32 %v3686, %v4139
        %v4332 = vadd.f32 %v3687, %v4181
        %v4333 = vadd.f32 %v3688, %v4143
        %s4334 = sadd.s32 %s320, 8
        %s4335 = sld [smem:[#allocation3 + %s4334]]
        %v4336 = vstv %s4335
        %v4337 = vmul.f32 %v4336, %v3225
        %v4338 = vmul.f32 %v4336, %v3226
        %v4339 = vmul.f32 %v4336, %v246
        %v4340 = vmul.f32 %v4336, %v247
        %v4341 = vmul.f32 %v4336, %v248
        %v4342 = vmul.f32 %v4336, %v249
        %v4343 = vmul.f32 %v4336, %v250
        %v4344 = vmul.f32 %v4336, %v251
        %v4345 = vmul.f32 %v4336, %v252
        %v4346 = vmul.f32 %v4336, %v253
        %v4347 = vmul.f32 %v4336, %v254
        %v4348 = vmul.f32 %v4336, %v255
        %v4349 = vmul.f32 %v4336, %v256
        %v4350 = vmul.f32 %v4336, %v257
        %v4351 = vmul.f32 %v4336, %v258
        %v4352 = vmul.f32 %v4336, %v259
        %v4353 = vmul.f32 %v4336, %v260
        %v4354 = vmul.f32 %v4336, %v261
        %v4355 = vmul.f32 %v4336, %v262
        %v4356 = vmul.f32 %v4336, %v263
        %v4357 = vmul.f32 %v4336, %v264
        %v4358 = vmul.f32 %v4336, %v265
        %v4359 = vmul.f32 %v4336, %v266
        %v4360 = vmul.f32 %v4336, %v267
        %v4361 = vmul.f32 %v4336, %v268
        %v4362 = vmul.f32 %v4336, %v269
        %v4363 = vmul.f32 %v4336, %v270
        %v4364 = vmul.f32 %v4336, %v271
        %v4365 = vmul.f32 %v4336, %v272
        %v4366 = vmul.f32 %v4336, %v273
        %v4367 = vmul.f32 %v4336, %v274
        %v4368 = vmul.f32 %v4336, %v275
        %v4369 = vmul.f32 %v4336, %v276
        %v4370 = vmul.f32 %v4336, %v277
        %v4371 = vmul.f32 %v4336, %v278
        %v4372 = vmul.f32 %v4336, %v279
        %v4373 = vmul.f32 %v4336, %v3227
        %v4374 = vmul.f32 %v4336, %v3228
        %v4375 = vmul.f32 %v4336, %v3229
        %v4376 = vmul.f32 %v4336, %v3230
        %v4377 = vmul.f32 %v4336, %v284
        %v4378 = vmul.f32 %v4336, %v285
        %v4379 = vmul.f32 %v4336, %v286
        %v4380 = vmul.f32 %v4336, %v287
        %v4381 = vmul.f32 %v4336, %v288
        %v4382 = vmul.f32 %v4336, %v289
        %v4383 = vmul.f32 %v4336, %v290
        %v4384 = vmul.f32 %v4336, %v291
        %v4385 = vmul.f32 %v4336, %v292
        %v4386 = vmul.f32 %v4336, %v293
        %v4387 = vmul.f32 %v4336, %v294
        %v4388 = vmul.f32 %v4336, %v295
        %v4389 = vmul.f32 %v4336, %v296
        %v4390 = vmul.f32 %v4336, %v297
        %v4391 = vmul.f32 %v4336, %v298
        %v4392 = vmul.f32 %v4336, %v299
        %v4393 = vmul.f32 %v4336, %v300
        %v4394 = vmul.f32 %v4336, %v301
        %v4395 = vmul.f32 %v4336, %v302
        %v4396 = vmul.f32 %v4336, %v303
        %v4397 = vmul.f32 %v4336, %v304
        %v4398 = vmul.f32 %v4336, %v305
        %v4399 = vmul.f32 %v4336, %v306
        %v4400 = vmul.f32 %v4336, %v307
        %v4401 = vmul.f32 %v4336, %v308
        %v4402 = vmul.f32 %v4336, %v309
        %v4403 = vmul.f32 %v4336, %v310
        %v4404 = vmul.f32 %v4336, %v311
        %v4405 = vmul.f32 %v4336, %v312
        %v4406 = vmul.f32 %v4336, %v313
        %v4407 = vmul.f32 %v4336, %v314
        %v4408 = vmul.f32 %v4336, %v315
        %v4409 = vmul.f32 %v4336, %v316
        %v4410 = vmul.f32 %v4336, %v317
        %v4411 = vmul.f32 %v4336, %v3231
        %v4412 = vmul.f32 %v4336, %v3232
        %v4489 = vrot.slane %v4337, 2
        %v4490 = vrot.slane %v4339, 2
        %v4491 = vsel %vm3388, %v4489, %v4490
        %v4492 = vrot.slane %v4338, 2
        %v4493 = vrot.slane %v4340, 2
        %v4494 = vsel %vm3388, %v4492, %v4493
        %v4495 = vrot.slane %v4341, 2
        %v4496 = vsel %vm3388, %v4490, %v4495
        %v4497 = vrot.slane %v4342, 2
        %v4498 = vsel %vm3388, %v4493, %v4497
        %v4499 = vrot.slane %v4343, 2
        %v4500 = vsel %vm3388, %v4495, %v4499
        %v4501 = vrot.slane %v4344, 2
        %v4502 = vsel %vm3388, %v4497, %v4501
        %v4503 = vrot.slane %v4345, 2
        %v4504 = vsel %vm3388, %v4499, %v4503
        %v4505 = vrot.slane %v4346, 2
        %v4506 = vsel %vm3388, %v4501, %v4505
        %v4507 = vrot.slane %v4347, 2
        %v4508 = vsel %vm3388, %v4503, %v4507
        %v4509 = vrot.slane %v4348, 2
        %v4510 = vsel %vm3388, %v4505, %v4509
        %v4511 = vrot.slane %v4349, 2
        %v4512 = vsel %vm3388, %v4507, %v4511
        %v4513 = vrot.slane %v4350, 2
        %v4514 = vsel %vm3388, %v4509, %v4513
        %v4515 = vrot.slane %v4351, 2
        %v4516 = vsel %vm3388, %v4511, %v4515
        %v4517 = vrot.slane %v4352, 2
        %v4518 = vsel %vm3388, %v4513, %v4517
        %v4519 = vrot.slane %v4353, 2
        %v4520 = vsel %vm3388, %v4515, %v4519
        %v4521 = vrot.slane %v4354, 2
        %v4522 = vsel %vm3388, %v4517, %v4521
        %v4523 = vrot.slane %v4355, 2
        %v4524 = vsel %vm3388, %v4519, %v4523
        %v4525 = vrot.slane %v4356, 2
        %v4526 = vsel %vm3388, %v4521, %v4525
        %v4527 = vrot.slane %v4357, 2
        %v4528 = vsel %vm3388, %v4523, %v4527
        %v4529 = vrot.slane %v4358, 2
        %v4530 = vsel %vm3388, %v4525, %v4529
        %v4531 = vrot.slane %v4359, 2
        %v4532 = vsel %vm3388, %v4527, %v4531
        %v4533 = vrot.slane %v4360, 2
        %v4534 = vsel %vm3388, %v4529, %v4533
        %v4535 = vrot.slane %v4361, 2
        %v4536 = vsel %vm3388, %v4531, %v4535
        %v4537 = vrot.slane %v4362, 2
        %v4538 = vsel %vm3388, %v4533, %v4537
        %v4539 = vrot.slane %v4363, 2
        %v4540 = vsel %vm3388, %v4535, %v4539
        %v4541 = vrot.slane %v4364, 2
        %v4542 = vsel %vm3388, %v4537, %v4541
        %v4543 = vrot.slane %v4365, 2
        %v4544 = vsel %vm3388, %v4539, %v4543
        %v4545 = vrot.slane %v4366, 2
        %v4546 = vsel %vm3388, %v4541, %v4545
        %v4547 = vrot.slane %v4367, 2
        %v4548 = vsel %vm3388, %v4543, %v4547
        %v4549 = vrot.slane %v4368, 2
        %v4550 = vsel %vm3388, %v4545, %v4549
        %v4551 = vrot.slane %v4369, 2
        %v4552 = vsel %vm3388, %v4547, %v4551
        %v4553 = vrot.slane %v4370, 2
        %v4554 = vsel %vm3388, %v4549, %v4553
        %v4555 = vrot.slane %v4371, 2
        %v4556 = vsel %vm3388, %v4551, %v4555
        %v4557 = vrot.slane %v4372, 2
        %v4558 = vsel %vm3388, %v4553, %v4557
        %v4559 = vrot.slane %v4373, 2
        %v4560 = vsel %vm3388, %v4555, %v4559
        %v4561 = vrot.slane %v4374, 2
        %v4562 = vsel %vm3388, %v4557, %v4561
        %v4563 = vrot.slane %v4375, 2
        %v4564 = vrot.slane %v4377, 2
        %v4565 = vsel %vm3388, %v4563, %v4564
        %v4566 = vrot.slane %v4376, 2
        %v4567 = vrot.slane %v4378, 2
        %v4568 = vsel %vm3388, %v4566, %v4567
        %v4569 = vrot.slane %v4379, 2
        %v4570 = vsel %vm3388, %v4564, %v4569
        %v4571 = vrot.slane %v4380, 2
        %v4572 = vsel %vm3388, %v4567, %v4571
        %v4573 = vrot.slane %v4381, 2
        %v4574 = vsel %vm3388, %v4569, %v4573
        %v4575 = vrot.slane %v4382, 2
        %v4576 = vsel %vm3388, %v4571, %v4575
        %v4577 = vrot.slane %v4383, 2
        %v4578 = vsel %vm3388, %v4573, %v4577
        %v4579 = vrot.slane %v4384, 2
        %v4580 = vsel %vm3388, %v4575, %v4579
        %v4581 = vrot.slane %v4385, 2
        %v4582 = vsel %vm3388, %v4577, %v4581
        %v4583 = vrot.slane %v4386, 2
        %v4584 = vsel %vm3388, %v4579, %v4583
        %v4585 = vrot.slane %v4387, 2
        %v4586 = vsel %vm3388, %v4581, %v4585
        %v4587 = vrot.slane %v4388, 2
        %v4588 = vsel %vm3388, %v4583, %v4587
        %v4589 = vrot.slane %v4389, 2
        %v4590 = vsel %vm3388, %v4585, %v4589
        %v4591 = vrot.slane %v4390, 2
        %v4592 = vsel %vm3388, %v4587, %v4591
        %v4593 = vrot.slane %v4391, 2
        %v4594 = vsel %vm3388, %v4589, %v4593
        %v4595 = vrot.slane %v4392, 2
        %v4596 = vsel %vm3388, %v4591, %v4595
        %v4597 = vrot.slane %v4393, 2
        %v4598 = vsel %vm3388, %v4593, %v4597
        %v4599 = vrot.slane %v4394, 2
        %v4600 = vsel %vm3388, %v4595, %v4599
        %v4601 = vrot.slane %v4395, 2
        %v4602 = vsel %vm3388, %v4597, %v4601
        %v4603 = vrot.slane %v4396, 2
        %v4604 = vsel %vm3388, %v4599, %v4603
        %v4605 = vrot.slane %v4397, 2
        %v4606 = vsel %vm3388, %v4601, %v4605
        %v4607 = vrot.slane %v4398, 2
        %v4608 = vsel %vm3388, %v4603, %v4607
        %v4609 = vrot.slane %v4399, 2
        %v4610 = vsel %vm3388, %v4605, %v4609
        %v4611 = vrot.slane %v4400, 2
        %v4612 = vsel %vm3388, %v4607, %v4611
        %v4613 = vrot.slane %v4401, 2
        %v4614 = vsel %vm3388, %v4609, %v4613
        %v4615 = vrot.slane %v4402, 2
        %v4616 = vsel %vm3388, %v4611, %v4615
        %v4617 = vrot.slane %v4403, 2
        %v4618 = vsel %vm3388, %v4613, %v4617
        %v4619 = vrot.slane %v4404, 2
        %v4620 = vsel %vm3388, %v4615, %v4619
        %v4621 = vrot.slane %v4405, 2
        %v4622 = vsel %vm3388, %v4617, %v4621
        %v4623 = vrot.slane %v4406, 2
        %v4624 = vsel %vm3388, %v4619, %v4623
        %v4625 = vrot.slane %v4407, 2
        %v4626 = vsel %vm3388, %v4621, %v4625
        %v4627 = vrot.slane %v4408, 2
        %v4628 = vsel %vm3388, %v4623, %v4627
        %v4629 = vrot.slane %v4409, 2
        %v4630 = vsel %vm3388, %v4625, %v4629
        %v4631 = vrot.slane %v4410, 2
        %v4632 = vsel %vm3388, %v4627, %v4631
        %v4633 = vrot.slane %v4411, 2
        %v4634 = vsel %vm3388, %v4629, %v4633
        %v4635 = vrot.slane %v4412, 2
        %v4636 = vsel %vm3388, %v4631, %v4635
        %4637 = vrot.lane.b32.xlu0 %v4491, 126
        %v4638 = vpop.permute.xlu0 %4637
        %4639 = vrot.lane.b32.xlu0 %v4494, 126
        %v4640 = vpop.permute.xlu0 %4639
        %4641 = vrot.lane.b32.xlu0 %v4496, 126
        %v4642 = vpop.permute.xlu0 %4641
        %4643 = vrot.lane.b32.xlu0 %v4498, 126
        %v4644 = vpop.permute.xlu0 %4643
        %4645 = vrot.lane.b32.xlu0 %v4500, 126
        %v4646 = vpop.permute.xlu0 %4645
        %4647 = vrot.lane.b32.xlu0 %v4502, 126
        %v4648 = vpop.permute.xlu0 %4647
        %4649 = vrot.lane.b32.xlu0 %v4504, 126
        %v4650 = vpop.permute.xlu0 %4649
        %4651 = vrot.lane.b32.xlu0 %v4506, 126
        %v4652 = vpop.permute.xlu0 %4651
        %4653 = vrot.lane.b32.xlu0 %v4508, 126
        %v4654 = vpop.permute.xlu0 %4653
        %4655 = vrot.lane.b32.xlu0 %v4510, 126
        %v4656 = vpop.permute.xlu0 %4655
        %4657 = vrot.lane.b32.xlu0 %v4512, 126
        %v4658 = vpop.permute.xlu0 %4657
        %4659 = vrot.lane.b32.xlu0 %v4514, 126
        %v4660 = vpop.permute.xlu0 %4659
        %4661 = vrot.lane.b32.xlu0 %v4516, 126
        %v4662 = vpop.permute.xlu0 %4661
        %4663 = vrot.lane.b32.xlu0 %v4518, 126
        %v4664 = vpop.permute.xlu0 %4663
        %4665 = vrot.lane.b32.xlu0 %v4520, 126
        %v4666 = vpop.permute.xlu0 %4665
        %4667 = vrot.lane.b32.xlu0 %v4522, 126
        %v4668 = vpop.permute.xlu0 %4667
        %4669 = vrot.lane.b32.xlu0 %v4524, 126
        %v4670 = vpop.permute.xlu0 %4669
        %4671 = vrot.lane.b32.xlu0 %v4526, 126
        %v4672 = vpop.permute.xlu0 %4671
        %4673 = vrot.lane.b32.xlu0 %v4528, 126
        %v4674 = vpop.permute.xlu0 %4673
        %4675 = vrot.lane.b32.xlu0 %v4530, 126
        %v4676 = vpop.permute.xlu0 %4675
        %4677 = vrot.lane.b32.xlu0 %v4532, 126
        %v4678 = vpop.permute.xlu0 %4677
        %4679 = vrot.lane.b32.xlu0 %v4534, 126
        %v4680 = vpop.permute.xlu0 %4679
        %4681 = vrot.lane.b32.xlu0 %v4536, 126
        %v4682 = vpop.permute.xlu0 %4681
        %4683 = vrot.lane.b32.xlu0 %v4538, 126
        %v4684 = vpop.permute.xlu0 %4683
        %4685 = vrot.lane.b32.xlu0 %v4540, 126
        %v4686 = vpop.permute.xlu0 %4685
        %4687 = vrot.lane.b32.xlu0 %v4542, 126
        %v4688 = vpop.permute.xlu0 %4687
        %4689 = vrot.lane.b32.xlu0 %v4544, 126
        %v4690 = vpop.permute.xlu0 %4689
        %4691 = vrot.lane.b32.xlu0 %v4546, 126
        %v4692 = vpop.permute.xlu0 %4691
        %4693 = vrot.lane.b32.xlu0 %v4548, 126
        %v4694 = vpop.permute.xlu0 %4693
        %4695 = vrot.lane.b32.xlu0 %v4550, 126
        %v4696 = vpop.permute.xlu0 %4695
        %4697 = vrot.lane.b32.xlu0 %v4552, 126
        %v4698 = vpop.permute.xlu0 %4697
        %4699 = vrot.lane.b32.xlu0 %v4554, 126
        %v4700 = vpop.permute.xlu0 %4699
        %4701 = vrot.lane.b32.xlu0 %v4556, 126
        %v4702 = vpop.permute.xlu0 %4701
        %4703 = vrot.lane.b32.xlu0 %v4558, 126
        %v4704 = vpop.permute.xlu0 %4703
        %4705 = vrot.lane.b32.xlu0 %v4560, 126
        %v4706 = vpop.permute.xlu0 %4705
        %4707 = vrot.lane.b32.xlu0 %v4562, 126
        %v4708 = vpop.permute.xlu0 %4707
        %4709 = vrot.lane.b32.xlu0 %v4559, 126
        %v4710 = vpop.permute.xlu0 %4709
        %4711 = vrot.lane.b32.xlu0 %v4561, 126
        %v4712 = vpop.permute.xlu0 %4711
        %4713 = vrot.lane.b32.xlu0 %v4565, 126
        %v4714 = vpop.permute.xlu0 %4713
        %4715 = vrot.lane.b32.xlu0 %v4568, 126
        %v4716 = vpop.permute.xlu0 %4715
        %4717 = vrot.lane.b32.xlu0 %v4570, 126
        %v4718 = vpop.permute.xlu0 %4717
        %4719 = vrot.lane.b32.xlu0 %v4572, 126
        %v4720 = vpop.permute.xlu0 %4719
        %4721 = vrot.lane.b32.xlu0 %v4574, 126
        %v4722 = vpop.permute.xlu0 %4721
        %4723 = vrot.lane.b32.xlu0 %v4576, 126
        %v4724 = vpop.permute.xlu0 %4723
        %4725 = vrot.lane.b32.xlu0 %v4578, 126
        %v4726 = vpop.permute.xlu0 %4725
        %4727 = vrot.lane.b32.xlu0 %v4580, 126
        %v4728 = vpop.permute.xlu0 %4727
        %4729 = vrot.lane.b32.xlu0 %v4582, 126
        %v4730 = vpop.permute.xlu0 %4729
        %4731 = vrot.lane.b32.xlu0 %v4584, 126
        %v4732 = vpop.permute.xlu0 %4731
        %4733 = vrot.lane.b32.xlu0 %v4586, 126
        %v4734 = vpop.permute.xlu0 %4733
        %4735 = vrot.lane.b32.xlu0 %v4588, 126
        %v4736 = vpop.permute.xlu0 %4735
        %4737 = vrot.lane.b32.xlu0 %v4590, 126
        %v4738 = vpop.permute.xlu0 %4737
        %4739 = vrot.lane.b32.xlu0 %v4592, 126
        %v4740 = vpop.permute.xlu0 %4739
        %4741 = vrot.lane.b32.xlu0 %v4594, 126
        %v4742 = vpop.permute.xlu0 %4741
        %4743 = vrot.lane.b32.xlu0 %v4596, 126
        %v4744 = vpop.permute.xlu0 %4743
        %4745 = vrot.lane.b32.xlu0 %v4598, 126
        %v4746 = vpop.permute.xlu0 %4745
        %4747 = vrot.lane.b32.xlu0 %v4600, 126
        %v4748 = vpop.permute.xlu0 %4747
        %4749 = vrot.lane.b32.xlu0 %v4602, 126
        %v4750 = vpop.permute.xlu0 %4749
        %4751 = vrot.lane.b32.xlu0 %v4604, 126
        %v4752 = vpop.permute.xlu0 %4751
        %4753 = vrot.lane.b32.xlu0 %v4606, 126
        %v4754 = vpop.permute.xlu0 %4753
        %4755 = vrot.lane.b32.xlu0 %v4608, 126
        %v4756 = vpop.permute.xlu0 %4755
        %4757 = vrot.lane.b32.xlu0 %v4610, 126
        %v4758 = vpop.permute.xlu0 %4757
        %4759 = vrot.lane.b32.xlu0 %v4612, 126
        %v4760 = vpop.permute.xlu0 %4759
        %4761 = vrot.lane.b32.xlu0 %v4614, 126
        %v4762 = vpop.permute.xlu0 %4761
        %4763 = vrot.lane.b32.xlu0 %v4616, 126
        %v4764 = vpop.permute.xlu0 %4763
        %4765 = vrot.lane.b32.xlu0 %v4618, 126
        %v4766 = vpop.permute.xlu0 %4765
        %4767 = vrot.lane.b32.xlu0 %v4620, 126
        %v4768 = vpop.permute.xlu0 %4767
        %4769 = vrot.lane.b32.xlu0 %v4622, 126
        %v4770 = vpop.permute.xlu0 %4769
        %4771 = vrot.lane.b32.xlu0 %v4624, 126
        %v4772 = vpop.permute.xlu0 %4771
        %4773 = vrot.lane.b32.xlu0 %v4626, 126
        %v4774 = vpop.permute.xlu0 %4773
        %4775 = vrot.lane.b32.xlu0 %v4628, 126
        %v4776 = vpop.permute.xlu0 %4775
        %4777 = vrot.lane.b32.xlu0 %v4630, 126
        %v4778 = vpop.permute.xlu0 %4777
        %4779 = vrot.lane.b32.xlu0 %v4632, 126
        %v4780 = vpop.permute.xlu0 %4779
        %4781 = vrot.lane.b32.xlu0 %v4634, 126
        %v4782 = vpop.permute.xlu0 %4781
        %4783 = vrot.lane.b32.xlu0 %v4636, 126
        %v4784 = vpop.permute.xlu0 %4783
        %4785 = vrot.lane.b32.xlu0 %v4633, 126
        %v4786 = vpop.permute.xlu0 %4785
        %4787 = vrot.lane.b32.xlu0 %v4635, 126
        %v4788 = vpop.permute.xlu0 %4787
        %v4789 = vsel %vm1280, %v4638, %v4640
        %v4790 = vsel %vm1280, %v4642, %v4644
        %v4791 = vsel %vm1280, %v4646, %v4648
        %v4792 = vsel %vm1280, %v4650, %v4652
        %v4793 = vsel %vm1280, %v4654, %v4656
        %v4794 = vsel %vm1280, %v4658, %v4660
        %v4795 = vsel %vm1280, %v4662, %v4664
        %v4796 = vsel %vm1280, %v4666, %v4668
        %v4797 = vsel %vm1280, %v4670, %v4672
        %v4798 = vsel %vm1280, %v4674, %v4676
        %v4799 = vsel %vm1280, %v4678, %v4680
        %v4800 = vsel %vm1280, %v4682, %v4684
        %v4801 = vsel %vm1280, %v4686, %v4688
        %v4802 = vsel %vm1280, %v4690, %v4692
        %v4803 = vsel %vm1280, %v4694, %v4696
        %v4804 = vsel %vm1280, %v4698, %v4700
        %v4805 = vsel %vm1280, %v4702, %v4704
        %v4806 = vsel %vm1280, %v4706, %v4708
        %v4807 = vsel %vm1280, %v4710, %v4712
        %v4808 = vsel %vm1280, %v4714, %v4716
        %v4809 = vsel %vm1280, %v4718, %v4720
        %v4810 = vsel %vm1280, %v4722, %v4724
        %v4811 = vsel %vm1280, %v4726, %v4728
        %v4812 = vsel %vm1280, %v4730, %v4732
        %v4813 = vsel %vm1280, %v4734, %v4736
        %v4814 = vsel %vm1280, %v4738, %v4740
        %v4815 = vsel %vm1280, %v4742, %v4744
        %v4816 = vsel %vm1280, %v4746, %v4748
        %v4817 = vsel %vm1280, %v4750, %v4752
        %v4818 = vsel %vm1280, %v4754, %v4756
        %v4819 = vsel %vm1280, %v4758, %v4760
        %v4820 = vsel %vm1280, %v4762, %v4764
        %v4821 = vsel %vm1280, %v4766, %v4768
        %v4822 = vsel %vm1280, %v4770, %v4772
        %v4823 = vsel %vm1280, %v4774, %v4776
        %v4824 = vsel %vm1280, %v4778, %v4780
        %v4825 = vsel %vm1280, %v4782, %v4784
        %v4826 = vsel %vm1280, %v4786, %v4788
        %v4903 = vadd.f32 %v4258, %v4789
        %v4904 = vadd.f32 %v4259, %v4640
        %v4905 = vadd.f32 %v4260, %v4790
        %v4906 = vadd.f32 %v4261, %v4644
        %v4907 = vadd.f32 %v4262, %v4791
        %v4908 = vadd.f32 %v4263, %v4648
        %v4909 = vadd.f32 %v4264, %v4792
        %v4910 = vadd.f32 %v4265, %v4652
        %v4911 = vadd.f32 %v4266, %v4793
        %v4912 = vadd.f32 %v4267, %v4656
        %v4913 = vadd.f32 %v4268, %v4794
        %v4914 = vadd.f32 %v4269, %v4660
        %v4915 = vadd.f32 %v4270, %v4795
        %v4916 = vadd.f32 %v4271, %v4664
        %v4917 = vadd.f32 %v4272, %v4796
        %v4918 = vadd.f32 %v4273, %v4668
        %v4919 = vadd.f32 %v4274, %v4797
        %v4920 = vadd.f32 %v4275, %v4672
        %v4921 = vadd.f32 %v4276, %v4798
        %v4922 = vadd.f32 %v4277, %v4676
        %v4923 = vadd.f32 %v4278, %v4799
        %v4924 = vadd.f32 %v4279, %v4680
        %v4925 = vadd.f32 %v4280, %v4800
        %v4926 = vadd.f32 %v4281, %v4684
        %v4927 = vadd.f32 %v4282, %v4801
        %v4928 = vadd.f32 %v4283, %v4688
        %v4929 = vadd.f32 %v4284, %v4802
        %v4930 = vadd.f32 %v4285, %v4692
        %v4931 = vadd.f32 %v4286, %v4803
        %v4932 = vadd.f32 %v4287, %v4696
        %v4933 = vadd.f32 %v4288, %v4804
        %v4934 = vadd.f32 %v4289, %v4700
        %v4935 = vadd.f32 %v4290, %v4805
        %v4936 = vadd.f32 %v4291, %v4704
        %v4937 = vadd.f32 %v4292, %v4806
        %v4938 = vadd.f32 %v4293, %v4708
        %v4939 = vadd.f32 %v4294, %v4807
        %v4940 = vadd.f32 %v4295, %v4712
        %v4941 = vadd.f32 %v4296, %v4808
        %v4942 = vadd.f32 %v4297, %v4716
        %v4943 = vadd.f32 %v4298, %v4809
        %v4944 = vadd.f32 %v4299, %v4720
        %v4945 = vadd.f32 %v4300, %v4810
        %v4946 = vadd.f32 %v4301, %v4724
        %v4947 = vadd.f32 %v4302, %v4811
        %v4948 = vadd.f32 %v4303, %v4728
        %v4949 = vadd.f32 %v4304, %v4812
        %v4950 = vadd.f32 %v4305, %v4732
        %v4951 = vadd.f32 %v4306, %v4813
        %v4952 = vadd.f32 %v4307, %v4736
        %v4953 = vadd.f32 %v4308, %v4814
        %v4954 = vadd.f32 %v4309, %v4740
        %v4955 = vadd.f32 %v4310, %v4815
        %v4956 = vadd.f32 %v4311, %v4744
        %v4957 = vadd.f32 %v4312, %v4816
        %v4958 = vadd.f32 %v4313, %v4748
        %v4959 = vadd.f32 %v4314, %v4817
        %v4960 = vadd.f32 %v4315, %v4752
        %v4961 = vadd.f32 %v4316, %v4818
        %v4962 = vadd.f32 %v4317, %v4756
        %v4963 = vadd.f32 %v4318, %v4819
        %v4964 = vadd.f32 %v4319, %v4760
        %v4965 = vadd.f32 %v4320, %v4820
        %v4966 = vadd.f32 %v4321, %v4764
        %v4967 = vadd.f32 %v4322, %v4821
        %v4968 = vadd.f32 %v4323, %v4768
        %v4969 = vadd.f32 %v4324, %v4822
        %v4970 = vadd.f32 %v4325, %v4772
        %v4971 = vadd.f32 %v4326, %v4823
        %v4972 = vadd.f32 %v4327, %v4776
        %v4973 = vadd.f32 %v4328, %v4824
        %v4974 = vadd.f32 %v4329, %v4780
        %v4975 = vadd.f32 %v4330, %v4825
        %v4976 = vadd.f32 %v4331, %v4784
        %v4977 = vadd.f32 %v4332, %v4826
        %v4978 = vadd.f32 %v4333, %v4788
        %s4979 = sld [smem:[#allocation6 + %s19]]
        %v4980 = vstv %s4979
        %v4981 = vadd.f32 %v4903, %v4980
        %v4982 = vadd.f32 %v4904, %v4980
        %v4983 = vadd.f32 %v4905, %v4980
        %v4984 = vadd.f32 %v4906, %v4980
        %v4985 = vadd.f32 %v4907, %v4980
        %v4986 = vadd.f32 %v4908, %v4980
        %v4987 = vadd.f32 %v4909, %v4980
        %v4988 = vadd.f32 %v4910, %v4980
        %v4989 = vadd.f32 %v4911, %v4980
        %v4990 = vadd.f32 %v4912, %v4980
        %v4991 = vadd.f32 %v4913, %v4980
        %v4992 = vadd.f32 %v4914, %v4980
        %v4993 = vadd.f32 %v4915, %v4980
        %v4994 = vadd.f32 %v4916, %v4980
        %v4995 = vadd.f32 %v4917, %v4980
        %v4996 = vadd.f32 %v4918, %v4980
        %v4997 = vadd.f32 %v4919, %v4980
        %v4998 = vadd.f32 %v4920, %v4980
        %v4999 = vadd.f32 %v4921, %v4980
        %v5000 = vadd.f32 %v4922, %v4980
        %v5001 = vadd.f32 %v4923, %v4980
        %v5002 = vadd.f32 %v4924, %v4980
        %v5003 = vadd.f32 %v4925, %v4980
        %v5004 = vadd.f32 %v4926, %v4980
        %v5005 = vadd.f32 %v4927, %v4980
        %v5006 = vadd.f32 %v4928, %v4980
        %v5007 = vadd.f32 %v4929, %v4980
        %v5008 = vadd.f32 %v4930, %v4980
        %v5009 = vadd.f32 %v4931, %v4980
        %v5010 = vadd.f32 %v4932, %v4980
        %v5011 = vadd.f32 %v4933, %v4980
        %v5012 = vadd.f32 %v4934, %v4980
        %v5013 = vadd.f32 %v4935, %v4980
        %v5014 = vadd.f32 %v4936, %v4980
        %v5015 = vadd.f32 %v4937, %v4980
        %v5016 = vadd.f32 %v4938, %v4980
        %v5017 = vadd.f32 %v4939, %v4980
        %v5018 = vadd.f32 %v4940, %v4980
        %v5019 = vadd.f32 %v4941, %v4980
        %v5020 = vadd.f32 %v4942, %v4980
        %v5021 = vadd.f32 %v4943, %v4980
        %v5022 = vadd.f32 %v4944, %v4980
        %v5023 = vadd.f32 %v4945, %v4980
        %v5024 = vadd.f32 %v4946, %v4980
        %v5025 = vadd.f32 %v4947, %v4980
        %v5026 = vadd.f32 %v4948, %v4980
        %v5027 = vadd.f32 %v4949, %v4980
        %v5028 = vadd.f32 %v4950, %v4980
        %v5029 = vadd.f32 %v4951, %v4980
        %v5030 = vadd.f32 %v4952, %v4980
        %v5031 = vadd.f32 %v4953, %v4980
        %v5032 = vadd.f32 %v4954, %v4980
        %v5033 = vadd.f32 %v4955, %v4980
        %v5034 = vadd.f32 %v4956, %v4980
        %v5035 = vadd.f32 %v4957, %v4980
        %v5036 = vadd.f32 %v4958, %v4980
        %v5037 = vadd.f32 %v4959, %v4980
        %v5038 = vadd.f32 %v4960, %v4980
        %v5039 = vadd.f32 %v4961, %v4980
        %v5040 = vadd.f32 %v4962, %v4980
        %v5041 = vadd.f32 %v4963, %v4980
        %v5042 = vadd.f32 %v4964, %v4980
        %v5043 = vadd.f32 %v4965, %v4980
        %v5044 = vadd.f32 %v4966, %v4980
        %v5045 = vadd.f32 %v4967, %v4980
        %v5046 = vadd.f32 %v4968, %v4980
        %v5047 = vadd.f32 %v4969, %v4980
        %v5048 = vadd.f32 %v4970, %v4980
        %v5049 = vadd.f32 %v4971, %v4980
        %v5050 = vadd.f32 %v4972, %v4980
        %v5051 = vadd.f32 %v4973, %v4980
        %v5052 = vadd.f32 %v4974, %v4980
        %v5053 = vadd.f32 %v4975, %v4980
        %v5054 = vadd.f32 %v4976, %v4980
        %v5055 = vadd.f32 %v4977, %v4980
        %v5056 = vadd.f32 %v4978, %v4980
        %v5057 = vld [vmem:[%s237] sm:$0xff]
        %v5058 = vld [vmem:[%s237 + $0x8] sm:$0xff]
        %v5059 = vld [vmem:[%s237 + $0x10] sm:$0xff]
        %v5060 = vld [vmem:[%s237 + $0x18] sm:$0xff]
        %v5061 = vld [vmem:[%s237 + $0x20] sm:$0xff]
        %v5062 = vld [vmem:[%s237 + $0x28] sm:$0xff]
        %v5063 = vld [vmem:[%s237 + $0x30] sm:$0xff]
        %v5064 = vld [vmem:[%s237 + $0x38] sm:$0xff]
        %v5065 = vld [vmem:[%s237 + $0x40] sm:$0xff]
        %v5066 = vld [vmem:[%s237 + $0x48] sm:$0xff]
        %v5067 = vld [vmem:[%s237 + $0x50] sm:$0xff]
        %v5068 = vld [vmem:[%s237 + $0x58] sm:$0xff]
        %v5069 = vld [vmem:[%s237 + $0x60] sm:$0xff]
        %v5070 = vld [vmem:[%s237 + $0x68] sm:$0xff]
        %v5071 = vld [vmem:[%s237 + $0x70] sm:$0xff]
        %v5072 = vld [vmem:[%s237 + $0x78] sm:$0xff]
        %v5073 = vld [vmem:[%s237 + $0x80] sm:$0xff]
        %v5074 = vld [vmem:[%s237 + $0x88] sm:$0xff]
        %v5075 = vld [vmem:[%s237 + $0x90] sm:$0xff]
        %v5076 = vld [vmem:[%s237 + $0x98] sm:$0xff]
        %v5077 = vld [vmem:[%s237 + $0xa0] sm:$0xff]
        %v5078 = vld [vmem:[%s237 + $0xa8] sm:$0xff]
        %v5079 = vld [vmem:[%s237 + $0xb0] sm:$0xff]
        %v5080 = vld [vmem:[%s237 + $0xb8] sm:$0xff]
        %v5081 = vld [vmem:[%s237 + $0xc0] sm:$0xff]
        %v5082 = vld [vmem:[%s237 + $0xc8] sm:$0xff]
        %v5083 = vld [vmem:[%s237 + $0xd0] sm:$0xff]
        %v5084 = vld [vmem:[%s237 + $0xd8] sm:$0xff]
        %v5085 = vld [vmem:[%s237 + $0xe0] sm:$0xff]
        %v5086 = vld [vmem:[%s237 + $0xe8] sm:$0xff]
        %v5087 = vld [vmem:[%s237 + $0xf0] sm:$0xff]
        %v5088 = vld [vmem:[%s237 + $0xf8] sm:$0xff]
        %v5089 = vld [vmem:[%s237 + $0x100] sm:$0xff]
        %v5090 = vld [vmem:[%s237 + $0x108] sm:$0xff]
        %v5091 = vld [vmem:[%s237 + $0x110] sm:$0xff]
        %v5092 = vld [vmem:[%s237 + $0x118] sm:$0xff]
        %v5093 = vld [vmem:[%s237 + $0x120] sm:$0xf]
        %v5094 = vld [vmem:[%s237 + $0x128] sm:$0xf]
        %v5095 = vmul.f32 %v4981, %v5057
        %v5096 = vmul.f32 %v4982, %v5058
        %v5097 = vmul.f32 %v4983, %v5059
        %v5098 = vmul.f32 %v4984, %v5060
        %v5099 = vmul.f32 %v4985, %v5061
        %v5100 = vmul.f32 %v4986, %v5062
        %v5101 = vmul.f32 %v4987, %v5063
        %v5102 = vmul.f32 %v4988, %v5064
        %v5103 = vmul.f32 %v4989, %v5065
        %v5104 = vmul.f32 %v4990, %v5066
        %v5105 = vmul.f32 %v4991, %v5067
        %v5106 = vmul.f32 %v4992, %v5068
        %v5107 = vmul.f32 %v4993, %v5069
        %v5108 = vmul.f32 %v4994, %v5070
        %v5109 = vmul.f32 %v4995, %v5071
        %v5110 = vmul.f32 %v4996, %v5072
        %v5111 = vmul.f32 %v4997, %v5073
        %v5112 = vmul.f32 %v4998, %v5074
        %v5113 = vmul.f32 %v4999, %v5075
        %v5114 = vmul.f32 %v5000, %v5076
        %v5115 = vmul.f32 %v5001, %v5077
        %v5116 = vmul.f32 %v5002, %v5078
        %v5117 = vmul.f32 %v5003, %v5079
        %v5118 = vmul.f32 %v5004, %v5080
        %v5119 = vmul.f32 %v5005, %v5081
        %v5120 = vmul.f32 %v5006, %v5082
        %v5121 = vmul.f32 %v5007, %v5083
        %v5122 = vmul.f32 %v5008, %v5084
        %v5123 = vmul.f32 %v5009, %v5085
        %v5124 = vmul.f32 %v5010, %v5086
        %v5125 = vmul.f32 %v5011, %v5087
        %v5126 = vmul.f32 %v5012, %v5088
        %v5127 = vmul.f32 %v5013, %v5089
        %v5128 = vmul.f32 %v5014, %v5090
        %v5129 = vmul.f32 %v5015, %v5091
        %v5130 = vmul.f32 %v5016, %v5092
        %v5131 = vmul.f32 %v5017, %v5093
        %v5132 = vmul.f32 %v5018, %v5094
        %v5133 = vmul.f32 %v5019, %v5057
        %v5134 = vmul.f32 %v5020, %v5058
        %v5135 = vmul.f32 %v5021, %v5059
        %v5136 = vmul.f32 %v5022, %v5060
        %v5137 = vmul.f32 %v5023, %v5061
        %v5138 = vmul.f32 %v5024, %v5062
        %v5139 = vmul.f32 %v5025, %v5063
        %v5140 = vmul.f32 %v5026, %v5064
        %v5141 = vmul.f32 %v5027, %v5065
        %v5142 = vmul.f32 %v5028, %v5066
        %v5143 = vmul.f32 %v5029, %v5067
        %v5144 = vmul.f32 %v5030, %v5068
        %v5145 = vmul.f32 %v5031, %v5069
        %v5146 = vmul.f32 %v5032, %v5070
        %v5147 = vmul.f32 %v5033, %v5071
        %v5148 = vmul.f32 %v5034, %v5072
        %v5149 = vmul.f32 %v5035, %v5073
        %v5150 = vmul.f32 %v5036, %v5074
        %v5151 = vmul.f32 %v5037, %v5075
        %v5152 = vmul.f32 %v5038, %v5076
        %v5153 = vmul.f32 %v5039, %v5077
        %v5154 = vmul.f32 %v5040, %v5078
        %v5155 = vmul.f32 %v5041, %v5079
        %v5156 = vmul.f32 %v5042, %v5080
        %v5157 = vmul.f32 %v5043, %v5081
        %v5158 = vmul.f32 %v5044, %v5082
        %v5159 = vmul.f32 %v5045, %v5083
        %v5160 = vmul.f32 %v5046, %v5084
        %v5161 = vmul.f32 %v5047, %v5085
        %v5162 = vmul.f32 %v5048, %v5086
        %v5163 = vmul.f32 %v5049, %v5087
        %v5164 = vmul.f32 %v5050, %v5088
        %v5165 = vmul.f32 %v5051, %v5089
        %v5166 = vmul.f32 %v5052, %v5090
        %v5167 = vmul.f32 %v5053, %v5091
        %v5168 = vmul.f32 %v5054, %v5092
        %v5169 = vmul.f32 %v5055, %v5093
        %v5170 = vmul.f32 %v5056, %v5094
        %vm5171 = vcmask 162816
        %v5172 = vsel %vm5171, %v5096, 0.0
        %v5173 = vadd.f32 %v5095, %v5172
        %5174 = vadd.xlane.f32.xlu0 %v5173
        %v5175 = vpop.xlane.xlu0 %5174
        %v5176 = vsel %vm5171, %v5098, 0.0
        %v5177 = vadd.f32 %v5097, %v5176
        %5178 = vadd.xlane.f32.xlu0 %v5177
        %v5179 = vpop.xlane.xlu0 %5178
        %v5180 = vsel %vm5171, %v5100, 0.0
        %v5181 = vadd.f32 %v5099, %v5180
        %5182 = vadd.xlane.f32.xlu0 %v5181
        %v5183 = vpop.xlane.xlu0 %5182
        %v5184 = vsel %vm5171, %v5102, 0.0
        %v5185 = vadd.f32 %v5101, %v5184
        %5186 = vadd.xlane.f32.xlu0 %v5185
        %v5187 = vpop.xlane.xlu0 %5186
        %v5188 = vsel %vm5171, %v5104, 0.0
        %v5189 = vadd.f32 %v5103, %v5188
        %5190 = vadd.xlane.f32.xlu0 %v5189
        %v5191 = vpop.xlane.xlu0 %5190
        %v5192 = vsel %vm5171, %v5106, 0.0
        %v5193 = vadd.f32 %v5105, %v5192
        %5194 = vadd.xlane.f32.xlu0 %v5193
        %v5195 = vpop.xlane.xlu0 %5194
        %v5196 = vsel %vm5171, %v5108, 0.0
        %v5197 = vadd.f32 %v5107, %v5196
        %5198 = vadd.xlane.f32.xlu0 %v5197
        %v5199 = vpop.xlane.xlu0 %5198
        %v5200 = vsel %vm5171, %v5110, 0.0
        %v5201 = vadd.f32 %v5109, %v5200
        %5202 = vadd.xlane.f32.xlu0 %v5201
        %v5203 = vpop.xlane.xlu0 %5202
        %v5204 = vsel %vm5171, %v5112, 0.0
        %v5205 = vadd.f32 %v5111, %v5204
        %5206 = vadd.xlane.f32.xlu0 %v5205
        %v5207 = vpop.xlane.xlu0 %5206
        %v5208 = vsel %vm5171, %v5114, 0.0
        %v5209 = vadd.f32 %v5113, %v5208
        %5210 = vadd.xlane.f32.xlu0 %v5209
        %v5211 = vpop.xlane.xlu0 %5210
        %v5212 = vsel %vm5171, %v5116, 0.0
        %v5213 = vadd.f32 %v5115, %v5212
        %5214 = vadd.xlane.f32.xlu0 %v5213
        %v5215 = vpop.xlane.xlu0 %5214
        %v5216 = vsel %vm5171, %v5118, 0.0
        %v5217 = vadd.f32 %v5117, %v5216
        %5218 = vadd.xlane.f32.xlu0 %v5217
        %v5219 = vpop.xlane.xlu0 %5218
        %v5220 = vsel %vm5171, %v5120, 0.0
        %v5221 = vadd.f32 %v5119, %v5220
        %5222 = vadd.xlane.f32.xlu0 %v5221
        %v5223 = vpop.xlane.xlu0 %5222
        %v5224 = vsel %vm5171, %v5122, 0.0
        %v5225 = vadd.f32 %v5121, %v5224
        %5226 = vadd.xlane.f32.xlu0 %v5225
        %v5227 = vpop.xlane.xlu0 %5226
        %v5228 = vsel %vm5171, %v5124, 0.0
        %v5229 = vadd.f32 %v5123, %v5228
        %5230 = vadd.xlane.f32.xlu0 %v5229
        %v5231 = vpop.xlane.xlu0 %5230
        %v5232 = vsel %vm5171, %v5126, 0.0
        %v5233 = vadd.f32 %v5125, %v5232
        %5234 = vadd.xlane.f32.xlu0 %v5233
        %v5235 = vpop.xlane.xlu0 %5234
        %v5236 = vsel %vm5171, %v5128, 0.0
        %v5237 = vadd.f32 %v5127, %v5236
        %5238 = vadd.xlane.f32.xlu0 %v5237
        %v5239 = vpop.xlane.xlu0 %5238
        %v5240 = vsel %vm5171, %v5130, 0.0
        %v5241 = vadd.f32 %v5129, %v5240
        %5242 = vadd.xlane.f32.xlu0 %v5241
        %v5243 = vpop.xlane.xlu0 %5242
        %vm5244 = vcmask 1043456
        %v5245 = vsel %vm5244, %v5131, 0.0
        %vm5246 = vcmask 158720
        %v5247 = vsel %vm5246, %v5132, 0.0
        %v5248 = vadd.f32 %v5245, %v5247
        %5249 = vadd.xlane.f32.xlu0 %v5248
        %v5250 = vpop.xlane.xlu0 %5249
        %v5251 = vsel %vm5171, %v5134, 0.0
        %v5252 = vadd.f32 %v5133, %v5251
        %5253 = vadd.xlane.f32.xlu0 %v5252
        %v5254 = vpop.xlane.xlu0 %5253
        %v5255 = vsel %vm5171, %v5136, 0.0
        %v5256 = vadd.f32 %v5135, %v5255
        %5257 = vadd.xlane.f32.xlu0 %v5256
        %v5258 = vpop.xlane.xlu0 %5257
        %v5259 = vsel %vm5171, %v5138, 0.0
        %v5260 = vadd.f32 %v5137, %v5259
        %5261 = vadd.xlane.f32.xlu0 %v5260
        %v5262 = vpop.xlane.xlu0 %5261
        %v5263 = vsel %vm5171, %v5140, 0.0
        %v5264 = vadd.f32 %v5139, %v5263
        %5265 = vadd.xlane.f32.xlu0 %v5264
        %v5266 = vpop.xlane.xlu0 %5265
        %v5267 = vsel %vm5171, %v5142, 0.0
        %v5268 = vadd.f32 %v5141, %v5267
        %5269 = vadd.xlane.f32.xlu0 %v5268
        %v5270 = vpop.xlane.xlu0 %5269
        %v5271 = vsel %vm5171, %v5144, 0.0
        %v5272 = vadd.f32 %v5143, %v5271
        %5273 = vadd.xlane.f32.xlu0 %v5272
        %v5274 = vpop.xlane.xlu0 %5273
        %v5275 = vsel %vm5171, %v5146, 0.0
        %v5276 = vadd.f32 %v5145, %v5275
        %5277 = vadd.xlane.f32.xlu0 %v5276
        %v5278 = vpop.xlane.xlu0 %5277
        %v5279 = vsel %vm5171, %v5148, 0.0
        %v5280 = vadd.f32 %v5147, %v5279
        %5281 = vadd.xlane.f32.xlu0 %v5280
        %v5282 = vpop.xlane.xlu0 %5281
        %v5283 = vsel %vm5171, %v5150, 0.0
        %v5284 = vadd.f32 %v5149, %v5283
        %5285 = vadd.xlane.f32.xlu0 %v5284
        %v5286 = vpop.xlane.xlu0 %5285
        %v5287 = vsel %vm5171, %v5152, 0.0
        %v5288 = vadd.f32 %v5151, %v5287
        %5289 = vadd.xlane.f32.xlu0 %v5288
        %v5290 = vpop.xlane.xlu0 %5289
        %v5291 = vsel %vm5171, %v5154, 0.0
        %v5292 = vadd.f32 %v5153, %v5291
        %5293 = vadd.xlane.f32.xlu0 %v5292
        %v5294 = vpop.xlane.xlu0 %5293
        %v5295 = vsel %vm5171, %v5156, 0.0
        %v5296 = vadd.f32 %v5155, %v5295
        %5297 = vadd.xlane.f32.xlu0 %v5296
        %v5298 = vpop.xlane.xlu0 %5297
        %v5299 = vsel %vm5171, %v5158, 0.0
        %v5300 = vadd.f32 %v5157, %v5299
        %5301 = vadd.xlane.f32.xlu0 %v5300
        %v5302 = vpop.xlane.xlu0 %5301
        %v5303 = vsel %vm5171, %v5160, 0.0
        %v5304 = vadd.f32 %v5159, %v5303
        %5305 = vadd.xlane.f32.xlu0 %v5304
        %v5306 = vpop.xlane.xlu0 %5305
        %v5307 = vsel %vm5171, %v5162, 0.0
        %v5308 = vadd.f32 %v5161, %v5307
        %5309 = vadd.xlane.f32.xlu0 %v5308
        %v5310 = vpop.xlane.xlu0 %5309
        %v5311 = vsel %vm5171, %v5164, 0.0
        %v5312 = vadd.f32 %v5163, %v5311
        %5313 = vadd.xlane.f32.xlu0 %v5312
        %v5314 = vpop.xlane.xlu0 %5313
        %v5315 = vsel %vm5171, %v5166, 0.0
        %v5316 = vadd.f32 %v5165, %v5315
        %5317 = vadd.xlane.f32.xlu0 %v5316
        %v5318 = vpop.xlane.xlu0 %5317
        %v5319 = vsel %vm5171, %v5168, 0.0
        %v5320 = vadd.f32 %v5167, %v5319
        %5321 = vadd.xlane.f32.xlu0 %v5320
        %v5322 = vpop.xlane.xlu0 %5321
        %v5323 = vsel %vm5244, %v5169, 0.0
        %v5324 = vsel %vm5246, %v5170, 0.0
        %v5325 = vadd.f32 %v5323, %v5324
        %5326 = vadd.xlane.f32.xlu0 %v5325
        %v5327 = vpop.xlane.xlu0 %5326
        %v5366 = vlaneseq
        %v5367 = vand.u32 %v5366, 127
        %v5368 = vlaneseq
        %v5369 = vshrl.u32 %v5368, 7
        %v5370 = vsub.s32 %v5367, %v5369
        %v5371 = vrot.slane %v5175, %v5370
        %v5372 = vadd.s32 %v5367, 4294967288
        %v5373 = vlaneseq
        %v5374 = vshrl.u32 %v5373, 7
        %v5375 = vsub.s32 %v5372, %v5374
        %v5376 = vrot.slane %v5179, %v5375
        %vm5377 = vcmask 130112
        %v5378 = vsel %vm5377, %v5376, %v5371
        %v5379 = vadd.s32 %v5367, 4294967280
        %v5380 = vlaneseq
        %v5381 = vshrl.u32 %v5380, 7
        %v5382 = vsub.s32 %v5379, %v5381
        %v5383 = vrot.slane %v5183, %v5382
        %vm5384 = vcmask 195712
        %v5385 = vsel %vm5384, %v5383, %v5378
        %v5386 = vadd.s32 %v5367, 4294967272
        %v5387 = vlaneseq
        %v5388 = vshrl.u32 %v5387, 7
        %v5389 = vsub.s32 %v5386, %v5388
        %v5390 = vrot.slane %v5187, %v5389
        %vm5391 = vcmask 261312
        %v5392 = vsel %vm5391, %v5390, %v5385
        %v5393 = vadd.s32 %v5367, 4294967264
        %v5394 = vlaneseq
        %v5395 = vshrl.u32 %v5394, 7
        %v5396 = vsub.s32 %v5393, %v5395
        %v5397 = vrot.slane %v5191, %v5396
        %vm5398 = vcmask 326912
        %v5399 = vsel %vm5398, %v5397, %v5392
        %v5400 = vadd.s32 %v5367, 4294967256
        %v5401 = vlaneseq
        %v5402 = vshrl.u32 %v5401, 7
        %v5403 = vsub.s32 %v5400, %v5402
        %v5404 = vrot.slane %v5195, %v5403
        %vm5405 = vcmask 392512
        %v5406 = vsel %vm5405, %v5404, %v5399
        %v5407 = vadd.s32 %v5367, 4294967248
        %v5408 = vlaneseq
        %v5409 = vshrl.u32 %v5408, 7
        %v5410 = vsub.s32 %v5407, %v5409
        %v5411 = vrot.slane %v5199, %v5410
        %vm5412 = vcmask 458112
        %v5413 = vsel %vm5412, %v5411, %v5406
        %v5414 = vadd.s32 %v5367, 4294967240
        %v5415 = vlaneseq
        %v5416 = vshrl.u32 %v5415, 7
        %v5417 = vsub.s32 %v5414, %v5416
        %v5418 = vrot.slane %v5203, %v5417
        %vm5419 = vcmask 523712
        %v5420 = vsel %vm5419, %v5418, %v5413
        %v5421 = vadd.s32 %v5367, 4294967232
        %v5422 = vlaneseq
        %v5423 = vshrl.u32 %v5422, 7
        %v5424 = vsub.s32 %v5421, %v5423
        %v5425 = vrot.slane %v5207, %v5424
        %vm5426 = vcmask 589312
        %v5427 = vsel %vm5426, %v5425, %v5420
        %v5428 = vadd.s32 %v5367, 4294967224
        %v5429 = vlaneseq
        %v5430 = vshrl.u32 %v5429, 7
        %v5431 = vsub.s32 %v5428, %v5430
        %v5432 = vrot.slane %v5211, %v5431
        %vm5433 = vcmask 654912
        %v5434 = vsel %vm5433, %v5432, %v5427
        %v5435 = vadd.s32 %v5367, 4294967216
        %v5436 = vlaneseq
        %v5437 = vshrl.u32 %v5436, 7
        %v5438 = vsub.s32 %v5435, %v5437
        %v5439 = vrot.slane %v5215, %v5438
        %vm5440 = vcmask 720512
        %v5441 = vsel %vm5440, %v5439, %v5434
        %v5442 = vadd.s32 %v5367, 4294967208
        %v5443 = vlaneseq
        %v5444 = vshrl.u32 %v5443, 7
        %v5445 = vsub.s32 %v5442, %v5444
        %v5446 = vrot.slane %v5219, %v5445
        %vm5447 = vcmask 786112
        %v5448 = vsel %vm5447, %v5446, %v5441
        %v5449 = vadd.s32 %v5367, 4294967200
        %v5450 = vlaneseq
        %v5451 = vshrl.u32 %v5450, 7
        %v5452 = vsub.s32 %v5449, %v5451
        %v5453 = vrot.slane %v5223, %v5452
        %vm5454 = vcmask 851712
        %v5455 = vsel %vm5454, %v5453, %v5448
        %v5456 = vadd.s32 %v5367, 4294967192
        %v5457 = vlaneseq
        %v5458 = vshrl.u32 %v5457, 7
        %v5459 = vsub.s32 %v5456, %v5458
        %v5460 = vrot.slane %v5227, %v5459
        %vm5461 = vcmask 917312
        %v5462 = vsel %vm5461, %v5460, %v5455
        %v5463 = vadd.s32 %v5367, 4294967184
        %v5464 = vlaneseq
        %v5465 = vshrl.u32 %v5464, 7
        %v5466 = vsub.s32 %v5463, %v5465
        %v5467 = vrot.slane %v5231, %v5466
        %vm5468 = vcmask 982912
        %v5469 = vsel %vm5468, %v5467, %v5462
        %v5470 = vadd.s32 %v5367, 4294967176
        %v5471 = vlaneseq
        %v5472 = vshrl.u32 %v5471, 7
        %v5473 = vsub.s32 %v5470, %v5472
        %v5474 = vrot.slane %v5235, %v5473
        %vm5475 = vcmask 1048512
        %v5476 = vsel %vm5475, %v5474, %v5469
        %v5477 = vlaneseq
        %v5478 = vshrl.u32 %v5477, 7
        %v5479 = vsub.s32 %v5367, %v5478
        %v5480 = vrot.slane %v5239, %v5479
        %v5481 = vlaneseq
        %v5482 = vshrl.u32 %v5481, 7
        %v5483 = vsub.s32 %v5372, %v5482
        %v5484 = vrot.slane %v5243, %v5483
        %v5485 = vsel %vm5377, %v5484, %v5480
        %v5486 = vlaneseq
        %v5487 = vshrl.u32 %v5486, 7
        %v5488 = vsub.s32 %v5379, %v5487
        %v5489 = vrot.slane %v5250, %v5488
        %v5490 = vsel %vm5384, %v5489, %v5485
        %v5491 = vlaneseq
        %v5492 = vshrl.u32 %v5491, 7
        %v5493 = vsub.s32 %v5367, %v5492
        %v5494 = vrot.slane %v5254, %v5493
        %v5495 = vlaneseq
        %v5496 = vshrl.u32 %v5495, 7
        %v5497 = vsub.s32 %v5372, %v5496
        %v5498 = vrot.slane %v5258, %v5497
        %v5499 = vsel %vm5377, %v5498, %v5494
        %v5500 = vlaneseq
        %v5501 = vshrl.u32 %v5500, 7
        %v5502 = vsub.s32 %v5379, %v5501
        %v5503 = vrot.slane %v5262, %v5502
        %v5504 = vsel %vm5384, %v5503, %v5499
        %v5505 = vlaneseq
        %v5506 = vshrl.u32 %v5505, 7
        %v5507 = vsub.s32 %v5386, %v5506
        %v5508 = vrot.slane %v5266, %v5507
        %v5509 = vsel %vm5391, %v5508, %v5504
        %v5510 = vlaneseq
        %v5511 = vshrl.u32 %v5510, 7
        %v5512 = vsub.s32 %v5393, %v5511
        %v5513 = vrot.slane %v5270, %v5512
        %v5514 = vsel %vm5398, %v5513, %v5509
        %v5515 = vlaneseq
        %v5516 = vshrl.u32 %v5515, 7
        %v5517 = vsub.s32 %v5400, %v5516
        %v5518 = vrot.slane %v5274, %v5517
        %v5519 = vsel %vm5405, %v5518, %v5514
        %v5520 = vlaneseq
        %v5521 = vshrl.u32 %v5520, 7
        %v5522 = vsub.s32 %v5407, %v5521
        %v5523 = vrot.slane %v5278, %v5522
        %v5524 = vsel %vm5412, %v5523, %v5519
        %v5525 = vlaneseq
        %v5526 = vshrl.u32 %v5525, 7
        %v5527 = vsub.s32 %v5414, %v5526
        %v5528 = vrot.slane %v5282, %v5527
        %v5529 = vsel %vm5419, %v5528, %v5524
        %v5530 = vlaneseq
        %v5531 = vshrl.u32 %v5530, 7
        %v5532 = vsub.s32 %v5421, %v5531
        %v5533 = vrot.slane %v5286, %v5532
        %v5534 = vsel %vm5426, %v5533, %v5529
        %v5535 = vlaneseq
        %v5536 = vshrl.u32 %v5535, 7
        %v5537 = vsub.s32 %v5428, %v5536
        %v5538 = vrot.slane %v5290, %v5537
        %v5539 = vsel %vm5433, %v5538, %v5534
        %v5540 = vlaneseq
        %v5541 = vshrl.u32 %v5540, 7
        %v5542 = vsub.s32 %v5435, %v5541
        %v5543 = vrot.slane %v5294, %v5542
        %v5544 = vsel %vm5440, %v5543, %v5539
        %v5545 = vlaneseq
        %v5546 = vshrl.u32 %v5545, 7
        %v5547 = vsub.s32 %v5442, %v5546
        %v5548 = vrot.slane %v5298, %v5547
        %v5549 = vsel %vm5447, %v5548, %v5544
        %v5550 = vlaneseq
        %v5551 = vshrl.u32 %v5550, 7
        %v5552 = vsub.s32 %v5449, %v5551
        %v5553 = vrot.slane %v5302, %v5552
        %v5554 = vsel %vm5454, %v5553, %v5549
        %v5555 = vlaneseq
        %v5556 = vshrl.u32 %v5555, 7
        %v5557 = vsub.s32 %v5456, %v5556
        %v5558 = vrot.slane %v5306, %v5557
        %v5559 = vsel %vm5461, %v5558, %v5554
        %v5560 = vlaneseq
        %v5561 = vshrl.u32 %v5560, 7
        %v5562 = vsub.s32 %v5463, %v5561
        %v5563 = vrot.slane %v5310, %v5562
        %v5564 = vsel %vm5468, %v5563, %v5559
        %v5565 = vlaneseq
        %v5566 = vshrl.u32 %v5565, 7
        %v5567 = vsub.s32 %v5470, %v5566
        %v5568 = vrot.slane %v5314, %v5567
        %v5569 = vsel %vm5475, %v5568, %v5564
        %v5570 = vlaneseq
        %v5571 = vshrl.u32 %v5570, 7
        %v5572 = vsub.s32 %v5367, %v5571
        %v5573 = vrot.slane %v5318, %v5572
        %v5574 = vlaneseq
        %v5575 = vshrl.u32 %v5574, 7
        %v5576 = vsub.s32 %v5372, %v5575
        %v5577 = vrot.slane %v5322, %v5576
        %v5578 = vsel %vm5377, %v5577, %v5573
        %v5579 = vlaneseq
        %v5580 = vshrl.u32 %v5579, 7
        %v5581 = vsub.s32 %v5379, %v5580
        %v5582 = vrot.slane %v5327, %v5581
        %v5583 = vsel %vm5384, %v5582, %v5578
        %vm5584 = vcmask 1041409
        %v5585 = vsel %vm5584, %v5569, %v5476
        %v5586 = vsel %vm5584, %v5583, %v5490
        %vm5589 = vcmask 1041408
        %v5590 = vsel %vm5589, %v5585, 0.0
        %vm5591 = vcmask 156672
        %v5592 = vsel %vm5591, %v5586, 0.0
        %v5593 = vadd.f32 %v5590, %v5592
        %5594 = vadd.xlane.f32.xlu0 %v5593
        %v5595 = vpop.xlane.xlu0 %5594
        %v5596 = vld [vmem:[#allocation2] sm:$0x3]
        %v5597 = vadd.f32 %v5596, %v5595
        %vm5598 = vcmask 1024
        %5599 = vst.msk [vmem:[#allocation2] sm:$0x3] %vm5598, %v5597
        %s5600 = scalar_lea.vmem %s237, 304
        %v5601 = vld [vmem:[%s5600] sm:$0xff]
        %v5602 = vld [vmem:[%s5600 + $0x8] sm:$0xff]
        %v5603 = vld [vmem:[%s5600 + $0x10] sm:$0xff]
        %v5604 = vld [vmem:[%s5600 + $0x18] sm:$0xff]
        %v5605 = vld [vmem:[%s5600 + $0x20] sm:$0xff]
        %v5606 = vld [vmem:[%s5600 + $0x28] sm:$0xff]
        %v5607 = vld [vmem:[%s5600 + $0x30] sm:$0xff]
        %v5608 = vld [vmem:[%s5600 + $0x38] sm:$0xff]
        %v5609 = vld [vmem:[%s5600 + $0x40] sm:$0xff]
        %v5610 = vld [vmem:[%s5600 + $0x48] sm:$0xff]
        %v5611 = vld [vmem:[%s5600 + $0x50] sm:$0xff]
        %v5612 = vld [vmem:[%s5600 + $0x58] sm:$0xff]
        %v5613 = vld [vmem:[%s5600 + $0x60] sm:$0xff]
        %v5614 = vld [vmem:[%s5600 + $0x68] sm:$0xff]
        %v5615 = vld [vmem:[%s5600 + $0x70] sm:$0xff]
        %v5616 = vld [vmem:[%s5600 + $0x78] sm:$0xff]
        %v5617 = vld [vmem:[%s5600 + $0x80] sm:$0xff]
        %v5618 = vld [vmem:[%s5600 + $0x88] sm:$0xff]
        %v5619 = vld [vmem:[%s5600 + $0x90] sm:$0xff]
        %v5620 = vld [vmem:[%s5600 + $0x98] sm:$0xff]
        %v5621 = vld [vmem:[%s5600 + $0xa0] sm:$0xff]
        %v5622 = vld [vmem:[%s5600 + $0xa8] sm:$0xff]
        %v5623 = vld [vmem:[%s5600 + $0xb0] sm:$0xff]
        %v5624 = vld [vmem:[%s5600 + $0xb8] sm:$0xff]
        %v5625 = vld [vmem:[%s5600 + $0xc0] sm:$0xff]
        %v5626 = vld [vmem:[%s5600 + $0xc8] sm:$0xff]
        %v5627 = vld [vmem:[%s5600 + $0xd0] sm:$0xff]
        %v5628 = vld [vmem:[%s5600 + $0xd8] sm:$0xff]
        %v5629 = vld [vmem:[%s5600 + $0xe0] sm:$0xff]
        %v5630 = vld [vmem:[%s5600 + $0xe8] sm:$0xff]
        %v5631 = vld [vmem:[%s5600 + $0xf0] sm:$0xff]
        %v5632 = vld [vmem:[%s5600 + $0xf8] sm:$0xff]
        %v5633 = vld [vmem:[%s5600 + $0x100] sm:$0xff]
        %v5634 = vld [vmem:[%s5600 + $0x108] sm:$0xff]
        %v5635 = vld [vmem:[%s5600 + $0x110] sm:$0xff]
        %v5636 = vld [vmem:[%s5600 + $0x118] sm:$0xff]
        %v5637 = vld [vmem:[%s5600 + $0x120] sm:$0xf]
        %v5638 = vld [vmem:[%s5600 + $0x128] sm:$0xf]
        %v5639 = vmul.f32 %v4981, %v5601
        %v5640 = vmul.f32 %v4982, %v5602
        %v5641 = vmul.f32 %v4983, %v5603
        %v5642 = vmul.f32 %v4984, %v5604
        %v5643 = vmul.f32 %v4985, %v5605
        %v5644 = vmul.f32 %v4986, %v5606
        %v5645 = vmul.f32 %v4987, %v5607
        %v5646 = vmul.f32 %v4988, %v5608
        %v5647 = vmul.f32 %v4989, %v5609
        %v5648 = vmul.f32 %v4990, %v5610
        %v5649 = vmul.f32 %v4991, %v5611
        %v5650 = vmul.f32 %v4992, %v5612
        %v5651 = vmul.f32 %v4993, %v5613
        %v5652 = vmul.f32 %v4994, %v5614
        %v5653 = vmul.f32 %v4995, %v5615
        %v5654 = vmul.f32 %v4996, %v5616
        %v5655 = vmul.f32 %v4997, %v5617
        %v5656 = vmul.f32 %v4998, %v5618
        %v5657 = vmul.f32 %v4999, %v5619
        %v5658 = vmul.f32 %v5000, %v5620
        %v5659 = vmul.f32 %v5001, %v5621
        %v5660 = vmul.f32 %v5002, %v5622
        %v5661 = vmul.f32 %v5003, %v5623
        %v5662 = vmul.f32 %v5004, %v5624
        %v5663 = vmul.f32 %v5005, %v5625
        %v5664 = vmul.f32 %v5006, %v5626
        %v5665 = vmul.f32 %v5007, %v5627
        %v5666 = vmul.f32 %v5008, %v5628
        %v5667 = vmul.f32 %v5009, %v5629
        %v5668 = vmul.f32 %v5010, %v5630
        %v5669 = vmul.f32 %v5011, %v5631
        %v5670 = vmul.f32 %v5012, %v5632
        %v5671 = vmul.f32 %v5013, %v5633
        %v5672 = vmul.f32 %v5014, %v5634
        %v5673 = vmul.f32 %v5015, %v5635
        %v5674 = vmul.f32 %v5016, %v5636
        %v5675 = vmul.f32 %v5017, %v5637
        %v5676 = vmul.f32 %v5018, %v5638
        %v5677 = vmul.f32 %v5019, %v5601
        %v5678 = vmul.f32 %v5020, %v5602
        %v5679 = vmul.f32 %v5021, %v5603
        %v5680 = vmul.f32 %v5022, %v5604
        %v5681 = vmul.f32 %v5023, %v5605
        %v5682 = vmul.f32 %v5024, %v5606
        %v5683 = vmul.f32 %v5025, %v5607
        %v5684 = vmul.f32 %v5026, %v5608
        %v5685 = vmul.f32 %v5027, %v5609
        %v5686 = vmul.f32 %v5028, %v5610
        %v5687 = vmul.f32 %v5029, %v5611
        %v5688 = vmul.f32 %v5030, %v5612
        %v5689 = vmul.f32 %v5031, %v5613
        %v5690 = vmul.f32 %v5032, %v5614
        %v5691 = vmul.f32 %v5033, %v5615
        %v5692 = vmul.f32 %v5034, %v5616
        %v5693 = vmul.f32 %v5035, %v5617
        %v5694 = vmul.f32 %v5036, %v5618
        %v5695 = vmul.f32 %v5037, %v5619
        %v5696 = vmul.f32 %v5038, %v5620
        %v5697 = vmul.f32 %v5039, %v5621
        %v5698 = vmul.f32 %v5040, %v5622
        %v5699 = vmul.f32 %v5041, %v5623
        %v5700 = vmul.f32 %v5042, %v5624
        %v5701 = vmul.f32 %v5043, %v5625
        %v5702 = vmul.f32 %v5044, %v5626
        %v5703 = vmul.f32 %v5045, %v5627
        %v5704 = vmul.f32 %v5046, %v5628
        %v5705 = vmul.f32 %v5047, %v5629
        %v5706 = vmul.f32 %v5048, %v5630
        %v5707 = vmul.f32 %v5049, %v5631
        %v5708 = vmul.f32 %v5050, %v5632
        %v5709 = vmul.f32 %v5051, %v5633
        %v5710 = vmul.f32 %v5052, %v5634
        %v5711 = vmul.f32 %v5053, %v5635
        %v5712 = vmul.f32 %v5054, %v5636
        %v5713 = vmul.f32 %v5055, %v5637
        %v5714 = vmul.f32 %v5056, %v5638
        %v5715 = vsel %vm5171, %v5640, 0.0
        %v5716 = vadd.f32 %v5639, %v5715
        %5717 = vadd.xlane.f32.xlu0 %v5716
        %v5718 = vpop.xlane.xlu0 %5717
        %v5719 = vsel %vm5171, %v5642, 0.0
        %v5720 = vadd.f32 %v5641, %v5719
        %5721 = vadd.xlane.f32.xlu0 %v5720
        %v5722 = vpop.xlane.xlu0 %5721
        %v5723 = vsel %vm5171, %v5644, 0.0
        %v5724 = vadd.f32 %v5643, %v5723
        %5725 = vadd.xlane.f32.xlu0 %v5724
        %v5726 = vpop.xlane.xlu0 %5725
        %v5727 = vsel %vm5171, %v5646, 0.0
        %v5728 = vadd.f32 %v5645, %v5727
        %5729 = vadd.xlane.f32.xlu0 %v5728
        %v5730 = vpop.xlane.xlu0 %5729
        %v5731 = vsel %vm5171, %v5648, 0.0
        %v5732 = vadd.f32 %v5647, %v5731
        %5733 = vadd.xlane.f32.xlu0 %v5732
        %v5734 = vpop.xlane.xlu0 %5733
        %v5735 = vsel %vm5171, %v5650, 0.0
        %v5736 = vadd.f32 %v5649, %v5735
        %5737 = vadd.xlane.f32.xlu0 %v5736
        %v5738 = vpop.xlane.xlu0 %5737
        %v5739 = vsel %vm5171, %v5652, 0.0
        %v5740 = vadd.f32 %v5651, %v5739
        %5741 = vadd.xlane.f32.xlu0 %v5740
        %v5742 = vpop.xlane.xlu0 %5741
        %v5743 = vsel %vm5171, %v5654, 0.0
        %v5744 = vadd.f32 %v5653, %v5743
        %5745 = vadd.xlane.f32.xlu0 %v5744
        %v5746 = vpop.xlane.xlu0 %5745
        %v5747 = vsel %vm5171, %v5656, 0.0
        %v5748 = vadd.f32 %v5655, %v5747
        %5749 = vadd.xlane.f32.xlu0 %v5748
        %v5750 = vpop.xlane.xlu0 %5749
        %v5751 = vsel %vm5171, %v5658, 0.0
        %v5752 = vadd.f32 %v5657, %v5751
        %5753 = vadd.xlane.f32.xlu0 %v5752
        %v5754 = vpop.xlane.xlu0 %5753
        %v5755 = vsel %vm5171, %v5660, 0.0
        %v5756 = vadd.f32 %v5659, %v5755
        %5757 = vadd.xlane.f32.xlu0 %v5756
        %v5758 = vpop.xlane.xlu0 %5757
        %v5759 = vsel %vm5171, %v5662, 0.0
        %v5760 = vadd.f32 %v5661, %v5759
        %5761 = vadd.xlane.f32.xlu0 %v5760
        %v5762 = vpop.xlane.xlu0 %5761
        %v5763 = vsel %vm5171, %v5664, 0.0
        %v5764 = vadd.f32 %v5663, %v5763
        %5765 = vadd.xlane.f32.xlu0 %v5764
        %v5766 = vpop.xlane.xlu0 %5765
        %v5767 = vsel %vm5171, %v5666, 0.0
        %v5768 = vadd.f32 %v5665, %v5767
        %5769 = vadd.xlane.f32.xlu0 %v5768
        %v5770 = vpop.xlane.xlu0 %5769
        %v5771 = vsel %vm5171, %v5668, 0.0
        %v5772 = vadd.f32 %v5667, %v5771
        %5773 = vadd.xlane.f32.xlu0 %v5772
        %v5774 = vpop.xlane.xlu0 %5773
        %v5775 = vsel %vm5171, %v5670, 0.0
        %v5776 = vadd.f32 %v5669, %v5775
        %5777 = vadd.xlane.f32.xlu0 %v5776
        %v5778 = vpop.xlane.xlu0 %5777
        %v5779 = vsel %vm5171, %v5672, 0.0
        %v5780 = vadd.f32 %v5671, %v5779
        %5781 = vadd.xlane.f32.xlu0 %v5780
        %v5782 = vpop.xlane.xlu0 %5781
        %v5783 = vsel %vm5171, %v5674, 0.0
        %v5784 = vadd.f32 %v5673, %v5783
        %5785 = vadd.xlane.f32.xlu0 %v5784
        %v5786 = vpop.xlane.xlu0 %5785
        %v5787 = vsel %vm5244, %v5675, 0.0
        %v5788 = vsel %vm5246, %v5676, 0.0
        %v5789 = vadd.f32 %v5787, %v5788
        %5790 = vadd.xlane.f32.xlu0 %v5789
        %v5791 = vpop.xlane.xlu0 %5790
        %v5792 = vsel %vm5171, %v5678, 0.0
        %v5793 = vadd.f32 %v5677, %v5792
        %5794 = vadd.xlane.f32.xlu0 %v5793
        %v5795 = vpop.xlane.xlu0 %5794
        %v5796 = vsel %vm5171, %v5680, 0.0
        %v5797 = vadd.f32 %v5679, %v5796
        %5798 = vadd.xlane.f32.xlu0 %v5797
        %v5799 = vpop.xlane.xlu0 %5798
        %v5800 = vsel %vm5171, %v5682, 0.0
        %v5801 = vadd.f32 %v5681, %v5800
        %5802 = vadd.xlane.f32.xlu0 %v5801
        %v5803 = vpop.xlane.xlu0 %5802
        %v5804 = vsel %vm5171, %v5684, 0.0
        %v5805 = vadd.f32 %v5683, %v5804
        %5806 = vadd.xlane.f32.xlu0 %v5805
        %v5807 = vpop.xlane.xlu0 %5806
        %v5808 = vsel %vm5171, %v5686, 0.0
        %v5809 = vadd.f32 %v5685, %v5808
        %5810 = vadd.xlane.f32.xlu0 %v5809
        %v5811 = vpop.xlane.xlu0 %5810
        %v5812 = vsel %vm5171, %v5688, 0.0
        %v5813 = vadd.f32 %v5687, %v5812
        %5814 = vadd.xlane.f32.xlu0 %v5813
        %v5815 = vpop.xlane.xlu0 %5814
        %v5816 = vsel %vm5171, %v5690, 0.0
        %v5817 = vadd.f32 %v5689, %v5816
        %5818 = vadd.xlane.f32.xlu0 %v5817
        %v5819 = vpop.xlane.xlu0 %5818
        %v5820 = vsel %vm5171, %v5692, 0.0
        %v5821 = vadd.f32 %v5691, %v5820
        %5822 = vadd.xlane.f32.xlu0 %v5821
        %v5823 = vpop.xlane.xlu0 %5822
        %v5824 = vsel %vm5171, %v5694, 0.0
        %v5825 = vadd.f32 %v5693, %v5824
        %5826 = vadd.xlane.f32.xlu0 %v5825
        %v5827 = vpop.xlane.xlu0 %5826
        %v5828 = vsel %vm5171, %v5696, 0.0
        %v5829 = vadd.f32 %v5695, %v5828
        %5830 = vadd.xlane.f32.xlu0 %v5829
        %v5831 = vpop.xlane.xlu0 %5830
        %v5832 = vsel %vm5171, %v5698, 0.0
        %v5833 = vadd.f32 %v5697, %v5832
        %5834 = vadd.xlane.f32.xlu0 %v5833
        %v5835 = vpop.xlane.xlu0 %5834
        %v5836 = vsel %vm5171, %v5700, 0.0
        %v5837 = vadd.f32 %v5699, %v5836
        %5838 = vadd.xlane.f32.xlu0 %v5837
        %v5839 = vpop.xlane.xlu0 %5838
        %v5840 = vsel %vm5171, %v5702, 0.0
        %v5841 = vadd.f32 %v5701, %v5840
        %5842 = vadd.xlane.f32.xlu0 %v5841
        %v5843 = vpop.xlane.xlu0 %5842
        %v5844 = vsel %vm5171, %v5704, 0.0
        %v5845 = vadd.f32 %v5703, %v5844
        %5846 = vadd.xlane.f32.xlu0 %v5845
        %v5847 = vpop.xlane.xlu0 %5846
        %v5848 = vsel %vm5171, %v5706, 0.0
        %v5849 = vadd.f32 %v5705, %v5848
        %5850 = vadd.xlane.f32.xlu0 %v5849
        %v5851 = vpop.xlane.xlu0 %5850
        %v5852 = vsel %vm5171, %v5708, 0.0
        %v5853 = vadd.f32 %v5707, %v5852
        %5854 = vadd.xlane.f32.xlu0 %v5853
        %v5855 = vpop.xlane.xlu0 %5854
        %v5856 = vsel %vm5171, %v5710, 0.0
        %v5857 = vadd.f32 %v5709, %v5856
        %5858 = vadd.xlane.f32.xlu0 %v5857
        %v5859 = vpop.xlane.xlu0 %5858
        %v5860 = vsel %vm5171, %v5712, 0.0
        %v5861 = vadd.f32 %v5711, %v5860
        %5862 = vadd.xlane.f32.xlu0 %v5861
        %v5863 = vpop.xlane.xlu0 %5862
        %v5864 = vsel %vm5244, %v5713, 0.0
        %v5865 = vsel %vm5246, %v5714, 0.0
        %v5866 = vadd.f32 %v5864, %v5865
        %5867 = vadd.xlane.f32.xlu0 %v5866
        %v5868 = vpop.xlane.xlu0 %5867
        %v5907 = vlaneseq
        %v5908 = vshrl.u32 %v5907, 7
        %v5909 = vsub.s32 %v5367, %v5908
        %v5910 = vrot.slane %v5718, %v5909
        %v5911 = vlaneseq
        %v5912 = vshrl.u32 %v5911, 7
        %v5913 = vsub.s32 %v5372, %v5912
        %v5914 = vrot.slane %v5722, %v5913
        %v5915 = vsel %vm5377, %v5914, %v5910
        %v5916 = vlaneseq
        %v5917 = vshrl.u32 %v5916, 7
        %v5918 = vsub.s32 %v5379, %v5917
        %v5919 = vrot.slane %v5726, %v5918
        %v5920 = vsel %vm5384, %v5919, %v5915
        %v5921 = vlaneseq
        %v5922 = vshrl.u32 %v5921, 7
        %v5923 = vsub.s32 %v5386, %v5922
        %v5924 = vrot.slane %v5730, %v5923
        %v5925 = vsel %vm5391, %v5924, %v5920
        %v5926 = vlaneseq
        %v5927 = vshrl.u32 %v5926, 7
        %v5928 = vsub.s32 %v5393, %v5927
        %v5929 = vrot.slane %v5734, %v5928
        %v5930 = vsel %vm5398, %v5929, %v5925
        %v5931 = vlaneseq
        %v5932 = vshrl.u32 %v5931, 7
        %v5933 = vsub.s32 %v5400, %v5932
        %v5934 = vrot.slane %v5738, %v5933
        %v5935 = vsel %vm5405, %v5934, %v5930
        %v5936 = vlaneseq
        %v5937 = vshrl.u32 %v5936, 7
        %v5938 = vsub.s32 %v5407, %v5937
        %v5939 = vrot.slane %v5742, %v5938
        %v5940 = vsel %vm5412, %v5939, %v5935
        %v5941 = vlaneseq
        %v5942 = vshrl.u32 %v5941, 7
        %v5943 = vsub.s32 %v5414, %v5942
        %v5944 = vrot.slane %v5746, %v5943
        %v5945 = vsel %vm5419, %v5944, %v5940
        %v5946 = vlaneseq
        %v5947 = vshrl.u32 %v5946, 7
        %v5948 = vsub.s32 %v5421, %v5947
        %v5949 = vrot.slane %v5750, %v5948
        %v5950 = vsel %vm5426, %v5949, %v5945
        %v5951 = vlaneseq
        %v5952 = vshrl.u32 %v5951, 7
        %v5953 = vsub.s32 %v5428, %v5952
        %v5954 = vrot.slane %v5754, %v5953
        %v5955 = vsel %vm5433, %v5954, %v5950
        %v5956 = vlaneseq
        %v5957 = vshrl.u32 %v5956, 7
        %v5958 = vsub.s32 %v5435, %v5957
        %v5959 = vrot.slane %v5758, %v5958
        %v5960 = vsel %vm5440, %v5959, %v5955
        %v5961 = vlaneseq
        %v5962 = vshrl.u32 %v5961, 7
        %v5963 = vsub.s32 %v5442, %v5962
        %v5964 = vrot.slane %v5762, %v5963
        %v5965 = vsel %vm5447, %v5964, %v5960
        %v5966 = vlaneseq
        %v5967 = vshrl.u32 %v5966, 7
        %v5968 = vsub.s32 %v5449, %v5967
        %v5969 = vrot.slane %v5766, %v5968
        %v5970 = vsel %vm5454, %v5969, %v5965
        %v5971 = vlaneseq
        %v5972 = vshrl.u32 %v5971, 7
        %v5973 = vsub.s32 %v5456, %v5972
        %v5974 = vrot.slane %v5770, %v5973
        %v5975 = vsel %vm5461, %v5974, %v5970
        %v5976 = vlaneseq
        %v5977 = vshrl.u32 %v5976, 7
        %v5978 = vsub.s32 %v5463, %v5977
        %v5979 = vrot.slane %v5774, %v5978
        %v5980 = vsel %vm5468, %v5979, %v5975
        %v5981 = vlaneseq
        %v5982 = vshrl.u32 %v5981, 7
        %v5983 = vsub.s32 %v5470, %v5982
        %v5984 = vrot.slane %v5778, %v5983
        %v5985 = vsel %vm5475, %v5984, %v5980
        %v5986 = vlaneseq
        %v5987 = vshrl.u32 %v5986, 7
        %v5988 = vsub.s32 %v5367, %v5987
        %v5989 = vrot.slane %v5782, %v5988
        %v5990 = vlaneseq
        %v5991 = vshrl.u32 %v5990, 7
        %v5992 = vsub.s32 %v5372, %v5991
        %v5993 = vrot.slane %v5786, %v5992
        %v5994 = vsel %vm5377, %v5993, %v5989
        %v5995 = vlaneseq
        %v5996 = vshrl.u32 %v5995, 7
        %v5997 = vsub.s32 %v5379, %v5996
        %v5998 = vrot.slane %v5791, %v5997
        %v5999 = vsel %vm5384, %v5998, %v5994
        %v6000 = vlaneseq
        %v6001 = vshrl.u32 %v6000, 7
        %v6002 = vsub.s32 %v5367, %v6001
        %v6003 = vrot.slane %v5795, %v6002
        %v6004 = vlaneseq
        %v6005 = vshrl.u32 %v6004, 7
        %v6006 = vsub.s32 %v5372, %v6005
        %v6007 = vrot.slane %v5799, %v6006
        %v6008 = vsel %vm5377, %v6007, %v6003
        %v6009 = vlaneseq
        %v6010 = vshrl.u32 %v6009, 7
        %v6011 = vsub.s32 %v5379, %v6010
        %v6012 = vrot.slane %v5803, %v6011
        %v6013 = vsel %vm5384, %v6012, %v6008
        %v6014 = vlaneseq
        %v6015 = vshrl.u32 %v6014, 7
        %v6016 = vsub.s32 %v5386, %v6015
        %v6017 = vrot.slane %v5807, %v6016
        %v6018 = vsel %vm5391, %v6017, %v6013
        %v6019 = vlaneseq
        %v6020 = vshrl.u32 %v6019, 7
        %v6021 = vsub.s32 %v5393, %v6020
        %v6022 = vrot.slane %v5811, %v6021
        %v6023 = vsel %vm5398, %v6022, %v6018
        %v6024 = vlaneseq
        %v6025 = vshrl.u32 %v6024, 7
        %v6026 = vsub.s32 %v5400, %v6025
        %v6027 = vrot.slane %v5815, %v6026
        %v6028 = vsel %vm5405, %v6027, %v6023
        %v6029 = vlaneseq
        %v6030 = vshrl.u32 %v6029, 7
        %v6031 = vsub.s32 %v5407, %v6030
        %v6032 = vrot.slane %v5819, %v6031
        %v6033 = vsel %vm5412, %v6032, %v6028
        %v6034 = vlaneseq
        %v6035 = vshrl.u32 %v6034, 7
        %v6036 = vsub.s32 %v5414, %v6035
        %v6037 = vrot.slane %v5823, %v6036
        %v6038 = vsel %vm5419, %v6037, %v6033
        %v6039 = vlaneseq
        %v6040 = vshrl.u32 %v6039, 7
        %v6041 = vsub.s32 %v5421, %v6040
        %v6042 = vrot.slane %v5827, %v6041
        %v6043 = vsel %vm5426, %v6042, %v6038
        %v6044 = vlaneseq
        %v6045 = vshrl.u32 %v6044, 7
        %v6046 = vsub.s32 %v5428, %v6045
        %v6047 = vrot.slane %v5831, %v6046
        %v6048 = vsel %vm5433, %v6047, %v6043
        %v6049 = vlaneseq
        %v6050 = vshrl.u32 %v6049, 7
        %v6051 = vsub.s32 %v5435, %v6050
        %v6052 = vrot.slane %v5835, %v6051
        %v6053 = vsel %vm5440, %v6052, %v6048
        %v6054 = vlaneseq
        %v6055 = vshrl.u32 %v6054, 7
        %v6056 = vsub.s32 %v5442, %v6055
        %v6057 = vrot.slane %v5839, %v6056
        %v6058 = vsel %vm5447, %v6057, %v6053
        %v6059 = vlaneseq
        %v6060 = vshrl.u32 %v6059, 7
        %v6061 = vsub.s32 %v5449, %v6060
        %v6062 = vrot.slane %v5843, %v6061
        %v6063 = vsel %vm5454, %v6062, %v6058
        %v6064 = vlaneseq
        %v6065 = vshrl.u32 %v6064, 7
        %v6066 = vsub.s32 %v5456, %v6065
        %v6067 = vrot.slane %v5847, %v6066
        %v6068 = vsel %vm5461, %v6067, %v6063
        %v6069 = vlaneseq
        %v6070 = vshrl.u32 %v6069, 7
        %v6071 = vsub.s32 %v5463, %v6070
        %v6072 = vrot.slane %v5851, %v6071
        %v6073 = vsel %vm5468, %v6072, %v6068
        %v6074 = vlaneseq
        %v6075 = vshrl.u32 %v6074, 7
        %v6076 = vsub.s32 %v5470, %v6075
        %v6077 = vrot.slane %v5855, %v6076
        %v6078 = vsel %vm5475, %v6077, %v6073
        %v6079 = vlaneseq
        %v6080 = vshrl.u32 %v6079, 7
        %v6081 = vsub.s32 %v5367, %v6080
        %v6082 = vrot.slane %v5859, %v6081
        %v6083 = vlaneseq
        %v6084 = vshrl.u32 %v6083, 7
        %v6085 = vsub.s32 %v5372, %v6084
        %v6086 = vrot.slane %v5863, %v6085
        %v6087 = vsel %vm5377, %v6086, %v6082
        %v6088 = vlaneseq
        %v6089 = vshrl.u32 %v6088, 7
        %v6090 = vsub.s32 %v5379, %v6089
        %v6091 = vrot.slane %v5868, %v6090
        %v6092 = vsel %vm5384, %v6091, %v6087
        %v6093 = vsel %vm5584, %v6078, %v5985
        %v6094 = vsel %vm5584, %v6092, %v5999
        %v6097 = vsel %vm5589, %v6093, 0.0
        %v6098 = vsel %vm5591, %v6094, 0.0
        %v6099 = vadd.f32 %v6097, %v6098
        %6100 = vadd.xlane.f32.xlu0 %v6099
        %v6101 = vpop.xlane.xlu0 %6100
        %v6102 = vld [vmem:[#allocation2] sm:$0x3]
        %v6103 = vadd.f32 %v6102, %v6101
        %vm6104 = vcmask 9224
        %6105 = vst.msk [vmem:[#allocation2] sm:$0x3] %vm6104, %v6103
        %s6106 = scalar_lea.vmem %s237, 608
        %v6107 = vld [vmem:[%s6106] sm:$0xff]
        %v6108 = vld [vmem:[%s6106 + $0x8] sm:$0xff]
        %v6109 = vld [vmem:[%s6106 + $0x10] sm:$0xff]
        %v6110 = vld [vmem:[%s6106 + $0x18] sm:$0xff]
        %v6111 = vld [vmem:[%s6106 + $0x20] sm:$0xff]
        %v6112 = vld [vmem:[%s6106 + $0x28] sm:$0xff]
        %v6113 = vld [vmem:[%s6106 + $0x30] sm:$0xff]
        %v6114 = vld [vmem:[%s6106 + $0x38] sm:$0xff]
        %v6115 = vld [vmem:[%s6106 + $0x40] sm:$0xff]
        %v6116 = vld [vmem:[%s6106 + $0x48] sm:$0xff]
        %v6117 = vld [vmem:[%s6106 + $0x50] sm:$0xff]
        %v6118 = vld [vmem:[%s6106 + $0x58] sm:$0xff]
        %v6119 = vld [vmem:[%s6106 + $0x60] sm:$0xff]
        %v6120 = vld [vmem:[%s6106 + $0x68] sm:$0xff]
        %v6121 = vld [vmem:[%s6106 + $0x70] sm:$0xff]
        %v6122 = vld [vmem:[%s6106 + $0x78] sm:$0xff]
        %v6123 = vld [vmem:[%s6106 + $0x80] sm:$0xff]
        %v6124 = vld [vmem:[%s6106 + $0x88] sm:$0xff]
        %v6125 = vld [vmem:[%s6106 + $0x90] sm:$0xff]
        %v6126 = vld [vmem:[%s6106 + $0x98] sm:$0xff]
        %v6127 = vld [vmem:[%s6106 + $0xa0] sm:$0xff]
        %v6128 = vld [vmem:[%s6106 + $0xa8] sm:$0xff]
        %v6129 = vld [vmem:[%s6106 + $0xb0] sm:$0xff]
        %v6130 = vld [vmem:[%s6106 + $0xb8] sm:$0xff]
        %v6131 = vld [vmem:[%s6106 + $0xc0] sm:$0xff]
        %v6132 = vld [vmem:[%s6106 + $0xc8] sm:$0xff]
        %v6133 = vld [vmem:[%s6106 + $0xd0] sm:$0xff]
        %v6134 = vld [vmem:[%s6106 + $0xd8] sm:$0xff]
        %v6135 = vld [vmem:[%s6106 + $0xe0] sm:$0xff]
        %v6136 = vld [vmem:[%s6106 + $0xe8] sm:$0xff]
        %v6137 = vld [vmem:[%s6106 + $0xf0] sm:$0xff]
        %v6138 = vld [vmem:[%s6106 + $0xf8] sm:$0xff]
        %v6139 = vld [vmem:[%s6106 + $0x100] sm:$0xff]
        %v6140 = vld [vmem:[%s6106 + $0x108] sm:$0xff]
        %v6141 = vld [vmem:[%s6106 + $0x110] sm:$0xff]
        %v6142 = vld [vmem:[%s6106 + $0x118] sm:$0xff]
        %v6143 = vld [vmem:[%s6106 + $0x120] sm:$0xf]
        %v6144 = vld [vmem:[%s6106 + $0x128] sm:$0xf]
        %v6145 = vmul.f32 %v4981, %v6107
        %v6146 = vmul.f32 %v4982, %v6108
        %v6147 = vmul.f32 %v4983, %v6109
        %v6148 = vmul.f32 %v4984, %v6110
        %v6149 = vmul.f32 %v4985, %v6111
        %v6150 = vmul.f32 %v4986, %v6112
        %v6151 = vmul.f32 %v4987, %v6113
        %v6152 = vmul.f32 %v4988, %v6114
        %v6153 = vmul.f32 %v4989, %v6115
        %v6154 = vmul.f32 %v4990, %v6116
        %v6155 = vmul.f32 %v4991, %v6117
        %v6156 = vmul.f32 %v4992, %v6118
        %v6157 = vmul.f32 %v4993, %v6119
        %v6158 = vmul.f32 %v4994, %v6120
        %v6159 = vmul.f32 %v4995, %v6121
        %v6160 = vmul.f32 %v4996, %v6122
        %v6161 = vmul.f32 %v4997, %v6123
        %v6162 = vmul.f32 %v4998, %v6124
        %v6163 = vmul.f32 %v4999, %v6125
        %v6164 = vmul.f32 %v5000, %v6126
        %v6165 = vmul.f32 %v5001, %v6127
        %v6166 = vmul.f32 %v5002, %v6128
        %v6167 = vmul.f32 %v5003, %v6129
        %v6168 = vmul.f32 %v5004, %v6130
        %v6169 = vmul.f32 %v5005, %v6131
        %v6170 = vmul.f32 %v5006, %v6132
        %v6171 = vmul.f32 %v5007, %v6133
        %v6172 = vmul.f32 %v5008, %v6134
        %v6173 = vmul.f32 %v5009, %v6135
        %v6174 = vmul.f32 %v5010, %v6136
        %v6175 = vmul.f32 %v5011, %v6137
        %v6176 = vmul.f32 %v5012, %v6138
        %v6177 = vmul.f32 %v5013, %v6139
        %v6178 = vmul.f32 %v5014, %v6140
        %v6179 = vmul.f32 %v5015, %v6141
        %v6180 = vmul.f32 %v5016, %v6142
        %v6181 = vmul.f32 %v5017, %v6143
        %v6182 = vmul.f32 %v5018, %v6144
        %v6183 = vmul.f32 %v5019, %v6107
        %v6184 = vmul.f32 %v5020, %v6108
        %v6185 = vmul.f32 %v5021, %v6109
        %v6186 = vmul.f32 %v5022, %v6110
        %v6187 = vmul.f32 %v5023, %v6111
        %v6188 = vmul.f32 %v5024, %v6112
        %v6189 = vmul.f32 %v5025, %v6113
        %v6190 = vmul.f32 %v5026, %v6114
        %v6191 = vmul.f32 %v5027, %v6115
        %v6192 = vmul.f32 %v5028, %v6116
        %v6193 = vmul.f32 %v5029, %v6117
        %v6194 = vmul.f32 %v5030, %v6118
        %v6195 = vmul.f32 %v5031, %v6119
        %v6196 = vmul.f32 %v5032, %v6120
        %v6197 = vmul.f32 %v5033, %v6121
        %v6198 = vmul.f32 %v5034, %v6122
        %v6199 = vmul.f32 %v5035, %v6123
        %v6200 = vmul.f32 %v5036, %v6124
        %v6201 = vmul.f32 %v5037, %v6125
        %v6202 = vmul.f32 %v5038, %v6126
        %v6203 = vmul.f32 %v5039, %v6127
        %v6204 = vmul.f32 %v5040, %v6128
        %v6205 = vmul.f32 %v5041, %v6129
        %v6206 = vmul.f32 %v5042, %v6130
        %v6207 = vmul.f32 %v5043, %v6131
        %v6208 = vmul.f32 %v5044, %v6132
        %v6209 = vmul.f32 %v5045, %v6133
        %v6210 = vmul.f32 %v5046, %v6134
        %v6211 = vmul.f32 %v5047, %v6135
        %v6212 = vmul.f32 %v5048, %v6136
        %v6213 = vmul.f32 %v5049, %v6137
        %v6214 = vmul.f32 %v5050, %v6138
        %v6215 = vmul.f32 %v5051, %v6139
        %v6216 = vmul.f32 %v5052, %v6140
        %v6217 = vmul.f32 %v5053, %v6141
        %v6218 = vmul.f32 %v5054, %v6142
        %v6219 = vmul.f32 %v5055, %v6143
        %v6220 = vmul.f32 %v5056, %v6144
        %v6221 = vsel %vm5171, %v6146, 0.0
        %v6222 = vadd.f32 %v6145, %v6221
        %6223 = vadd.xlane.f32.xlu0 %v6222
        %v6224 = vpop.xlane.xlu0 %6223
        %v6225 = vsel %vm5171, %v6148, 0.0
        %v6226 = vadd.f32 %v6147, %v6225
        %6227 = vadd.xlane.f32.xlu0 %v6226
        %v6228 = vpop.xlane.xlu0 %6227
        %v6229 = vsel %vm5171, %v6150, 0.0
        %v6230 = vadd.f32 %v6149, %v6229
        %6231 = vadd.xlane.f32.xlu0 %v6230
        %v6232 = vpop.xlane.xlu0 %6231
        %v6233 = vsel %vm5171, %v6152, 0.0
        %v6234 = vadd.f32 %v6151, %v6233
        %6235 = vadd.xlane.f32.xlu0 %v6234
        %v6236 = vpop.xlane.xlu0 %6235
        %v6237 = vsel %vm5171, %v6154, 0.0
        %v6238 = vadd.f32 %v6153, %v6237
        %6239 = vadd.xlane.f32.xlu0 %v6238
        %v6240 = vpop.xlane.xlu0 %6239
        %v6241 = vsel %vm5171, %v6156, 0.0
        %v6242 = vadd.f32 %v6155, %v6241
        %6243 = vadd.xlane.f32.xlu0 %v6242
        %v6244 = vpop.xlane.xlu0 %6243
        %v6245 = vsel %vm5171, %v6158, 0.0
        %v6246 = vadd.f32 %v6157, %v6245
        %6247 = vadd.xlane.f32.xlu0 %v6246
        %v6248 = vpop.xlane.xlu0 %6247
        %v6249 = vsel %vm5171, %v6160, 0.0
        %v6250 = vadd.f32 %v6159, %v6249
        %6251 = vadd.xlane.f32.xlu0 %v6250
        %v6252 = vpop.xlane.xlu0 %6251
        %v6253 = vsel %vm5171, %v6162, 0.0
        %v6254 = vadd.f32 %v6161, %v6253
        %6255 = vadd.xlane.f32.xlu0 %v6254
        %v6256 = vpop.xlane.xlu0 %6255
        %v6257 = vsel %vm5171, %v6164, 0.0
        %v6258 = vadd.f32 %v6163, %v6257
        %6259 = vadd.xlane.f32.xlu0 %v6258
        %v6260 = vpop.xlane.xlu0 %6259
        %v6261 = vsel %vm5171, %v6166, 0.0
        %v6262 = vadd.f32 %v6165, %v6261
        %6263 = vadd.xlane.f32.xlu0 %v6262
        %v6264 = vpop.xlane.xlu0 %6263
        %v6265 = vsel %vm5171, %v6168, 0.0
        %v6266 = vadd.f32 %v6167, %v6265
        %6267 = vadd.xlane.f32.xlu0 %v6266
        %v6268 = vpop.xlane.xlu0 %6267
        %v6269 = vsel %vm5171, %v6170, 0.0
        %v6270 = vadd.f32 %v6169, %v6269
        %6271 = vadd.xlane.f32.xlu0 %v6270
        %v6272 = vpop.xlane.xlu0 %6271
        %v6273 = vsel %vm5171, %v6172, 0.0
        %v6274 = vadd.f32 %v6171, %v6273
        %6275 = vadd.xlane.f32.xlu0 %v6274
        %v6276 = vpop.xlane.xlu0 %6275
        %v6277 = vsel %vm5171, %v6174, 0.0
        %v6278 = vadd.f32 %v6173, %v6277
        %6279 = vadd.xlane.f32.xlu0 %v6278
        %v6280 = vpop.xlane.xlu0 %6279
        %v6281 = vsel %vm5171, %v6176, 0.0
        %v6282 = vadd.f32 %v6175, %v6281
        %6283 = vadd.xlane.f32.xlu0 %v6282
        %v6284 = vpop.xlane.xlu0 %6283
        %v6285 = vsel %vm5171, %v6178, 0.0
        %v6286 = vadd.f32 %v6177, %v6285
        %6287 = vadd.xlane.f32.xlu0 %v6286
        %v6288 = vpop.xlane.xlu0 %6287
        %v6289 = vsel %vm5171, %v6180, 0.0
        %v6290 = vadd.f32 %v6179, %v6289
        %6291 = vadd.xlane.f32.xlu0 %v6290
        %v6292 = vpop.xlane.xlu0 %6291
        %v6293 = vsel %vm5244, %v6181, 0.0
        %v6294 = vsel %vm5246, %v6182, 0.0
        %v6295 = vadd.f32 %v6293, %v6294
        %6296 = vadd.xlane.f32.xlu0 %v6295
        %v6297 = vpop.xlane.xlu0 %6296
        %v6298 = vsel %vm5171, %v6184, 0.0
        %v6299 = vadd.f32 %v6183, %v6298
        %6300 = vadd.xlane.f32.xlu0 %v6299
        %v6301 = vpop.xlane.xlu0 %6300
        %v6302 = vsel %vm5171, %v6186, 0.0
        %v6303 = vadd.f32 %v6185, %v6302
        %6304 = vadd.xlane.f32.xlu0 %v6303
        %v6305 = vpop.xlane.xlu0 %6304
        %v6306 = vsel %vm5171, %v6188, 0.0
        %v6307 = vadd.f32 %v6187, %v6306
        %6308 = vadd.xlane.f32.xlu0 %v6307
        %v6309 = vpop.xlane.xlu0 %6308
        %v6310 = vsel %vm5171, %v6190, 0.0
        %v6311 = vadd.f32 %v6189, %v6310
        %6312 = vadd.xlane.f32.xlu0 %v6311
        %v6313 = vpop.xlane.xlu0 %6312
        %v6314 = vsel %vm5171, %v6192, 0.0
        %v6315 = vadd.f32 %v6191, %v6314
        %6316 = vadd.xlane.f32.xlu0 %v6315
        %v6317 = vpop.xlane.xlu0 %6316
        %v6318 = vsel %vm5171, %v6194, 0.0
        %v6319 = vadd.f32 %v6193, %v6318
        %6320 = vadd.xlane.f32.xlu0 %v6319
        %v6321 = vpop.xlane.xlu0 %6320
        %v6322 = vsel %vm5171, %v6196, 0.0
        %v6323 = vadd.f32 %v6195, %v6322
        %6324 = vadd.xlane.f32.xlu0 %v6323
        %v6325 = vpop.xlane.xlu0 %6324
        %v6326 = vsel %vm5171, %v6198, 0.0
        %v6327 = vadd.f32 %v6197, %v6326
        %6328 = vadd.xlane.f32.xlu0 %v6327
        %v6329 = vpop.xlane.xlu0 %6328
        %v6330 = vsel %vm5171, %v6200, 0.0
        %v6331 = vadd.f32 %v6199, %v6330
        %6332 = vadd.xlane.f32.xlu0 %v6331
        %v6333 = vpop.xlane.xlu0 %6332
        %v6334 = vsel %vm5171, %v6202, 0.0
        %v6335 = vadd.f32 %v6201, %v6334
        %6336 = vadd.xlane.f32.xlu0 %v6335
        %v6337 = vpop.xlane.xlu0 %6336
        %v6338 = vsel %vm5171, %v6204, 0.0
        %v6339 = vadd.f32 %v6203, %v6338
        %6340 = vadd.xlane.f32.xlu0 %v6339
        %v6341 = vpop.xlane.xlu0 %6340
        %v6342 = vsel %vm5171, %v6206, 0.0
        %v6343 = vadd.f32 %v6205, %v6342
        %6344 = vadd.xlane.f32.xlu0 %v6343
        %v6345 = vpop.xlane.xlu0 %6344
        %v6346 = vsel %vm5171, %v6208, 0.0
        %v6347 = vadd.f32 %v6207, %v6346
        %6348 = vadd.xlane.f32.xlu0 %v6347
        %v6349 = vpop.xlane.xlu0 %6348
        %v6350 = vsel %vm5171, %v6210, 0.0
        %v6351 = vadd.f32 %v6209, %v6350
        %6352 = vadd.xlane.f32.xlu0 %v6351
        %v6353 = vpop.xlane.xlu0 %6352
        %v6354 = vsel %vm5171, %v6212, 0.0
        %v6355 = vadd.f32 %v6211, %v6354
        %6356 = vadd.xlane.f32.xlu0 %v6355
        %v6357 = vpop.xlane.xlu0 %6356
        %v6358 = vsel %vm5171, %v6214, 0.0
        %v6359 = vadd.f32 %v6213, %v6358
        %6360 = vadd.xlane.f32.xlu0 %v6359
        %v6361 = vpop.xlane.xlu0 %6360
        %v6362 = vsel %vm5171, %v6216, 0.0
        %v6363 = vadd.f32 %v6215, %v6362
        %6364 = vadd.xlane.f32.xlu0 %v6363
        %v6365 = vpop.xlane.xlu0 %6364
        %v6366 = vsel %vm5171, %v6218, 0.0
        %v6367 = vadd.f32 %v6217, %v6366
        %6368 = vadd.xlane.f32.xlu0 %v6367
        %v6369 = vpop.xlane.xlu0 %6368
        %v6370 = vsel %vm5244, %v6219, 0.0
        %v6371 = vsel %vm5246, %v6220, 0.0
        %v6372 = vadd.f32 %v6370, %v6371
        %6373 = vadd.xlane.f32.xlu0 %v6372
        %v6374 = vpop.xlane.xlu0 %6373
        %v6413 = vlaneseq
        %v6414 = vshrl.u32 %v6413, 7
        %v6415 = vsub.s32 %v5367, %v6414
        %v6416 = vrot.slane %v6224, %v6415
        %v6417 = vlaneseq
        %v6418 = vshrl.u32 %v6417, 7
        %v6419 = vsub.s32 %v5372, %v6418
        %v6420 = vrot.slane %v6228, %v6419
        %v6421 = vsel %vm5377, %v6420, %v6416
        %v6422 = vlaneseq
        %v6423 = vshrl.u32 %v6422, 7
        %v6424 = vsub.s32 %v5379, %v6423
        %v6425 = vrot.slane %v6232, %v6424
        %v6426 = vsel %vm5384, %v6425, %v6421
        %v6427 = vlaneseq
        %v6428 = vshrl.u32 %v6427, 7
        %v6429 = vsub.s32 %v5386, %v6428
        %v6430 = vrot.slane %v6236, %v6429
        %v6431 = vsel %vm5391, %v6430, %v6426
        %v6432 = vlaneseq
        %v6433 = vshrl.u32 %v6432, 7
        %v6434 = vsub.s32 %v5393, %v6433
        %v6435 = vrot.slane %v6240, %v6434
        %v6436 = vsel %vm5398, %v6435, %v6431
        %v6437 = vlaneseq
        %v6438 = vshrl.u32 %v6437, 7
        %v6439 = vsub.s32 %v5400, %v6438
        %v6440 = vrot.slane %v6244, %v6439
        %v6441 = vsel %vm5405, %v6440, %v6436
        %v6442 = vlaneseq
        %v6443 = vshrl.u32 %v6442, 7
        %v6444 = vsub.s32 %v5407, %v6443
        %v6445 = vrot.slane %v6248, %v6444
        %v6446 = vsel %vm5412, %v6445, %v6441
        %v6447 = vlaneseq
        %v6448 = vshrl.u32 %v6447, 7
        %v6449 = vsub.s32 %v5414, %v6448
        %v6450 = vrot.slane %v6252, %v6449
        %v6451 = vsel %vm5419, %v6450, %v6446
        %v6452 = vlaneseq
        %v6453 = vshrl.u32 %v6452, 7
        %v6454 = vsub.s32 %v5421, %v6453
        %v6455 = vrot.slane %v6256, %v6454
        %v6456 = vsel %vm5426, %v6455, %v6451
        %v6457 = vlaneseq
        %v6458 = vshrl.u32 %v6457, 7
        %v6459 = vsub.s32 %v5428, %v6458
        %v6460 = vrot.slane %v6260, %v6459
        %v6461 = vsel %vm5433, %v6460, %v6456
        %v6462 = vlaneseq
        %v6463 = vshrl.u32 %v6462, 7
        %v6464 = vsub.s32 %v5435, %v6463
        %v6465 = vrot.slane %v6264, %v6464
        %v6466 = vsel %vm5440, %v6465, %v6461
        %v6467 = vlaneseq
        %v6468 = vshrl.u32 %v6467, 7
        %v6469 = vsub.s32 %v5442, %v6468
        %v6470 = vrot.slane %v6268, %v6469
        %v6471 = vsel %vm5447, %v6470, %v6466
        %v6472 = vlaneseq
        %v6473 = vshrl.u32 %v6472, 7
        %v6474 = vsub.s32 %v5449, %v6473
        %v6475 = vrot.slane %v6272, %v6474
        %v6476 = vsel %vm5454, %v6475, %v6471
        %v6477 = vlaneseq
        %v6478 = vshrl.u32 %v6477, 7
        %v6479 = vsub.s32 %v5456, %v6478
        %v6480 = vrot.slane %v6276, %v6479
        %v6481 = vsel %vm5461, %v6480, %v6476
        %v6482 = vlaneseq
        %v6483 = vshrl.u32 %v6482, 7
        %v6484 = vsub.s32 %v5463, %v6483
        %v6485 = vrot.slane %v6280, %v6484
        %v6486 = vsel %vm5468, %v6485, %v6481
        %v6487 = vlaneseq
        %v6488 = vshrl.u32 %v6487, 7
        %v6489 = vsub.s32 %v5470, %v6488
        %v6490 = vrot.slane %v6284, %v6489
        %v6491 = vsel %vm5475, %v6490, %v6486
        %v6492 = vlaneseq
        %v6493 = vshrl.u32 %v6492, 7
        %v6494 = vsub.s32 %v5367, %v6493
        %v6495 = vrot.slane %v6288, %v6494
        %v6496 = vlaneseq
        %v6497 = vshrl.u32 %v6496, 7
        %v6498 = vsub.s32 %v5372, %v6497
        %v6499 = vrot.slane %v6292, %v6498
        %v6500 = vsel %vm5377, %v6499, %v6495
        %v6501 = vlaneseq
        %v6502 = vshrl.u32 %v6501, 7
        %v6503 = vsub.s32 %v5379, %v6502
        %v6504 = vrot.slane %v6297, %v6503
        %v6505 = vsel %vm5384, %v6504, %v6500
        %v6506 = vlaneseq
        %v6507 = vshrl.u32 %v6506, 7
        %v6508 = vsub.s32 %v5367, %v6507
        %v6509 = vrot.slane %v6301, %v6508
        %v6510 = vlaneseq
        %v6511 = vshrl.u32 %v6510, 7
        %v6512 = vsub.s32 %v5372, %v6511
        %v6513 = vrot.slane %v6305, %v6512
        %v6514 = vsel %vm5377, %v6513, %v6509
        %v6515 = vlaneseq
        %v6516 = vshrl.u32 %v6515, 7
        %v6517 = vsub.s32 %v5379, %v6516
        %v6518 = vrot.slane %v6309, %v6517
        %v6519 = vsel %vm5384, %v6518, %v6514
        %v6520 = vlaneseq
        %v6521 = vshrl.u32 %v6520, 7
        %v6522 = vsub.s32 %v5386, %v6521
        %v6523 = vrot.slane %v6313, %v6522
        %v6524 = vsel %vm5391, %v6523, %v6519
        %v6525 = vlaneseq
        %v6526 = vshrl.u32 %v6525, 7
        %v6527 = vsub.s32 %v5393, %v6526
        %v6528 = vrot.slane %v6317, %v6527
        %v6529 = vsel %vm5398, %v6528, %v6524
        %v6530 = vlaneseq
        %v6531 = vshrl.u32 %v6530, 7
        %v6532 = vsub.s32 %v5400, %v6531
        %v6533 = vrot.slane %v6321, %v6532
        %v6534 = vsel %vm5405, %v6533, %v6529
        %v6535 = vlaneseq
        %v6536 = vshrl.u32 %v6535, 7
        %v6537 = vsub.s32 %v5407, %v6536
        %v6538 = vrot.slane %v6325, %v6537
        %v6539 = vsel %vm5412, %v6538, %v6534
        %v6540 = vlaneseq
        %v6541 = vshrl.u32 %v6540, 7
        %v6542 = vsub.s32 %v5414, %v6541
        %v6543 = vrot.slane %v6329, %v6542
        %v6544 = vsel %vm5419, %v6543, %v6539
        %v6545 = vlaneseq
        %v6546 = vshrl.u32 %v6545, 7
        %v6547 = vsub.s32 %v5421, %v6546
        %v6548 = vrot.slane %v6333, %v6547
        %v6549 = vsel %vm5426, %v6548, %v6544
        %v6550 = vlaneseq
        %v6551 = vshrl.u32 %v6550, 7
        %v6552 = vsub.s32 %v5428, %v6551
        %v6553 = vrot.slane %v6337, %v6552
        %v6554 = vsel %vm5433, %v6553, %v6549
        %v6555 = vlaneseq
        %v6556 = vshrl.u32 %v6555, 7
        %v6557 = vsub.s32 %v5435, %v6556
        %v6558 = vrot.slane %v6341, %v6557
        %v6559 = vsel %vm5440, %v6558, %v6554
        %v6560 = vlaneseq
        %v6561 = vshrl.u32 %v6560, 7
        %v6562 = vsub.s32 %v5442, %v6561
        %v6563 = vrot.slane %v6345, %v6562
        %v6564 = vsel %vm5447, %v6563, %v6559
        %v6565 = vlaneseq
        %v6566 = vshrl.u32 %v6565, 7
        %v6567 = vsub.s32 %v5449, %v6566
        %v6568 = vrot.slane %v6349, %v6567
        %v6569 = vsel %vm5454, %v6568, %v6564
        %v6570 = vlaneseq
        %v6571 = vshrl.u32 %v6570, 7
        %v6572 = vsub.s32 %v5456, %v6571
        %v6573 = vrot.slane %v6353, %v6572
        %v6574 = vsel %vm5461, %v6573, %v6569
        %v6575 = vlaneseq
        %v6576 = vshrl.u32 %v6575, 7
        %v6577 = vsub.s32 %v5463, %v6576
        %v6578 = vrot.slane %v6357, %v6577
        %v6579 = vsel %vm5468, %v6578, %v6574
        %v6580 = vlaneseq
        %v6581 = vshrl.u32 %v6580, 7
        %v6582 = vsub.s32 %v5470, %v6581
        %v6583 = vrot.slane %v6361, %v6582
        %v6584 = vsel %vm5475, %v6583, %v6579
        %v6585 = vlaneseq
        %v6586 = vshrl.u32 %v6585, 7
        %v6587 = vsub.s32 %v5367, %v6586
        %v6588 = vrot.slane %v6365, %v6587
        %v6589 = vlaneseq
        %v6590 = vshrl.u32 %v6589, 7
        %v6591 = vsub.s32 %v5372, %v6590
        %v6592 = vrot.slane %v6369, %v6591
        %v6593 = vsel %vm5377, %v6592, %v6588
        %v6594 = vlaneseq
        %v6595 = vshrl.u32 %v6594, 7
        %v6596 = vsub.s32 %v5379, %v6595
        %v6597 = vrot.slane %v6374, %v6596
        %v6598 = vsel %vm5384, %v6597, %v6593
        %v6599 = vsel %vm5584, %v6584, %v6491
        %v6600 = vsel %vm5584, %v6598, %v6505
        %v6603 = vsel %vm5589, %v6599, 0.0
        %v6604 = vsel %vm5591, %v6600, 0.0
        %v6605 = vadd.f32 %v6603, %v6604
        %6606 = vadd.xlane.f32.xlu0 %v6605
        %v6607 = vpop.xlane.xlu0 %6606
        %v6608 = vld [vmem:[#allocation2] sm:$0x3]
        %v6609 = vadd.f32 %v6608, %v6607
        %vm6610 = vcmask 17424
        %6611 = vst.msk [vmem:[#allocation2] sm:$0x3] %vm6610, %v6609
        %p6612 = scmp.eq.s32.totalorder %s19, 3
        // Predicated region
        $region53: #{forward.1} parent=39 // pred_check
          %p6613 = pneg %p6612
        $region54: #{forward.1} parent=39 // pred_check_branch
          %6615 = sbr.rel (%p6613) target = $region56
        $region55: #{forward.1} parent=39 // pred_region
          %v6616 = vld [vmem:[#allocation2] sm:$0x3]
          %v6617 = vld [vmem:[%s4] sm:$0x1]
          %v6619 = vlaneseq
          %v6620 = vshrl.u32 %v6619, 7
          %v6621 = vsub.s32 0, %v6620
          %v6622 = vrot.slane %v6617, %v6621
          %v6624 = vadd.f32 %v6616, %v6622
          %vm6625 = vcmask 17408
          %v6626 = vsel %vm6625, %v6624, -inf
          %6627 = vmax.xlane.f32.xlu0 %v6626
          %v6628 = vpop.xlane.xlu0 %6627
          %v6629 = vsub.f32 %v6624, %v6628
          %v6630 = vmul.f32 %v6629, 1.442695
          %v6631 = vpow.pop %v6630
          %v6632 = vsel %vm6625, %v6631, 0.0
          %6633 = vadd.xlane.f32.xlu0 %v6632
          %v6634 = vpop.xlane.xlu0 %6633
          %v6635 = vlog2.pop %v6634
          %v6636 = vmul.f32 %v6635, 0.6931472
          %v6637 = vsub.f32 %v6629, %v6636
          %6638 = vst.msk [vmem:[#allocation8] sm:$0x3] %vm6625, %v6637
        $region56: #{forward.1} parent=39 // pred_fallthru
          _
        // Predicated region
        $region57: #{forward.1} parent=39 // pred_check
          %p6639 = pneg %p142
        $region58: #{forward.1} parent=39 // pred_check_branch
          %6641 = sbr.rel (%p6639) target = $region60
        $region59: #{forward.1} parent=39 // pred_region
          %s6643 = ssub.s32 32, 32
          %6644 = vsyncadd [#allocation4], %s6643
          %s6646 = sshll.u32 [#allocation8], 4
          %s6647 = int_to_ptr.vmem [resolvable:$true] %s6646
          %6649 = dma.vmem_to_hbm [thread:$0]  %s6647, 32, %s5, [#allocation4]
        $region60: #{forward.1} parent=39 // pred_fallthru
          _
        // Predicated region
        $region61: #{forward.1} parent=39 // pred_check
          %p6650 = pneg %p142
        $region62: #{forward.1} parent=39 // pred_check_branch
          %6652 = sbr.rel (%p6650) target = $region64
        $region63: #{forward.1} parent=39 // pred_region
          %6653 = dma.done [#allocation4], 32
        $region64: #{forward.1} parent=39 // pred_fallthru
          _
      $region40: #{forward.1} parent=5 // pred_fallthru
        _
      %p6654 = scmp.le.s32.totalorder 2, %s14
      // Predicated region
      $region65: #{forward.1} parent=5 // pred_check
        %p6655 = pneg %p6654
      $region66: #{forward.1} parent=5 // pred_check_branch
        %6657 = sbr.rel (%p6655) target = $region68
      $region67: #{forward.1} parent=5 // pred_region
        %s6658 = ssub.s32 %s14, 2
      $region68: #{forward.1} parent=5 // pred_fallthru
        _
    $region6: #{forward.1} parent=1 // loop_footer
      %s18 = sadd.s32 1, %s14
    $region7: #{forward.1} parent=1 // loop_footer_branch
      %13 = sbr.rel target = $region3
    $region8: #{forward.1} parent=1 // loop_exit
      _
    %6659 = vsyncpa [#allocation4], 1
    %s6660 = scalar_lea.sflag [#allocation4], 1
    %6661 = vsyncpa %s6660, 1
    %6662 = vsyncpa [#allocation5], 1
    %s6663 = scalar_lea.sflag [#allocation5], 1
    %6664 = vsyncpa %s6663, 1
    %6665 = vsyncpa [#allocation7], 1

</llo_original>
